<compile_context>
chip_gen: v5e
topology: v5e:2x2
jax: 0.10.0
libtpu: 0.0.40
codegen_flags: <defaults>
</compile_context>

<pallas_src>
import jax
import jax.numpy as jnp
from jax import lax
from jax.experimental import pallas as pl
from jax.experimental.pallas import tpu as pltpu


_BN_EPS = 1e-3


# ---------------------------------------------------------------------------
# Pallas kernel: fused (bf16 patches @ bf16 scaled-weights) + bias, then ReLU
# ---------------------------------------------------------------------------
def _mm_bias_relu_kernel(lhs_ref, rhs_ref, bias_ref, out_ref):
    acc = jnp.dot(lhs_ref[...], rhs_ref[...],
                  preferred_element_type=jnp.float32)   # MXU, f32 accumulation
    out_ref[...] = jnp.maximum(acc + bias_ref[...], 0.0).astype(out_ref.dtype)


def _pick_tm(B, M, tm_target):
    if M > tm_target:
        return tm_target
    if B == 1 and M >= 64:
        # Split a lone problem into (at least) two M-tiles so both v7x
        # TensorCores get fed under ("parallel", "parallel") semantics.
        return ((M + 31) // 32) * 16          # ~ceil(M/2), multiple of 16
    return M                                   # full-extent block (always legal)


def _fused_matmul_bias_relu(lhs, rhs, bias, *, out_dtype=jnp.bfloat16,
                            tm_target=1024):
    """relu(lhs @ rhs + bias), batched over a leading problem axis.

    lhs:  (B, M, K)     bf16 activations / im2col patch matrix
    rhs:  (B, K, Cout)  weights with the BN scale folded in
    bias: (B, Cout)     folded BN bias
    returns (B, M, Cout) in out_dtype.
    """
    B, M, K = lhs.shape
    Cout = rhs.shape[-1]

    lhs = lhs.astype(jnp.bfloat16)          # no-op when callers pass bf16
    rhs = rhs.astype(jnp.bfloat16)
    bias = bias.reshape(B, 1, Cout).astype(jnp.float32)

    tm = _pick_tm(B, M, tm_target)
    # Ragged last M-block: Pallas masks its out-of-bounds writes, so no
    # jnp.pad / slice round-trip is needed.
    grid = (B, pl.cdiv(M, tm))

    out_bytes = 2 if out_dtype == jnp.bfloat16 else 4
    cost = pl.CostEstimate(
        flops=2 * B * M * K * Cout,
        transcendentals=0,
        bytes_accessed=(B * M * K * 2 + B * K * Cout * 2
                        + B * Cout * 4 + B * M * Cout * out_bytes),
    )

    return pl.pallas_call(
        _mm_bias_relu_kernel,
        out_shape=jax.ShapeDtypeStruct((B, M, Cout), out_dtype),
        grid=grid,
        in_specs=[
            pl.BlockSpec((None, tm, K), lambda b, i: (b, i, 0)),
            pl.BlockSpec((None, K, Cout), lambda b, i: (b, 0, 0)),
            pl.BlockSpec((None, 1, Cout), lambda b, i: (b, 0, 0)),
        ],
        out_specs=pl.BlockSpec((None, tm, Cout), lambda b, i: (b, i, 0)),
        compiler_params=pltpu.CompilerParams(
            dimension_semantics=("parallel", "parallel")),
        cost_estimate=cost,
    )(lhs, rhs, bias)


# ---------------------------------------------------------------------------
# XLA-side glue: BN folding, weight reshape, im2col (on bf16 activations)
# ---------------------------------------------------------------------------
def _fold_bn(p, eps=_BN_EPS):
    scale = p["gamma"] / jnp.sqrt(p["var"] + eps)
    bias = p["beta"] - p["mean"] * scale
    return scale, bias


def _weight_matrix(w):
    # (Cout, Cin, kh, kw) -> (kh*kw*Cin, Cout); matches (dy, dx, cin) patches
    cout, cin, kh, kw = w.shape
    return jnp.transpose(w, (2, 3, 1, 0)).reshape(kh * kw * cin, cout)


def _im2col(x, kh, kw, ph, pw):
    # Patch element order is (dy, dx, cin). x is NHWC (bf16).
    N, H, W, C = x.shape
    xp = jnp.pad(x, ((0, 0), (ph, ph), (pw, pw), (0, 0)))
    Ho = H + 2 * ph - kh + 1
    Wo = W + 2 * pw - kw + 1
    cols = [xp[:, dy:dy + Ho, dx:dx + Wo, :]
            for dy in range(kh) for dx in range(kw)]
    pmat = jnp.concatenate(cols, axis=-1).reshape(N * Ho * Wo, kh * kw * C)
    return pmat, (N, Ho, Wo)


def _conv_bn_relu(x_nhwc, p, kh, kw, ph, pw, out_dtype=jnp.bfloat16):
    """One BasicConv2d (stride 1) via a single fused Pallas matmul call."""
    pmat, (N, Ho, Wo) = _im2col(x_nhwc, kh, kw, ph, pw)
    scale, bias = _fold_bn(p)
    wmat = _weight_matrix(p["w"]) * scale[None, :]
    cout = wmat.shape[-1]
    out = _fused_matmul_bias_relu(pmat[None], wmat[None], bias[None],
                                  out_dtype=out_dtype)
    return out[0].reshape(N, Ho, Wo, cout)


# ---------------------------------------------------------------------------
# Parameter construction (deterministic, shapes from the PyTorch __init__)
# ---------------------------------------------------------------------------
def _make_basic_conv_params(key, cout, cin, kh, kw):
    k1, k2, k3, k4, k5 = jax.random.split(key, 5)
    fan_in = cin * kh * kw
    return dict(
        w=jax.random.normal(k1, (cout, cin, kh, kw), jnp.float32)
        * (1.0 / fan_in) ** 0.5,
        gamma=1.0 + 0.1 * jax.random.normal(k2, (cout,), jnp.float32),
        beta=0.1 * jax.random.normal(k3, (cout,), jnp.float32),
        mean=0.1 * jax.random.normal(k4, (cout,), jnp.float32),
        var=jnp.abs(jax.random.normal(k5, (cout,), jnp.float32)) + 0.5,
    )


def make_mixed_4a_params(key):
    ks = jax.random.split(key, 6)
    # (params, (pad_h, pad_w)) per BasicConv2d, matching Mixed_4a.__init__
    branch0 = [
        (_make_basic_conv_params(ks[0], 64, 160, 1, 1), (0, 0)),
        (_make_basic_conv_params(ks[1], 96, 64, 3, 3), (0, 0)),
    ]
    branch1 = [
        (_make_basic_conv_params(ks[2], 64, 160, 1, 1), (0, 0)),
        (_make_basic_conv_params(ks[3], 64, 64, 1, 7), (0, 3)),
        (_make_basic_conv_params(ks[4], 64, 64, 7, 1), (3, 0)),
        (_make_basic_conv_params(ks[5], 96, 64, 3, 3), (0, 0)),
    ]
    return branch0, branch1


# ---------------------------------------------------------------------------
# Forward passes
# ---------------------------------------------------------------------------
def mixed_4a_pallas(x_nchw, params):
    branch0, branch1 = params
    # NCHW -> NHWC fused with the bf16 cast: one HBM pass over the input.
    x = jnp.transpose(x_nchw, (0, 2, 3, 1)).astype(jnp.bfloat16)
    N, H, W, Cin = x.shape

    # ---- Stage 1: the two 1x1 convs share x -> one fused Cout=128 matmul.
    p1x1_b0 = branch0[0][0]
    p1x1_b1 = branch1[0][0]
    s0, bi0 = _fold_bn(p1x1_b0)
    s1, bi1 = _fold_bn(p1x1_b1)
    w_cat = jnp.concatenate(
        [_weight_matrix(p1x1_b0["w"]) * s0[None, :],
         _weight_matrix(p1x1_b1["w"]) * s1[None, :]], axis=1)       # (160, 128)
    bias_cat = jnp.concatenate([bi0, bi1])                          # (128,)
    lhs = x.reshape(N * H * W, Cin)
    y = _fused_matmul_bias_relu(lhs[None], w_cat[None], bias_cat[None],
                                out_dtype=jnp.bfloat16)[0]
    y = y.reshape(N, H, W, 128)
    y_b0 = y[..., :64]          # branch0 after its 1x1 (bf16)
    y_b1 = y[..., 64:]          # branch1 after its 1x1 (bf16)

    # ---- Stage 2/3: branch1's 1x7 then 7x1 convs (sequential dependency)
    p17, pad17 = branch1[1]
    y_b1 = _conv_bn_relu(y_b1, p17, 1, 7, pad17[0], pad17[1])
    p71, pad71 = branch1[2]
    y_b1 = _conv_bn_relu(y_b1, p71, 7, 1, pad71[0], pad71[1])

    # ---- Stage 4: both trailing 3x3 convs as ONE batched pallas_call.
    # One im2col over the batch-concatenated activations (no stack of the
    # 9x-inflated patch matrices); the reshape into (2, M, 576) is free.
    p3_b0 = branch0[1][0]
    p3_b1 = branch1[3][0]
    y_cat = jnp.concatenate([y_b0, y_b1], axis=0)                   # (2N,H,W,64)
    pm, (_, Ho, Wo) = _im2col(y_cat, 3, 3, 0, 0)
    M = N * Ho * Wo
    lhs3 = pm.reshape(2, M, 576)
    s30, bb30 = _fold_bn(p3_b0)
    s31, bb31 = _fold_bn(p3_b1)
    rhs3 = jnp.stack([_weight_matrix(p3_b0["w"]) * s30[None, :],
                      _weight_matrix(p3_b1["w"]) * s31[None, :]], axis=0)
    bias3 = jnp.stack([bb30, bb31], axis=0)                         # (2, 96)
    out3 = _fused_matmul_bias_relu(lhs3, rhs3, bias3,
                                   out_dtype=jnp.bfloat16)          # (2, M, 96)

    # Branch->channel concat absorbed into the single final NHWC->NCHW
    # transpose (channel order: branch0 -> 0..95, branch1 -> 96..191).
    out = out3.reshape(2, N, Ho, Wo, 96)
    out = jnp.transpose(out, (1, 0, 4, 2, 3)).astype(jnp.float32)   # (N,2,96,Ho,Wo)
    return out.reshape(N, 192, Ho, Wo)                              # NCHW


def mixed_4a_reference(x_nchw, params, eps=_BN_EPS):
    """Pure-JAX reference (f32 lax.conv) for correctness checking."""
    branch0, branch1 = params

    def basic(x, p, pad):
        y = lax.conv_general_dilated(
            x, p["w"], window_strides=(1, 1),
            padding=((pad[0], pad[0]), (pad[1], pad[1])),
            dimension_numbers=("NCHW", "OIHW", "NCHW"))
        s = (p["gamma"] / jnp.sqrt(p["var"] + eps)).reshape(1, -1, 1, 1)
        b = (p["beta"] - p["mean"] * p["gamma"]
             / jnp.sqrt(p["var"] + eps)).reshape(1, -1, 1, 1)
        return jnp.maximum(y * s + b, 0.0)

    def run_branch(x_in, layers):
        y = x_in
        for p, pad in layers:
            y = basic(y, p, pad)
        return y

    x0 = run_branch(x_nchw, branch0)
    x1 = run_branch(x_nchw, branch1)
    return jnp.concatenate([x0, x1], axis=1)


if __name__ == "__main__":
    key = jax.random.PRNGKey(0)
    kx, kp = jax.random.split(key)

    # Small input consistent with the module: Mixed_4a requires 160 in-channels.
    N, C, H, W = 2, 160, 16, 16
    x = jax.random.normal(kx, (N, C, H, W), jnp.float32)
    params = make_mixed_4a_params(kp)

    fwd = jax.jit(lambda xx: mixed_4a_pallas(xx, params))
    out = jax.block_until_ready(fwd(x))

    # Expected output: (N, 96+96, H-2, W-2)
    assert out.shape == (N, 192, H - 2, W - 2), out.shape

    ref = jax.block_until_ready(mixed_4a_reference(x, params))
    # bf16 MXU operands and bf16 intermediate activations (f32 accumulation)
    # -> compare with a relative-norm check instead of elementwise tolerance.
    rel_err = float(jnp.linalg.norm(out - ref) / (jnp.linalg.norm(ref) + 1e-6))
    assert rel_err < 5e-2, rel_err

    print("KERNEL_OK")
</pallas_src>

<mosaic_0001>
module attributes {stable_mosaic.version = 11 : i64} {
  func.func @_mm_bias_relu_kernel(%arg0: i32, %arg1: i32, %arg2: memref<1x256x160xbf16, #tpu.memory_space<vmem>>, %arg3: memref<1x160x128xbf16, #tpu.memory_space<vmem>>, %arg4: memref<1x1x128xf32, #tpu.memory_space<vmem>>, %arg5: memref<1x256x128xbf16, #tpu.memory_space<vmem>>) attributes {dimension_semantics = [#tpu.dimension_semantics<parallel>, #tpu.dimension_semantics<parallel>], iteration_bounds = array<i64: 1, 2>, scalar_prefetch = 0 : i64, scratch_operands = 0 : i64, tpu.core_type = #tpu.core_type<tc>, window_params = [{transform_indices = @transform_0, window_bounds = array<i64: 1, 256, 160>}, {transform_indices = @transform_1, window_bounds = array<i64: 1, 160, 128>}, {transform_indices = @transform_2, window_bounds = array<i64: 1, 1, 128>}, {transform_indices = @transform_3, window_bounds = array<i64: 1, 256, 128>}]} {
    %c0 = arith.constant 0 : index
    %c0_0 = arith.constant 0 : index
    %c0_1 = arith.constant 0 : index
    %0 = vector.load %arg2[%c0, %c0_0, %c0_1] : memref<1x256x160xbf16, #tpu.memory_space<vmem>>, vector<1x256x160xbf16>
    %1 = vector.shape_cast %0 : vector<1x256x160xbf16> to vector<256x160xbf16>
    %c0_2 = arith.constant 0 : index
    %c0_3 = arith.constant 0 : index
    %c0_4 = arith.constant 0 : index
    %2 = vector.load %arg3[%c0_2, %c0_3, %c0_4] : memref<1x160x128xbf16, #tpu.memory_space<vmem>>, vector<1x160x128xbf16>
    %3 = vector.shape_cast %2 : vector<1x160x128xbf16> to vector<160x128xbf16>
    %cst = arith.constant dense<0.000000e+00> : vector<256x128xf32>
    %4 = tpu.matmul %1, %3, %cst {dimension_numbers = #tpu.dot_dimension_numbers<[1], [0], [0], [1], [0, 0, 1, 1], [], []>} : vector<256x160xbf16>, vector<160x128xbf16>, vector<256x128xf32> -> vector<256x128xf32>
    %c0_5 = arith.constant 0 : index
    %c0_6 = arith.constant 0 : index
    %c0_7 = arith.constant 0 : index
    %5 = vector.load %arg4[%c0_5, %c0_6, %c0_7] : memref<1x1x128xf32, #tpu.memory_space<vmem>>, vector<1x1x128xf32>
    %6 = vector.shape_cast %5 : vector<1x1x128xf32> to vector<1x128xf32>
    %7 = vector.broadcast %6 : vector<1x128xf32> to vector<256x128xf32>
    %8 = arith.addf %4, %7 : vector<256x128xf32>
    %cst_8 = arith.constant 0.000000e+00 : f32
    %9 = vector.broadcast %cst_8 : f32 to vector<256x128xf32>
    %10 = arith.maximumf %8, %9 : vector<256x128xf32>
    %11 = arith.truncf %10 : vector<256x128xf32> to vector<256x128xbf16>
    %c0_9 = arith.constant 0 : index
    %c0_10 = arith.constant 0 : index
    %c0_11 = arith.constant 0 : index
    %12 = vector.load %arg5[%c0_9, %c0_10, %c0_11] : memref<1x256x128xbf16, #tpu.memory_space<vmem>>, vector<1x256x128xbf16>
    %13 = vector.shape_cast %12 : vector<1x256x128xbf16> to vector<256x128xbf16>
    %14 = vector.shape_cast %11 : vector<256x128xbf16> to vector<1x256x128xbf16>
    tpu.vector_store %arg5[%c0_9, %c0_10, %c0_11], %14 {strides = array<i32>} : memref<1x256x128xbf16, #tpu.memory_space<vmem>>, vector<1x256x128xbf16>,
    return
  }
  func.func @transform_0(%arg0: i32, %arg1: i32) -> (i32, i32, i32) {
    %c0_i32 = arith.constant 0 : i32
    %c0_i32_0 = arith.constant 0 : i32
    return %arg0, %arg1, %c0_i32 : i32, i32, i32
  }
  func.func @transform_1(%arg0: i32, %arg1: i32) -> (i32, i32, i32) {
    %c0_i32 = arith.constant 0 : i32
    %c0_i32_0 = arith.constant 0 : i32
    %c0_i32_1 = arith.constant 0 : i32
    return %arg0, %c0_i32, %c0_i32_0 : i32, i32, i32
  }
  func.func @transform_2(%arg0: i32, %arg1: i32) -> (i32, i32, i32) {
    %c0_i32 = arith.constant 0 : i32
    %c0_i32_0 = arith.constant 0 : i32
    %c0_i32_1 = arith.constant 0 : i32
    return %arg0, %c0_i32, %c0_i32_0 : i32, i32, i32
  }
  func.func @transform_3(%arg0: i32, %arg1: i32) -> (i32, i32, i32) {
    %c0_i32 = arith.constant 0 : i32
    %c0_i32_0 = arith.constant 0 : i32
    return %arg0, %arg1, %c0_i32 : i32, i32, i32
  }
}

module attributes {stable_mosaic.version = 11 : i64} {
  func.func @_mm_bias_relu_kernel(%arg0: i32, %arg1: i32, %arg2: memref<1x256x448xbf16, #tpu.memory_space<vmem>>, %arg3: memref<1x448x64xbf16, #tpu.memory_space<vmem>>, %arg4: memref<1x1x64xf32, #tpu.memory_space<vmem>>, %arg5: memref<1x256x64xbf16, #tpu.memory_space<vmem>>) attributes {dimension_semantics = [#tpu.dimension_semantics<parallel>, #tpu.dimension_semantics<parallel>], iteration_bounds = array<i64: 1, 2>, scalar_prefetch = 0 : i64, scratch_operands = 0 : i64, tpu.core_type = #tpu.core_type<tc>, window_params = [{transform_indices = @transform_0, window_bounds = array<i64: 1, 256, 448>}, {transform_indices = @transform_1, window_bounds = array<i64: 1, 448, 64>}, {transform_indices = @transform_2, window_bounds = array<i64: 1, 1, 64>}, {transform_indices = @transform_3, window_bounds = array<i64: 1, 256, 64>}]} {
    %c0 = arith.constant 0 : index
    %c0_0 = arith.constant 0 : index
    %c0_1 = arith.constant 0 : index
    %0 = vector.load %arg2[%c0, %c0_0, %c0_1] : memref<1x256x448xbf16, #tpu.memory_space<vmem>>, vector<1x256x448xbf16>
    %1 = vector.shape_cast %0 : vector<1x256x448xbf16> to vector<256x448xbf16>
    %c0_2 = arith.constant 0 : index
    %c0_3 = arith.constant 0 : index
    %c0_4 = arith.constant 0 : index
    %2 = vector.load %arg3[%c0_2, %c0_3, %c0_4] : memref<1x448x64xbf16, #tpu.memory_space<vmem>>, vector<1x448x64xbf16>
    %3 = vector.shape_cast %2 : vector<1x448x64xbf16> to vector<448x64xbf16>
    %cst = arith.constant dense<0.000000e+00> : vector<256x64xf32>
    %4 = tpu.matmul %1, %3, %cst {dimension_numbers = #tpu.dot_dimension_numbers<[1], [0], [0], [1], [0, 0, 1, 1], [], []>} : vector<256x448xbf16>, vector<448x64xbf16>, vector<256x64xf32> -> vector<256x64xf32>
    %c0_5 = arith.constant 0 : index
    %c0_6 = arith.constant 0 : index
    %c0_7 = arith.constant 0 : index
    %5 = vector.load %arg4[%c0_5, %c0_6, %c0_7] : memref<1x1x64xf32, #tpu.memory_space<vmem>>, vector<1x1x64xf32>
    %6 = vector.shape_cast %5 : vector<1x1x64xf32> to vector<1x64xf32>
    %7 = vector.broadcast %6 : vector<1x64xf32> to vector<256x64xf32>
    %8 = arith.addf %4, %7 : vector<256x64xf32>
    %cst_8 = arith.constant 0.000000e+00 : f32
    %9 = vector.broadcast %cst_8 : f32 to vector<256x64xf32>
    %10 = arith.maximumf %8, %9 : vector<256x64xf32>
    %11 = arith.truncf %10 : vector<256x64xf32> to vector<256x64xbf16>
    %c0_9 = arith.constant 0 : index
    %c0_10 = arith.constant 0 : index
    %c0_11 = arith.constant 0 : index
    %12 = vector.load %arg5[%c0_9, %c0_10, %c0_11] : memref<1x256x64xbf16, #tpu.memory_space<vmem>>, vector<1x256x64xbf16>
    %13 = vector.shape_cast %12 : vector<1x256x64xbf16> to vector<256x64xbf16>
    %14 = vector.shape_cast %11 : vector<256x64xbf16> to vector<1x256x64xbf16>
    tpu.vector_store %arg5[%c0_9, %c0_10, %c0_11], %14 {strides = array<i32>} : memref<1x256x64xbf16, #tpu.memory_space<vmem>>, vector<1x256x64xbf16>,
    return
  }
  func.func @transform_0(%arg0: i32, %arg1: i32) -> (i32, i32, i32) {
    %c0_i32 = arith.constant 0 : i32
    %c0_i32_0 = arith.constant 0 : i32
    return %arg0, %arg1, %c0_i32 : i32, i32, i32
  }
  func.func @transform_1(%arg0: i32, %arg1: i32) -> (i32, i32, i32) {
    %c0_i32 = arith.constant 0 : i32
    %c0_i32_0 = arith.constant 0 : i32
    %c0_i32_1 = arith.constant 0 : i32
    return %arg0, %c0_i32, %c0_i32_0 : i32, i32, i32
  }
  func.func @transform_2(%arg0: i32, %arg1: i32) -> (i32, i32, i32) {
    %c0_i32 = arith.constant 0 : i32
    %c0_i32_0 = arith.constant 0 : i32
    %c0_i32_1 = arith.constant 0 : i32
    return %arg0, %c0_i32, %c0_i32_0 : i32, i32, i32
  }
  func.func @transform_3(%arg0: i32, %arg1: i32) -> (i32, i32, i32) {
    %c0_i32 = arith.constant 0 : i32
    %c0_i32_0 = arith.constant 0 : i32
    return %arg0, %arg1, %c0_i32 : i32, i32, i32
  }
}

module attributes {stable_mosaic.version = 11 : i64} {
  func.func @_mm_bias_relu_kernel(%arg0: i32, %arg1: i32, %arg2: memref<1x392x576xbf16, #tpu.memory_space<vmem>>, %arg3: memref<1x576x96xbf16, #tpu.memory_space<vmem>>, %arg4: memref<1x1x96xf32, #tpu.memory_space<vmem>>, %arg5: memref<1x392x96xbf16, #tpu.memory_space<vmem>>) attributes {dimension_semantics = [#tpu.dimension_semantics<parallel>, #tpu.dimension_semantics<parallel>], iteration_bounds = array<i64: 2, 1>, scalar_prefetch = 0 : i64, scratch_operands = 0 : i64, tpu.core_type = #tpu.core_type<tc>, window_params = [{transform_indices = @transform_0, window_bounds = array<i64: 1, 392, 576>}, {transform_indices = @transform_1, window_bounds = array<i64: 1, 576, 96>}, {transform_indices = @transform_2, window_bounds = array<i64: 1, 1, 96>}, {transform_indices = @transform_3, window_bounds = array<i64: 1, 392, 96>}]} {
    %c0 = arith.constant 0 : index
    %c0_0 = arith.constant 0 : index
    %c0_1 = arith.constant 0 : index
    %0 = vector.load %arg2[%c0, %c0_0, %c0_1] : memref<1x392x576xbf16, #tpu.memory_space<vmem>>, vector<1x392x576xbf16>
    %1 = vector.shape_cast %0 : vector<1x392x576xbf16> to vector<392x576xbf16>
    %c0_2 = arith.constant 0 : index
    %c0_3 = arith.constant 0 : index
    %c0_4 = arith.constant 0 : index
    %2 = vector.load %arg3[%c0_2, %c0_3, %c0_4] : memref<1x576x96xbf16, #tpu.memory_space<vmem>>, vector<1x576x96xbf16>
    %3 = vector.shape_cast %2 : vector<1x576x96xbf16> to vector<576x96xbf16>
    %cst = arith.constant dense<0.000000e+00> : vector<392x96xf32>
    %4 = tpu.matmul %1, %3, %cst {dimension_numbers = #tpu.dot_dimension_numbers<[1], [0], [0], [1], [0, 0, 1, 1], [], []>} : vector<392x576xbf16>, vector<576x96xbf16>, vector<392x96xf32> -> vector<392x96xf32>
    %c0_5 = arith.constant 0 : index
    %c0_6 = arith.constant 0 : index
    %c0_7 = arith.constant 0 : index
    %5 = vector.load %arg4[%c0_5, %c0_6, %c0_7] : memref<1x1x96xf32, #tpu.memory_space<vmem>>, vector<1x1x96xf32>
    %6 = vector.shape_cast %5 : vector<1x1x96xf32> to vector<1x96xf32>
    %7 = vector.broadcast %6 : vector<1x96xf32> to vector<392x96xf32>
    %8 = arith.addf %4, %7 : vector<392x96xf32>
    %cst_8 = arith.constant 0.000000e+00 : f32
    %9 = vector.broadcast %cst_8 : f32 to vector<392x96xf32>
    %10 = arith.maximumf %8, %9 : vector<392x96xf32>
    %11 = arith.truncf %10 : vector<392x96xf32> to vector<392x96xbf16>
    %c0_9 = arith.constant 0 : index
    %c0_10 = arith.constant 0 : index
    %c0_11 = arith.constant 0 : index
    %12 = vector.load %arg5[%c0_9, %c0_10, %c0_11] : memref<1x392x96xbf16, #tpu.memory_space<vmem>>, vector<1x392x96xbf16>
    %13 = vector.shape_cast %12 : vector<1x392x96xbf16> to vector<392x96xbf16>
    %14 = vector.shape_cast %11 : vector<392x96xbf16> to vector<1x392x96xbf16>
    tpu.vector_store %arg5[%c0_9, %c0_10, %c0_11], %14 {strides = array<i32>} : memref<1x392x96xbf16, #tpu.memory_space<vmem>>, vector<1x392x96xbf16>,
    return
  }
  func.func @transform_0(%arg0: i32, %arg1: i32) -> (i32, i32, i32) {
    %c0_i32 = arith.constant 0 : i32
    %c0_i32_0 = arith.constant 0 : i32
    return %arg0, %arg1, %c0_i32 : i32, i32, i32
  }
  func.func @transform_1(%arg0: i32, %arg1: i32) -> (i32, i32, i32) {
    %c0_i32 = arith.constant 0 : i32
    %c0_i32_0 = arith.constant 0 : i32
    %c0_i32_1 = arith.constant 0 : i32
    return %arg0, %c0_i32, %c0_i32_0 : i32, i32, i32
  }
  func.func @transform_2(%arg0: i32, %arg1: i32) -> (i32, i32, i32) {
    %c0_i32 = arith.constant 0 : i32
    %c0_i32_0 = arith.constant 0 : i32
    %c0_i32_1 = arith.constant 0 : i32
    return %arg0, %c0_i32, %c0_i32_0 : i32, i32, i32
  }
  func.func @transform_3(%arg0: i32, %arg1: i32) -> (i32, i32, i32) {
    %c0_i32 = arith.constant 0 : i32
    %c0_i32_0 = arith.constant 0 : i32
    return %arg0, %arg1, %c0_i32 : i32, i32, i32
  }
}

</mosaic_0001>

<llo_original>
// kernel: _lambda_.4
$region0: #{_lambda_.4}
  #allocation0 [shape = 'u32[]', space=smem, size = 0x4, offset = 0x4, fixed_abs, tag = 'smem constant byte address 0x4 - core index']
  #allocation1 [shape = 'u32[72,128]{1,0:T(1,128)}', space=vmem, size = 0x9000, scoped, tag = 'internal scratch']
  %s0 = inlined_call_operand.vmem [shape: bf16[1,512,160], index: 0, kind: input, shape index: {}]
  %s1 = inlined_call_operand.hbm [shape: bf16[1,160,128], index: 1, kind: input, shape index: {}]
  %s2 = inlined_call_operand.hbm [shape: f32[1,1,128], index: 2, kind: input, shape index: {}]
  %s3 = inlined_call_operand.vmem [shape: bf16[1,512,128], index: 3, kind: output, shape index: {}]
  %s4 = sld [smem:[#allocation0]]
  $region53: #{_lambda_.4} parent=0
    _
  %s6 = ssub.s32 1, %s4
  %s7 = scalar_select 0, %s6, %s4
  $region1: #{_lambda_.4} parent=0
    #allocation2 [shape = 'u8[40960]{0}', space=vmem, size = 0xa000, scoped, tag = 'input window, operand 1, single buffered']
    #allocation3 [shape = 's32[2]{0}', space=sflag, size = 0x8, scoped, tag = 'scoped memory for _lambda_.4']
    #allocation4 [shape = 'u8[512]{0}', space=vmem, size = 0x400, scoped, tag = 'input window, operand 2, single buffered']
    #allocation5 [shape = 's32[1]{0}', space=sflag, size = 0x4, scoped, tag = 'scoped memory for _lambda_.4']
    %8 = vsyncpa [#allocation3], 0
    %9 = vsyncpa [#allocation5], 0
    loop: start=0, step=1, limit=4
    $region2: #{_lambda_.4} parent=1 // loop_pre_header
      _
    $region3: #{_lambda_.4} parent=1 // loop_header
      %s11 = sphi 0, %s15
      %p12 = scmp.ge.s32.totalorder %s11, 4
      %s18 = sphi 0, %s30
      %s19 = sphi 0, %s26
      %s20 = sphi 0, %s18
      %s21 = sphi 0, %s19
      %s22 = sphi 0, %s20
      %s23 = sphi 0, %s21
      %s35 = sphi 0, %s37
      %s38 = sphi 0, %s35
      %s39 = sphi 0, %s38
      %s55 = sphi 0, %s39
      %s61 = sphi 0, %s63
      %s64 = sphi 0, %s61
      %s65 = sphi 0, %s64
      %s81 = sphi 0, %s65
      %s87 = sphi 0, %s89
      %s90 = sphi 0, %s87
      %s91 = sphi 0, %s90
      %s107 = sphi 0, %s91
      %s115 = sphi 0, %s117
      %s118 = sphi 0, %s115
      %s119 = sphi 0, %s118
      %s135 = sphi 0, %s119
    $region4: #{_lambda_.4} parent=1 // loop_header_branch
      %14 = sbr.rel (%p12) target = $region8
    $region5: #{_lambda_.4} parent=1 // loop_body
      %s16 = ssub.s32 %s11, 1
      %s17 = ssub.s32 %s11, 2
      %s24 = sadd.s32 1, %s19
      %p25 = scmp.ge.s32.totalorder %s24, 2
      %s26 = scalar_select %p25, 0, %s24
      %s27 = sadd.s32 1, %s18
      %s28 = scalar_select %p25, %s27, %s18
      %p29 = scmp.ge.s32.totalorder %s28, 1
      %s30 = scalar_select %p29, 0, %s28
      %s31 = ssub.s32 %s18, %s30
      %s32 = ssub.s32 %s19, %s26
      %s33 = sor.u32 %s31, %s32
      %p34 = scmp.eq.s32.totalorder %s33, 0
      %s36 = sadd.s32 %s35, 1
      %s37 = scalar_select %p34, %s35, %s36
      %p40 = pneg %p34
      %p41 = scmp.eq.s32.totalorder %s11, 1
      %p42 = por %p40, %p41
      %p43 = scmp.ne.s32.totalorder %s35, %s38
      %p44 = scmp.eq.s32.totalorder %s11, 0
      %p45 = por %p43, %p44
      %p46 = scmp.ne.s32.totalorder %s35, %s38
      %p47 = scmp.eq.s32.totalorder %s16, 1
      %p48 = por %p46, %p47
      %p49 = scmp.ne.s32.totalorder %s38, %s39
      %p50 = scmp.eq.s32.totalorder %s16, 0
      %p51 = por %p49, %p50
      %p52 = scmp.ne.s32.totalorder %s38, %s39
      %p53 = scmp.eq.s32.totalorder %s17, 1
      %p54 = por %p52, %p53
      %p56 = scmp.ne.s32.totalorder %s39, %s55
      %p57 = scmp.eq.s32.totalorder %s17, 0
      %p58 = por %p56, %p57
      %s59 = ssub.s32 %s18, %s30
      %p60 = scmp.eq.s32.totalorder %s59, 0
      %s62 = sadd.s32 %s61, 1
      %s63 = scalar_select %p60, %s61, %s62
      %p66 = pneg %p60
      %p67 = scmp.eq.s32.totalorder %s11, 1
      %p68 = por %p66, %p67
      %p69 = scmp.ne.s32.totalorder %s61, %s64
      %p70 = scmp.eq.s32.totalorder %s11, 0
      %p71 = por %p69, %p70
      %p72 = scmp.ne.s32.totalorder %s61, %s64
      %p73 = scmp.eq.s32.totalorder %s16, 1
      %p74 = por %p72, %p73
      %p75 = scmp.ne.s32.totalorder %s64, %s65
      %p76 = scmp.eq.s32.totalorder %s16, 0
      %p77 = por %p75, %p76
      %p78 = scmp.ne.s32.totalorder %s64, %s65
      %p79 = scmp.eq.s32.totalorder %s17, 1
      %p80 = por %p78, %p79
      %p82 = scmp.ne.s32.totalorder %s65, %s81
      %p83 = scmp.eq.s32.totalorder %s17, 0
      %p84 = por %p82, %p83
      %s85 = ssub.s32 %s18, %s30
      %p86 = scmp.eq.s32.totalorder %s85, 0
      %s88 = sadd.s32 %s87, 1
      %s89 = scalar_select %p86, %s87, %s88
      %p92 = pneg %p86
      %p93 = scmp.eq.s32.totalorder %s11, 1
      %p94 = por %p92, %p93
      %p95 = scmp.ne.s32.totalorder %s87, %s90
      %p96 = scmp.eq.s32.totalorder %s11, 0
      %p97 = por %p95, %p96
      %p98 = scmp.ne.s32.totalorder %s87, %s90
      %p99 = scmp.eq.s32.totalorder %s16, 1
      %p100 = por %p98, %p99
      %p101 = scmp.ne.s32.totalorder %s90, %s91
      %p102 = scmp.eq.s32.totalorder %s16, 0
      %p103 = por %p101, %p102
      %p104 = scmp.ne.s32.totalorder %s90, %s91
      %p105 = scmp.eq.s32.totalorder %s17, 1
      %p106 = por %p104, %p105
      %p108 = scmp.ne.s32.totalorder %s91, %s107
      %p109 = scmp.eq.s32.totalorder %s17, 0
      %p110 = por %p108, %p109
      %s111 = ssub.s32 %s18, %s30
      %s112 = ssub.s32 %s19, %s26
      %s113 = sor.u32 %s111, %s112
      %p114 = scmp.eq.s32.totalorder %s113, 0
      %s116 = sadd.s32 %s115, 1
      %s117 = scalar_select %p114, %s115, %s116
      %p120 = pneg %p114
      %p121 = scmp.eq.s32.totalorder %s11, 1
      %p122 = por %p120, %p121
      %p123 = scmp.ne.s32.totalorder %s115, %s118
      %p124 = scmp.eq.s32.totalorder %s11, 0
      %p125 = por %p123, %p124
      %p126 = scmp.ne.s32.totalorder %s115, %s118
      %p127 = scmp.eq.s32.totalorder %s16, 1
      %p128 = por %p126, %p127
      %p129 = scmp.ne.s32.totalorder %s118, %s119
      %p130 = scmp.eq.s32.totalorder %s16, 0
      %p131 = por %p129, %p130
      %p132 = scmp.ne.s32.totalorder %s118, %s119
      %p133 = scmp.eq.s32.totalorder %s17, 1
      %p134 = por %p132, %p133
      %p136 = scmp.ne.s32.totalorder %s119, %s135
      %p137 = scmp.eq.s32.totalorder %s17, 0
      %p138 = por %p136, %p137
      %p139 = scmp.le.s32.totalorder 1, %s11
      %p140 = scmp.lt.s32.totalorder %s11, 3
      %p141 = pnand %p139, %p140
      %p142 = pneg %p141
      // Predicated region
      $region9: #{_lambda_.4} parent=5 // pred_check
        _
      $region10: #{_lambda_.4} parent=5 // pred_check_branch
        %144 = sbr.rel (%p141) target = $region12
      $region11: #{_lambda_.4} parent=5 // pred_region
        %s145 = ssub.s32 %s11, 1
        // Predicated region
        $region13: #{_lambda_.4} parent=11 // pred_check
          %p146 = pneg %p77
        $region14: #{_lambda_.4} parent=11 // pred_check_branch
          %148 = sbr.rel (%p146) target = $region16
        $region15: #{_lambda_.4} parent=11 // pred_region
          %150 = vsyncadd [#allocation3], 0
          %s151 = smul.addr %s20, 20
          %s152 = smul.addr %s151, 4
          %s153 = scalar_lea.hbm %s1, %s152
          %s154 = sshll.u32 %s153, 4
          %s155 = int_to_ptr.hbm [resolvable:$true] %s154
          %s156 = sshll.u32 [#allocation2], 4
          %s157 = int_to_ptr.vmem [resolvable:$true] %s156
          %162 = dma.hbm_to_vmem [thread:$0]  %s155, 1280, %s157, [#allocation3], 64, 64, 4
        $region16: #{_lambda_.4} parent=11 // pred_fallthru
          _
        // Predicated region
        $region17: #{_lambda_.4} parent=11 // pred_check
          %p163 = pneg %p103
        $region18: #{_lambda_.4} parent=11 // pred_check_branch
          %165 = sbr.rel (%p163) target = $region20
        $region19: #{_lambda_.4} parent=11 // pred_region
          %167 = vsyncadd [#allocation5], 0
          %s168 = scalar_lea.hbm %s2, %s20
          %s170 = sshll.u32 %s168, 4
          %s171 = int_to_ptr.hbm [resolvable:$true] %s170
          %s172 = sshll.u32 [#allocation4], 4
          %s173 = int_to_ptr.vmem [resolvable:$true] %s172
          %175 = dma.hbm_to_vmem [thread:$0]  %s171, 16, %s173, [#allocation5]
        $region20: #{_lambda_.4} parent=11 // pred_fallthru
          _
      $region12: #{_lambda_.4} parent=5 // pred_fallthru
        _
      %p176 = scmp.lt.s32.totalorder %s11, 2
      // Predicated region
      $region21: #{_lambda_.4} parent=5 // pred_check
        %p177 = pneg %p176
      $region22: #{_lambda_.4} parent=5 // pred_check_branch
        %179 = sbr.rel (%p177) target = $region24
      $region23: #{_lambda_.4} parent=5 // pred_region
        // Predicated region
        $region25: #{_lambda_.4} parent=23 // pred_check
          %p180 = pneg %p45
        $region26: #{_lambda_.4} parent=23 // pred_check_branch
          %182 = sbr.rel (%p180) target = $region28
        $region27: #{_lambda_.4} parent=23 // pred_region
          %s183 = smul.u32 32, %s19
          %p184 = scmp.lt.s32.totalorder %s18, 0
          %s185 = scalar_select %p184, %s18, 0
          %p186 = scmp.lt.s32.totalorder %s183, 63
          %s187 = scalar_select %p186, %s183, 63
          %s188 = smul.addr %s187, 2
          %s189 = smul.addr %s185, 128
          %s190 = sadd.s32 %s188, %s189
          %s191 = smul.addr %s190, 4
          %s192 = scalar_lea.vmem %s0, %s191
          %s193 = smul.u32 32, %s19
        $region28: #{_lambda_.4} parent=23 // pred_fallthru
          _
      $region24: #{_lambda_.4} parent=5 // pred_fallthru
        _
      %p194 = scmp.le.s32.totalorder 1, %s11
      %p195 = scmp.lt.s32.totalorder %s11, 3
      %p196 = pnand %p194, %p195
      %p197 = pneg %p196
      // Predicated region
      $region29: #{_lambda_.4} parent=5 // pred_check
        _
      $region30: #{_lambda_.4} parent=5 // pred_check_branch
        %199 = sbr.rel (%p196) target = $region32
      $region31: #{_lambda_.4} parent=5 // pred_region
        %s200 = ssub.s32 %s11, 1
        // Predicated region
        $region33: #{_lambda_.4} parent=31 // pred_check
          %p201 = pneg %p77
        $region34: #{_lambda_.4} parent=31 // pred_check_branch
          %203 = sbr.rel (%p201) target = $region36
        $region35: #{_lambda_.4} parent=31 // pred_region
          %205 = dma.done [#allocation3], 1280
        $region36: #{_lambda_.4} parent=31 // pred_fallthru
          _
        // Predicated region
        $region37: #{_lambda_.4} parent=31 // pred_check
          %p206 = pneg %p103
        $region38: #{_lambda_.4} parent=31 // pred_check_branch
          %208 = sbr.rel (%p206) target = $region40
        $region39: #{_lambda_.4} parent=31 // pred_region
          %210 = dma.done [#allocation5], 16
        $region40: #{_lambda_.4} parent=31 // pred_fallthru
          _
        %s211 = smul.u32 32, %s21
        %p212 = scmp.lt.s32.totalorder %s20, 0
        %s213 = scalar_select %p212, %s20, 0
        %p214 = scmp.lt.s32.totalorder %s211, 63
        %s215 = scalar_select %p214, %s211, 63
        %s216 = smul.addr %s215, 2
        %s217 = smul.addr %s213, 128
        %s218 = sadd.s32 %s216, %s217
        %s219 = smul.addr %s218, 4
        %s220 = scalar_lea.vmem %s0, %s219
        %p221 = pneg %p51
        %p222 = pneg %p48
        %p223 = pneg %p77
        %p224 = pneg %p74
        %p225 = pneg %p103
        %p226 = pneg %p100
        %p227 = pneg %p131
        %p228 = pneg %p128
        %s229 = smul.u32 32, %s21
        %p230 = scmp.lt.s32.totalorder %s20, 0
        %s231 = scalar_select %p230, %s20, 0
        %p232 = scmp.lt.s32.totalorder %s229, 63
        %s233 = scalar_select %p232, %s229, 63
        %s234 = smul.addr %s231, 64
        %s235 = sadd.s32 %s233, %s234
        %s236 = smul.addr %s235, 4
        %s237 = scalar_lea.vmem %s3, %s236
        %s238 = smul.u32 32, %s21
        %p239 = scmp.lt.s32.totalorder %s20, 0
        %s240 = scalar_select %p239, %s20, 0
        %p241 = scmp.lt.s32.totalorder %s238, 63
        %s242 = scalar_select %p241, %s238, 63
        %s243 = smul.addr %s242, 2
        %s244 = smul.addr %s240, 128
        %s245 = sadd.s32 %s243, %s244
        %s246 = smul.addr %s245, 4
        %s247 = scalar_lea.vmem %s0, %s246
        %s248 = smul.u32 32, %s21
        %s249 = smul.u32 32, %s21
        %p250 = scmp.lt.s32.totalorder %s20, 0
        %s251 = scalar_select %p250, %s20, 0
        %p252 = scmp.lt.s32.totalorder %s249, 63
        %s253 = scalar_select %p252, %s249, 63
        %s254 = smul.addr %s251, 64
        %s255 = sadd.s32 %s253, %s254
        %s256 = smul.addr %s255, 4
        %s257 = scalar_lea.vmem %s3, %s256
        %s258 = smul.u32 32, %s21
        %v260 = vld [vmem:[%s247] sm:$0xff]
        %v261 = vld [vmem:[%s247 + $0x8] sm:$0xff]
        %v262 = vld [vmem:[%s247 + $0x10] sm:$0xff]
        %v263 = vld [vmem:[%s247 + $0x18] sm:$0xff]
        %v264 = vld [vmem:[%s247 + $0x20] sm:$0xff]
        %v265 = vld [vmem:[%s247 + $0x28] sm:$0xff]
        %v266 = vld [vmem:[%s247 + $0x30] sm:$0xff]
        %v267 = vld [vmem:[%s247 + $0x38] sm:$0xff]
        %v268 = vld [vmem:[%s247 + $0x40] sm:$0xff]
        %v269 = vld [vmem:[%s247 + $0x48] sm:$0xff]
        %v270 = vld [vmem:[%s247 + $0x50] sm:$0xff]
        %v271 = vld [vmem:[%s247 + $0x58] sm:$0xff]
        %v272 = vld [vmem:[%s247 + $0x60] sm:$0xff]
        %v273 = vld [vmem:[%s247 + $0x68] sm:$0xff]
        %v274 = vld [vmem:[%s247 + $0x70] sm:$0xff]
        %v275 = vld [vmem:[%s247 + $0x78] sm:$0xff]
        %v276 = vld [vmem:[%s247 + $0x80] sm:$0xff]
        %v277 = vld [vmem:[%s247 + $0x88] sm:$0xff]
        %v278 = vld [vmem:[%s247 + $0x90] sm:$0xff]
        %v279 = vld [vmem:[%s247 + $0x98] sm:$0xff]
        %v280 = vld [vmem:[%s247 + $0xa0] sm:$0xff]
        %v281 = vld [vmem:[%s247 + $0xa8] sm:$0xff]
        %v282 = vld [vmem:[%s247 + $0xb0] sm:$0xff]
        %v283 = vld [vmem:[%s247 + $0xb8] sm:$0xff]
        %v284 = vld [vmem:[%s247 + $0xc0] sm:$0xff]
        %v285 = vld [vmem:[%s247 + $0xc8] sm:$0xff]
        %v286 = vld [vmem:[%s247 + $0xd0] sm:$0xff]
        %v287 = vld [vmem:[%s247 + $0xd8] sm:$0xff]
        %v288 = vld [vmem:[%s247 + $0xe0] sm:$0xff]
        %v289 = vld [vmem:[%s247 + $0xe8] sm:$0xff]
        %v290 = vld [vmem:[%s247 + $0xf0] sm:$0xff]
        %v291 = vld [vmem:[%s247 + $0xf8] sm:$0xff]
        %v292 = vld [vmem:[#allocation2] sm:$0xf]
        %v293 = vld [vmem:[#allocation2 + $0x4] sm:$0xf]
        %v294 = vld [vmem:[#allocation2 + $0x8] sm:$0xf]
        %v295 = vld [vmem:[#allocation2 + $0xc] sm:$0xf]
        %v296 = vld [vmem:[#allocation2 + $0x10] sm:$0xf]
        %v297 = vld [vmem:[#allocation2 + $0x14] sm:$0xf]
        %v298 = vld [vmem:[#allocation2 + $0x18] sm:$0xf]
        %v299 = vld [vmem:[#allocation2 + $0x1c] sm:$0xf]
        %v300 = vld [vmem:[#allocation2 + $0x20] sm:$0xf]
        %v301 = vld [vmem:[#allocation2 + $0x24] sm:$0xf]
        %v302 = vld [vmem:[#allocation2 + $0x28] sm:$0xf]
        %v303 = vld [vmem:[#allocation2 + $0x2c] sm:$0xf]
        %v304 = vld [vmem:[#allocation2 + $0x30] sm:$0xf]
        %v305 = vld [vmem:[#allocation2 + $0x34] sm:$0xf]
        %v306 = vld [vmem:[#allocation2 + $0x38] sm:$0xf]
        %v307 = vld [vmem:[#allocation2 + $0x3c] sm:$0xf]
        %v308 = vld [vmem:[#allocation2 + $0x40] sm:$0xf]
        %v309 = vld [vmem:[#allocation2 + $0x44] sm:$0xf]
        %v310 = vld [vmem:[#allocation2 + $0x48] sm:$0xf]
        %v311 = vld [vmem:[#allocation2 + $0x4c] sm:$0xf]
        %v312 = vld [vmem:[#allocation4] sm:$0x1]
        %v314 = vperm.slane %v312, 0
        %v348 = vunpack.c.l.b16 %v260
        %v349 = vunpack.c.h.b16 %v260
        %v350 = vunpack.c.l.b16 %v261
        %v351 = vunpack.c.h.b16 %v261
        %v352 = vunpack.c.l.b16 %v262
        %v353 = vunpack.c.h.b16 %v262
        %v354 = vunpack.c.l.b16 %v263
        %v355 = vunpack.c.h.b16 %v263
        %v356 = vunpack.c.l.b16 %v264
        %v357 = vunpack.c.h.b16 %v264
        %v358 = vunpack.c.l.b16 %v265
        %v359 = vunpack.c.h.b16 %v265
        %v360 = vunpack.c.l.b16 %v266
        %v361 = vunpack.c.h.b16 %v266
        %v362 = vunpack.c.l.b16 %v267
        %v363 = vunpack.c.h.b16 %v267
        %v364 = vunpack.c.l.b16 %v268
        %v365 = vunpack.c.h.b16 %v268
        %v366 = vunpack.c.l.b16 %v269
        %v367 = vunpack.c.h.b16 %v269
        %v368 = vunpack.c.l.b16 %v270
        %v369 = vunpack.c.h.b16 %v270
        %v370 = vunpack.c.l.b16 %v271
        %v371 = vunpack.c.h.b16 %v271
        %v372 = vunpack.c.l.b16 %v272
        %v373 = vunpack.c.h.b16 %v272
        %v374 = vunpack.c.l.b16 %v273
        %v375 = vunpack.c.h.b16 %v273
        %v376 = vunpack.c.l.b16 %v274
        %v377 = vunpack.c.h.b16 %v274
        %v378 = vunpack.c.l.b16 %v275
        %v379 = vunpack.c.h.b16 %v275
        %v380 = vunpack.c.l.b16 %v276
        %v381 = vunpack.c.h.b16 %v276
        %v382 = vunpack.c.l.b16 %v277
        %v383 = vunpack.c.h.b16 %v277
        %v384 = vunpack.c.l.b16 %v278
        %v385 = vunpack.c.h.b16 %v278
        %v386 = vunpack.c.l.b16 %v279
        %v387 = vunpack.c.h.b16 %v279
        %v388 = vunpack.c.l.b16 %v280
        %v389 = vunpack.c.h.b16 %v280
        %v390 = vunpack.c.l.b16 %v281
        %v391 = vunpack.c.h.b16 %v281
        %v392 = vunpack.c.l.b16 %v282
        %v393 = vunpack.c.h.b16 %v282
        %v394 = vunpack.c.l.b16 %v283
        %v395 = vunpack.c.h.b16 %v283
        %v396 = vunpack.c.l.b16 %v284
        %v397 = vunpack.c.h.b16 %v284
        %v398 = vunpack.c.l.b16 %v285
        %v399 = vunpack.c.h.b16 %v285
        %v400 = vunpack.c.l.b16 %v286
        %v401 = vunpack.c.h.b16 %v286
        %v402 = vunpack.c.l.b16 %v287
        %v403 = vunpack.c.h.b16 %v287
        %v404 = vunpack.c.l.b16 %v288
        %v405 = vunpack.c.h.b16 %v288
        %v406 = vunpack.c.l.b16 %v289
        %v407 = vunpack.c.h.b16 %v289
        %v408 = vunpack.c.l.b16 %v290
        %v409 = vunpack.c.h.b16 %v290
        %v410 = vunpack.c.l.b16 %v291
        %v411 = vunpack.c.h.b16 %v291
        %v412 = vpack.c.b16 %v350, %v348
        %v413 = vpack.c.b16 %v351, %v349
        %v414 = vpack.c.b16 %v354, %v352
        %v415 = vpack.c.b16 %v355, %v353
        %v416 = vpack.c.b16 %v358, %v356
        %v417 = vpack.c.b16 %v359, %v357
        %v418 = vpack.c.b16 %v362, %v360
        %v419 = vpack.c.b16 %v363, %v361
        %v420 = vpack.c.b16 %v366, %v364
        %v421 = vpack.c.b16 %v367, %v365
        %v422 = vpack.c.b16 %v370, %v368
        %v423 = vpack.c.b16 %v371, %v369
        %v424 = vpack.c.b16 %v374, %v372
        %v425 = vpack.c.b16 %v375, %v373
        %v426 = vpack.c.b16 %v378, %v376
        %v427 = vpack.c.b16 %v379, %v377
        %v428 = vpack.c.b16 %v382, %v380
        %v429 = vpack.c.b16 %v383, %v381
        %v430 = vpack.c.b16 %v386, %v384
        %v431 = vpack.c.b16 %v387, %v385
        %v432 = vpack.c.b16 %v390, %v388
        %v433 = vpack.c.b16 %v391, %v389
        %v434 = vpack.c.b16 %v394, %v392
        %v435 = vpack.c.b16 %v395, %v393
        %v436 = vpack.c.b16 %v398, %v396
        %v437 = vpack.c.b16 %v399, %v397
        %v438 = vpack.c.b16 %v402, %v400
        %v439 = vpack.c.b16 %v403, %v401
        %v440 = vpack.c.b16 %v406, %v404
        %v441 = vpack.c.b16 %v407, %v405
        %v442 = vpack.c.b16 %v410, %v408
        %v443 = vpack.c.b16 %v411, %v409
        %v480 = vunpack.c.l.b16 %v292
        %v481 = vunpack.c.l.b16 %v293
        %v482 = vunpack.c.l.b16 %v294
        %v483 = vunpack.c.l.b16 %v295
        %v484 = vunpack.c.l.b16 %v296
        %v485 = vunpack.c.l.b16 %v297
        %v486 = vunpack.c.l.b16 %v298
        %v487 = vunpack.c.l.b16 %v299
        %v488 = vunpack.c.l.b16 %v300
        %v489 = vunpack.c.l.b16 %v301
        %v490 = vunpack.c.l.b16 %v302
        %v491 = vunpack.c.l.b16 %v303
        %v492 = vunpack.c.l.b16 %v304
        %v493 = vunpack.c.l.b16 %v305
        %v494 = vunpack.c.l.b16 %v306
        %v495 = vunpack.c.l.b16 %v307
        %v496 = vunpack.c.l.b16 %v308
        %v497 = vunpack.c.l.b16 %v309
        %v498 = vunpack.c.l.b16 %v310
        %v499 = vunpack.c.l.b16 %v311
        %v500 = vpack.c.b16 %v481, %v480
        %v501 = vpack.c.b16 %v483, %v482
        %v502 = vpack.c.b16 %v485, %v484
        %v503 = vpack.c.b16 %v487, %v486
        %v504 = vpack.c.b16 %v489, %v488
        %v505 = vpack.c.b16 %v491, %v490
        %v506 = vpack.c.b16 %v493, %v492
        %v507 = vpack.c.b16 %v495, %v494
        %v508 = vpack.c.b16 %v497, %v496
        %v509 = vpack.c.b16 %v499, %v498
        %vm520 = vcmask 261120
        %v522 = vsel %vm520, %v413, 0
        %v525 = vsel %vm520, %v415, 0
        %v528 = vsel %vm520, %v417, 0
        %v531 = vsel %vm520, %v419, 0
        %v534 = vsel %vm520, %v421, 0
        %v537 = vsel %vm520, %v423, 0
        %v540 = vsel %vm520, %v425, 0
        %v543 = vsel %vm520, %v427, 0
        %v546 = vsel %vm520, %v429, 0
        %v549 = vsel %vm520, %v431, 0
        %v552 = vsel %vm520, %v433, 0
        %v555 = vsel %vm520, %v435, 0
        %v558 = vsel %vm520, %v437, 0
        %v561 = vsel %vm520, %v439, 0
        %v564 = vsel %vm520, %v441, 0
        %v567 = vsel %vm520, %v443, 0
        %569 = vmatpush.bf16.msra.mxu0 %v507
        %570 = vmatpush.bf16.msra.mxu0 %v506
        %571 = vmatpush.bf16.msra.mxu0 %v505
        %572 = vmatpush.bf16.msra.mxu0 %v504
        %573 = vmatpush.bf16.msra.mxu0 %v503
        %574 = vmatpush.bf16.msra.mxu0 %v502
        %575 = vmatpush.bf16.msra.mxu0 %v501
        %576 = vmatpush.bf16.msra.mxu0 %v500
        %577 = vmatmul.bf16.gmra.mxu0 %v412
        %v578 = vpop.f32.mrf.mxu0
        %v579 = vadd.f32 %v314, %v578
        %v580 = vpop.f32.mrf.mxu0
        %v581 = vadd.f32 %v314, %v580
        %582 = vmatmul.bf16.gmra.mxu0 %v414
        %v583 = vpop.f32.mrf.mxu0
        %v584 = vadd.f32 %v314, %v583
        %v585 = vpop.f32.mrf.mxu0
        %v586 = vadd.f32 %v314, %v585
        %587 = vmatmul.bf16.gmra.mxu0 %v416
        %v588 = vpop.f32.mrf.mxu0
        %v589 = vadd.f32 %v314, %v588
        %v590 = vpop.f32.mrf.mxu0
        %v591 = vadd.f32 %v314, %v590
        %592 = vmatmul.bf16.gmra.mxu0 %v418
        %v593 = vpop.f32.mrf.mxu0
        %v594 = vadd.f32 %v314, %v593
        %v595 = vpop.f32.mrf.mxu0
        %v596 = vadd.f32 %v314, %v595
        %597 = vmatmul.bf16.gmra.mxu0 %v420
        %v598 = vpop.f32.mrf.mxu0
        %v599 = vadd.f32 %v314, %v598
        %v600 = vpop.f32.mrf.mxu0
        %v601 = vadd.f32 %v314, %v600
        %602 = vmatmul.bf16.gmra.mxu0 %v422
        %v603 = vpop.f32.mrf.mxu0
        %v604 = vadd.f32 %v314, %v603
        %v605 = vpop.f32.mrf.mxu0
        %v606 = vadd.f32 %v314, %v605
        %607 = vmatmul.bf16.gmra.mxu0 %v424
        %v608 = vpop.f32.mrf.mxu0
        %v609 = vadd.f32 %v314, %v608
        %v610 = vpop.f32.mrf.mxu0
        %v611 = vadd.f32 %v314, %v610
        %612 = vmatmul.bf16.gmra.mxu0 %v426
        %v613 = vpop.f32.mrf.mxu0
        %v614 = vadd.f32 %v314, %v613
        %v615 = vpop.f32.mrf.mxu0
        %v616 = vadd.f32 %v314, %v615
        %617 = vmatmul.bf16.gmra.mxu0 %v428
        %v618 = vpop.f32.mrf.mxu0
        %v619 = vadd.f32 %v314, %v618
        %v620 = vpop.f32.mrf.mxu0
        %v621 = vadd.f32 %v314, %v620
        %622 = vmatmul.bf16.gmra.mxu0 %v430
        %v623 = vpop.f32.mrf.mxu0
        %v624 = vadd.f32 %v314, %v623
        %v625 = vpop.f32.mrf.mxu0
        %v626 = vadd.f32 %v314, %v625
        %627 = vmatmul.bf16.gmra.mxu0 %v432
        %v628 = vpop.f32.mrf.mxu0
        %v629 = vadd.f32 %v314, %v628
        %v630 = vpop.f32.mrf.mxu0
        %v631 = vadd.f32 %v314, %v630
        %632 = vmatmul.bf16.gmra.mxu0 %v434
        %v633 = vpop.f32.mrf.mxu0
        %v634 = vadd.f32 %v314, %v633
        %v635 = vpop.f32.mrf.mxu0
        %v636 = vadd.f32 %v314, %v635
        %637 = vmatmul.bf16.gmra.mxu0 %v436
        %v638 = vpop.f32.mrf.mxu0
        %v639 = vadd.f32 %v314, %v638
        %v640 = vpop.f32.mrf.mxu0
        %v641 = vadd.f32 %v314, %v640
        %642 = vmatmul.bf16.gmra.mxu0 %v438
        %v643 = vpop.f32.mrf.mxu0
        %v644 = vadd.f32 %v314, %v643
        %v645 = vpop.f32.mrf.mxu0
        %v646 = vadd.f32 %v314, %v645
        %647 = vmatmul.bf16.gmra.mxu0 %v440
        %v648 = vpop.f32.mrf.mxu0
        %v649 = vadd.f32 %v314, %v648
        %v650 = vpop.f32.mrf.mxu0
        %v651 = vadd.f32 %v314, %v650
        %652 = vmatmul.bf16.gmra.mxu0 %v442
        %v653 = vpop.f32.mrf.mxu0
        %v654 = vadd.f32 %v314, %v653
        %v655 = vpop.f32.mrf.mxu0
        %v656 = vadd.f32 %v314, %v655
        %657 = vdwg.mxu0
        %658 = vmatpush.bf16.msra.mxu0 0
        %659 = vmatpush.bf16.msra.mxu0 0
        %660 = vmatpush.bf16.msra.mxu0 0
        %661 = vmatpush.bf16.msra.mxu0 0
        %662 = vmatpush.bf16.msra.mxu0 0
        %663 = vmatpush.bf16.msra.mxu0 0
        %664 = vmatpush.bf16.msra.mxu0 %v509
        %665 = vmatpush.bf16.msra.mxu0 %v508
        %666 = vmatmul.bf16.gmra.mxu0 %v522
        %v667 = vpop.f32.mrf.mxu0
        %v668 = vadd.f32 %v579, %v667
        %v669 = vpop.f32.mrf.mxu0
        %v670 = vadd.f32 %v581, %v669
        %671 = vmatmul.bf16.gmra.mxu0 %v525
        %v672 = vpop.f32.mrf.mxu0
        %v673 = vadd.f32 %v584, %v672
        %v674 = vpop.f32.mrf.mxu0
        %v675 = vadd.f32 %v586, %v674
        %676 = vmatmul.bf16.gmra.mxu0 %v528
        %v677 = vpop.f32.mrf.mxu0
        %v678 = vadd.f32 %v589, %v677
        %v679 = vpop.f32.mrf.mxu0
        %v680 = vadd.f32 %v591, %v679
        %681 = vmatmul.bf16.gmra.mxu0 %v531
        %v682 = vpop.f32.mrf.mxu0
        %v683 = vadd.f32 %v594, %v682
        %v684 = vpop.f32.mrf.mxu0
        %v685 = vadd.f32 %v596, %v684
        %686 = vmatmul.bf16.gmra.mxu0 %v534
        %v687 = vpop.f32.mrf.mxu0
        %v688 = vadd.f32 %v599, %v687
        %v689 = vpop.f32.mrf.mxu0
        %v690 = vadd.f32 %v601, %v689
        %691 = vmatmul.bf16.gmra.mxu0 %v537
        %v692 = vpop.f32.mrf.mxu0
        %v693 = vadd.f32 %v604, %v692
        %v694 = vpop.f32.mrf.mxu0
        %v695 = vadd.f32 %v606, %v694
        %696 = vmatmul.bf16.gmra.mxu0 %v540
        %v697 = vpop.f32.mrf.mxu0
        %v698 = vadd.f32 %v609, %v697
        %v699 = vpop.f32.mrf.mxu0
        %v700 = vadd.f32 %v611, %v699
        %701 = vmatmul.bf16.gmra.mxu0 %v543
        %v702 = vpop.f32.mrf.mxu0
        %v703 = vadd.f32 %v614, %v702
        %v704 = vpop.f32.mrf.mxu0
        %v705 = vadd.f32 %v616, %v704
        %706 = vmatmul.bf16.gmra.mxu0 %v546
        %v707 = vpop.f32.mrf.mxu0
        %v708 = vadd.f32 %v619, %v707
        %v709 = vpop.f32.mrf.mxu0
        %v710 = vadd.f32 %v621, %v709
        %711 = vmatmul.bf16.gmra.mxu0 %v549
        %v712 = vpop.f32.mrf.mxu0
        %v713 = vadd.f32 %v624, %v712
        %v714 = vpop.f32.mrf.mxu0
        %v715 = vadd.f32 %v626, %v714
        %716 = vmatmul.bf16.gmra.mxu0 %v552
        %v717 = vpop.f32.mrf.mxu0
        %v718 = vadd.f32 %v629, %v717
        %v719 = vpop.f32.mrf.mxu0
        %v720 = vadd.f32 %v631, %v719
        %721 = vmatmul.bf16.gmra.mxu0 %v555
        %v722 = vpop.f32.mrf.mxu0
        %v723 = vadd.f32 %v634, %v722
        %v724 = vpop.f32.mrf.mxu0
        %v725 = vadd.f32 %v636, %v724
        %726 = vmatmul.bf16.gmra.mxu0 %v558
        %v727 = vpop.f32.mrf.mxu0
        %v728 = vadd.f32 %v639, %v727
        %v729 = vpop.f32.mrf.mxu0
        %v730 = vadd.f32 %v641, %v729
        %731 = vmatmul.bf16.gmra.mxu0 %v561
        %v732 = vpop.f32.mrf.mxu0
        %v733 = vadd.f32 %v644, %v732
        %v734 = vpop.f32.mrf.mxu0
        %v735 = vadd.f32 %v646, %v734
        %736 = vmatmul.bf16.gmra.mxu0 %v564
        %v737 = vpop.f32.mrf.mxu0
        %v738 = vadd.f32 %v649, %v737
        %v739 = vpop.f32.mrf.mxu0
        %v740 = vadd.f32 %v651, %v739
        %741 = vmatmul.bf16.gmra.mxu0 %v567
        %v742 = vpop.f32.mrf.mxu0
        %v743 = vadd.f32 %v654, %v742
        %v744 = vpop.f32.mrf.mxu0
        %v745 = vadd.f32 %v656, %v744
        %746 = vdwg.mxu0
        %v747 = vmax.f32 %v668, 0.0
        %v748 = vmax.f32 %v670, 0.0
        %v749 = vmax.f32 %v673, 0.0
        %v750 = vmax.f32 %v675, 0.0
        %v751 = vmax.f32 %v678, 0.0
        %v752 = vmax.f32 %v680, 0.0
        %v753 = vmax.f32 %v683, 0.0
        %v754 = vmax.f32 %v685, 0.0
        %v755 = vmax.f32 %v688, 0.0
        %v756 = vmax.f32 %v690, 0.0
        %v757 = vmax.f32 %v693, 0.0
        %v758 = vmax.f32 %v695, 0.0
        %v759 = vmax.f32 %v698, 0.0
        %v760 = vmax.f32 %v700, 0.0
        %v761 = vmax.f32 %v703, 0.0
        %v762 = vmax.f32 %v705, 0.0
        %v763 = vmax.f32 %v708, 0.0
        %v764 = vmax.f32 %v710, 0.0
        %v765 = vmax.f32 %v713, 0.0
        %v766 = vmax.f32 %v715, 0.0
        %v767 = vmax.f32 %v718, 0.0
        %v768 = vmax.f32 %v720, 0.0
        %v769 = vmax.f32 %v723, 0.0
        %v770 = vmax.f32 %v725, 0.0
        %v771 = vmax.f32 %v728, 0.0
        %v772 = vmax.f32 %v730, 0.0
        %v773 = vmax.f32 %v733, 0.0
        %v774 = vmax.f32 %v735, 0.0
        %v775 = vmax.f32 %v738, 0.0
        %v776 = vmax.f32 %v740, 0.0
        %v777 = vmax.f32 %v743, 0.0
        %v778 = vmax.f32 %v745, 0.0
        %v779 = vpack.c.bf16 %v747, %v747
        %v780 = vpack.c.bf16 %v748, %v748
        %v781 = vpack.c.bf16 %v749, %v749
        %v782 = vpack.c.bf16 %v750, %v750
        %v783 = vpack.c.bf16 %v751, %v751
        %v784 = vpack.c.bf16 %v752, %v752
        %v785 = vpack.c.bf16 %v753, %v753
        %v786 = vpack.c.bf16 %v754, %v754
        %v787 = vpack.c.bf16 %v755, %v755
        %v788 = vpack.c.bf16 %v756, %v756
        %v789 = vpack.c.bf16 %v757, %v757
        %v790 = vpack.c.bf16 %v758, %v758
        %v791 = vpack.c.bf16 %v759, %v759
        %v792 = vpack.c.bf16 %v760, %v760
        %v793 = vpack.c.bf16 %v761, %v761
        %v794 = vpack.c.bf16 %v762, %v762
        %v795 = vpack.c.bf16 %v763, %v763
        %v796 = vpack.c.bf16 %v764, %v764
        %v797 = vpack.c.bf16 %v765, %v765
        %v798 = vpack.c.bf16 %v766, %v766
        %v799 = vpack.c.bf16 %v767, %v767
        %v800 = vpack.c.bf16 %v768, %v768
        %v801 = vpack.c.bf16 %v769, %v769
        %v802 = vpack.c.bf16 %v770, %v770
        %v803 = vpack.c.bf16 %v771, %v771
        %v804 = vpack.c.bf16 %v772, %v772
        %v805 = vpack.c.bf16 %v773, %v773
        %v806 = vpack.c.bf16 %v774, %v774
        %v807 = vpack.c.bf16 %v775, %v775
        %v808 = vpack.c.bf16 %v776, %v776
        %v809 = vpack.c.bf16 %v777, %v777
        %v810 = vpack.c.bf16 %v778, %v778
        %811 = vst [vmem:[%s257] sm:$0xf] %v779
        %812 = vst [vmem:[%s257 + $0x4] sm:$0xf] %v780
        %813 = vst [vmem:[%s257 + $0x8] sm:$0xf] %v781
        %814 = vst [vmem:[%s257 + $0xc] sm:$0xf] %v782
        %815 = vst [vmem:[%s257 + $0x10] sm:$0xf] %v783
        %816 = vst [vmem:[%s257 + $0x14] sm:$0xf] %v784
        %817 = vst [vmem:[%s257 + $0x18] sm:$0xf] %v785
        %818 = vst [vmem:[%s257 + $0x1c] sm:$0xf] %v786
        %819 = vst [vmem:[%s257 + $0x20] sm:$0xf] %v787
        %820 = vst [vmem:[%s257 + $0x24] sm:$0xf] %v788
        %821 = vst [vmem:[%s257 + $0x28] sm:$0xf] %v789
        %822 = vst [vmem:[%s257 + $0x2c] sm:$0xf] %v790
        %823 = vst [vmem:[%s257 + $0x30] sm:$0xf] %v791
        %824 = vst [vmem:[%s257 + $0x34] sm:$0xf] %v792
        %825 = vst [vmem:[%s257 + $0x38] sm:$0xf] %v793
        %826 = vst [vmem:[%s257 + $0x3c] sm:$0xf] %v794
        %827 = vst [vmem:[%s257 + $0x40] sm:$0xf] %v795
        %828 = vst [vmem:[%s257 + $0x44] sm:$0xf] %v796
        %829 = vst [vmem:[%s257 + $0x48] sm:$0xf] %v797
        %830 = vst [vmem:[%s257 + $0x4c] sm:$0xf] %v798
        %831 = vst [vmem:[%s257 + $0x50] sm:$0xf] %v799
        %832 = vst [vmem:[%s257 + $0x54] sm:$0xf] %v800
        %833 = vst [vmem:[%s257 + $0x58] sm:$0xf] %v801
        %834 = vst [vmem:[%s257 + $0x5c] sm:$0xf] %v802
        %835 = vst [vmem:[%s257 + $0x60] sm:$0xf] %v803
        %836 = vst [vmem:[%s257 + $0x64] sm:$0xf] %v804
        %837 = vst [vmem:[%s257 + $0x68] sm:$0xf] %v805
        %838 = vst [vmem:[%s257 + $0x6c] sm:$0xf] %v806
        %839 = vst [vmem:[%s257 + $0x70] sm:$0xf] %v807
        %840 = vst [vmem:[%s257 + $0x74] sm:$0xf] %v808
        %841 = vst [vmem:[%s257 + $0x78] sm:$0xf] %v809
        %842 = vst [vmem:[%s257 + $0x7c] sm:$0xf] %v810
        %s843 = smul.u32 32, %s21
        %p844 = scmp.lt.s32.totalorder %s20, 0
        %s845 = scalar_select %p844, %s20, 0
        %p846 = scmp.lt.s32.totalorder %s843, 63
        %s847 = scalar_select %p846, %s843, 63
        %s848 = smul.addr %s845, 64
        %s849 = sadd.s32 %s847, %s848
        %s850 = smul.addr %s849, 4
        %s851 = scalar_lea.vmem %s3, %s850
        // Predicated region
        $region41: #{_lambda_.4} parent=31 // pred_check
          %p852 = pneg %p128
        $region42: #{_lambda_.4} parent=31 // pred_check_branch
          %854 = sbr.rel (%p852) target = $region44
        $region43: #{_lambda_.4} parent=31 // pred_region
          %s855 = smul.u32 32, %s21
        $region44: #{_lambda_.4} parent=31 // pred_fallthru
          _
      $region32: #{_lambda_.4} parent=5 // pred_fallthru
        _
      %p856 = scmp.le.s32.totalorder 2, %s11
      // Predicated region
      $region45: #{_lambda_.4} parent=5 // pred_check
        %p857 = pneg %p856
      $region46: #{_lambda_.4} parent=5 // pred_check_branch
        %859 = sbr.rel (%p857) target = $region48
      $region47: #{_lambda_.4} parent=5 // pred_region
        %s860 = ssub.s32 %s11, 2
        // Predicated region
        $region49: #{_lambda_.4} parent=47 // pred_check
          %p861 = pneg %p134
        $region50: #{_lambda_.4} parent=47 // pred_check_branch
          %863 = sbr.rel (%p861) target = $region52
        $region51: #{_lambda_.4} parent=47 // pred_region
          %s864 = smul.u32 32, %s23
          %p865 = scmp.lt.s32.totalorder %s22, 0
          %s866 = scalar_select %p865, %s22, 0
          %p867 = scmp.lt.s32.totalorder %s864, 63
          %s868 = scalar_select %p867, %s864, 63
          %s869 = smul.addr %s866, 64
          %s870 = sadd.s32 %s868, %s869
          %s871 = smul.addr %s870, 4
          %s872 = scalar_lea.vmem %s3, %s871
        $region52: #{_lambda_.4} parent=47 // pred_fallthru
          _
      $region48: #{_lambda_.4} parent=5 // pred_fallthru
        _
    $region6: #{_lambda_.4} parent=1 // loop_footer
      %s15 = sadd.s32 1, %s11
    $region7: #{_lambda_.4} parent=1 // loop_footer_branch
      %10 = sbr.rel target = $region3
    $region8: #{_lambda_.4} parent=1 // loop_exit
      _
    %873 = vsyncpa [#allocation3], 1
    %s874 = scalar_lea.sflag [#allocation3], 1
    %875 = vsyncpa %s874, 1
    %876 = vsyncpa [#allocation5], 1

// kernel: _lambda_.5
$region0: #{_lambda_.5}
  #allocation0 [shape = 'u32[]', space=smem, size = 0x4, offset = 0x4, fixed_abs, tag = 'smem constant byte address 0x4 - core index']
  #allocation1 [shape = 'u32[72,128]{1,0:T(1,128)}', space=vmem, size = 0x9000, scoped, tag = 'internal scratch']
  %s0 = inlined_call_operand.vmem [shape: bf16[1,512,448], index: 0, kind: input, shape index: {}]
  %s1 = inlined_call_operand.vmem [shape: bf16[1,448,64], index: 1, kind: input, shape index: {}]
  %s2 = inlined_call_operand.vmem [shape: f32[1,1,64], index: 2, kind: input, shape index: {}]
  %s3 = inlined_call_operand.vmem [shape: bf16[1,512,64], index: 3, kind: output, shape index: {}]
  %s4 = sld [smem:[#allocation0]]
  $region45: #{_lambda_.5} parent=0
    _
  %s6 = ssub.s32 1, %s4
  %s7 = scalar_select 0, %s6, %s4
  loop: start=0, step=1, limit=4
  $region2: #{_lambda_.5} parent=0 // loop_pre_header
    _
  $region3: #{_lambda_.5} parent=0 // loop_header
    %s9 = sphi 0, %s13
    %p10 = scmp.ge.s32.totalorder %s9, 4
    %s16 = sphi 0, %s28
    %s17 = sphi 0, %s24
    %s18 = sphi 0, %s16
    %s19 = sphi 0, %s17
    %s20 = sphi 0, %s18
    %s21 = sphi 0, %s19
    %s33 = sphi 0, %s35
    %s36 = sphi 0, %s33
    %s37 = sphi 0, %s36
    %s53 = sphi 0, %s37
    %s59 = sphi 0, %s61
    %s62 = sphi 0, %s59
    %s63 = sphi 0, %s62
    %s79 = sphi 0, %s63
    %s85 = sphi 0, %s87
    %s88 = sphi 0, %s85
    %s89 = sphi 0, %s88
    %s105 = sphi 0, %s89
    %s113 = sphi 0, %s115
    %s116 = sphi 0, %s113
    %s117 = sphi 0, %s116
    %s133 = sphi 0, %s117
  $region4: #{_lambda_.5} parent=0 // loop_header_branch
    %12 = sbr.rel (%p10) target = $region8
  $region5: #{_lambda_.5} parent=0 // loop_body
    %s14 = ssub.s32 %s9, 1
    %s15 = ssub.s32 %s9, 2
    %s22 = sadd.s32 1, %s17
    %p23 = scmp.ge.s32.totalorder %s22, 2
    %s24 = scalar_select %p23, 0, %s22
    %s25 = sadd.s32 1, %s16
    %s26 = scalar_select %p23, %s25, %s16
    %p27 = scmp.ge.s32.totalorder %s26, 1
    %s28 = scalar_select %p27, 0, %s26
    %s29 = ssub.s32 %s16, %s28
    %s30 = ssub.s32 %s17, %s24
    %s31 = sor.u32 %s29, %s30
    %p32 = scmp.eq.s32.totalorder %s31, 0
    %s34 = sadd.s32 %s33, 1
    %s35 = scalar_select %p32, %s33, %s34
    %p38 = pneg %p32
    %p39 = scmp.eq.s32.totalorder %s9, 1
    %p40 = por %p38, %p39
    %p41 = scmp.ne.s32.totalorder %s33, %s36
    %p42 = scmp.eq.s32.totalorder %s9, 0
    %p43 = por %p41, %p42
    %p44 = scmp.ne.s32.totalorder %s33, %s36
    %p45 = scmp.eq.s32.totalorder %s14, 1
    %p46 = por %p44, %p45
    %p47 = scmp.ne.s32.totalorder %s36, %s37
    %p48 = scmp.eq.s32.totalorder %s14, 0
    %p49 = por %p47, %p48
    %p50 = scmp.ne.s32.totalorder %s36, %s37
    %p51 = scmp.eq.s32.totalorder %s15, 1
    %p52 = por %p50, %p51
    %p54 = scmp.ne.s32.totalorder %s37, %s53
    %p55 = scmp.eq.s32.totalorder %s15, 0
    %p56 = por %p54, %p55
    %s57 = ssub.s32 %s16, %s28
    %p58 = scmp.eq.s32.totalorder %s57, 0
    %s60 = sadd.s32 %s59, 1
    %s61 = scalar_select %p58, %s59, %s60
    %p64 = pneg %p58
    %p65 = scmp.eq.s32.totalorder %s9, 1
    %p66 = por %p64, %p65
    %p67 = scmp.ne.s32.totalorder %s59, %s62
    %p68 = scmp.eq.s32.totalorder %s9, 0
    %p69 = por %p67, %p68
    %p70 = scmp.ne.s32.totalorder %s59, %s62
    %p71 = scmp.eq.s32.totalorder %s14, 1
    %p72 = por %p70, %p71
    %p73 = scmp.ne.s32.totalorder %s62, %s63
    %p74 = scmp.eq.s32.totalorder %s14, 0
    %p75 = por %p73, %p74
    %p76 = scmp.ne.s32.totalorder %s62, %s63
    %p77 = scmp.eq.s32.totalorder %s15, 1
    %p78 = por %p76, %p77
    %p80 = scmp.ne.s32.totalorder %s63, %s79
    %p81 = scmp.eq.s32.totalorder %s15, 0
    %p82 = por %p80, %p81
    %s83 = ssub.s32 %s16, %s28
    %p84 = scmp.eq.s32.totalorder %s83, 0
    %s86 = sadd.s32 %s85, 1
    %s87 = scalar_select %p84, %s85, %s86
    %p90 = pneg %p84
    %p91 = scmp.eq.s32.totalorder %s9, 1
    %p92 = por %p90, %p91
    %p93 = scmp.ne.s32.totalorder %s85, %s88
    %p94 = scmp.eq.s32.totalorder %s9, 0
    %p95 = por %p93, %p94
    %p96 = scmp.ne.s32.totalorder %s85, %s88
    %p97 = scmp.eq.s32.totalorder %s14, 1
    %p98 = por %p96, %p97
    %p99 = scmp.ne.s32.totalorder %s88, %s89
    %p100 = scmp.eq.s32.totalorder %s14, 0
    %p101 = por %p99, %p100
    %p102 = scmp.ne.s32.totalorder %s88, %s89
    %p103 = scmp.eq.s32.totalorder %s15, 1
    %p104 = por %p102, %p103
    %p106 = scmp.ne.s32.totalorder %s89, %s105
    %p107 = scmp.eq.s32.totalorder %s15, 0
    %p108 = por %p106, %p107
    %s109 = ssub.s32 %s16, %s28
    %s110 = ssub.s32 %s17, %s24
    %s111 = sor.u32 %s109, %s110
    %p112 = scmp.eq.s32.totalorder %s111, 0
    %s114 = sadd.s32 %s113, 1
    %s115 = scalar_select %p112, %s113, %s114
    %p118 = pneg %p112
    %p119 = scmp.eq.s32.totalorder %s9, 1
    %p120 = por %p118, %p119
    %p121 = scmp.ne.s32.totalorder %s113, %s116
    %p122 = scmp.eq.s32.totalorder %s9, 0
    %p123 = por %p121, %p122
    %p124 = scmp.ne.s32.totalorder %s113, %s116
    %p125 = scmp.eq.s32.totalorder %s14, 1
    %p126 = por %p124, %p125
    %p127 = scmp.ne.s32.totalorder %s116, %s117
    %p128 = scmp.eq.s32.totalorder %s14, 0
    %p129 = por %p127, %p128
    %p130 = scmp.ne.s32.totalorder %s116, %s117
    %p131 = scmp.eq.s32.totalorder %s15, 1
    %p132 = por %p130, %p131
    %p134 = scmp.ne.s32.totalorder %s117, %s133
    %p135 = scmp.eq.s32.totalorder %s15, 0
    %p136 = por %p134, %p135
    %p137 = scmp.le.s32.totalorder 1, %s9
    %p138 = scmp.lt.s32.totalorder %s9, 3
    %p139 = pnand %p137, %p138
    %p140 = pneg %p139
    // Predicated region
    $region9: #{_lambda_.5} parent=5 // pred_check
      _
    $region10: #{_lambda_.5} parent=5 // pred_check_branch
      %142 = sbr.rel (%p139) target = $region12
    $region11: #{_lambda_.5} parent=5 // pred_region
      %s143 = ssub.s32 %s9, 1
      // Predicated region
      $region13: #{_lambda_.5} parent=11 // pred_check
        %p144 = pneg %p75
      $region14: #{_lambda_.5} parent=11 // pred_check_branch
        %146 = sbr.rel (%p144) target = $region16
      $region15: #{_lambda_.5} parent=11 // pred_region
        %p147 = scmp.lt.s32.totalorder %s18, 0
        %s148 = scalar_select %p147, %s18, 0
        %s149 = smul.addr %s148, 56
        %s150 = smul.addr %s149, 4
        %s151 = scalar_lea.vmem %s1, %s150
      $region16: #{_lambda_.5} parent=11 // pred_fallthru
        _
      // Predicated region
      $region17: #{_lambda_.5} parent=11 // pred_check
        %p152 = pneg %p101
      $region18: #{_lambda_.5} parent=11 // pred_check_branch
        %154 = sbr.rel (%p152) target = $region20
      $region19: #{_lambda_.5} parent=11 // pred_region
        %p155 = scmp.lt.s32.totalorder %s18, 0
        %s156 = scalar_select %p155, %s18, 0
        %s157 = scalar_lea.vmem %s2, %s156
      $region20: #{_lambda_.5} parent=11 // pred_fallthru
        _
    $region12: #{_lambda_.5} parent=5 // pred_fallthru
      _
    %p158 = scmp.lt.s32.totalorder %s9, 2
    // Predicated region
    $region21: #{_lambda_.5} parent=5 // pred_check
      %p159 = pneg %p158
    $region22: #{_lambda_.5} parent=5 // pred_check_branch
      %161 = sbr.rel (%p159) target = $region24
    $region23: #{_lambda_.5} parent=5 // pred_region
      // Predicated region
      $region25: #{_lambda_.5} parent=23 // pred_check
        %p162 = pneg %p43
      $region26: #{_lambda_.5} parent=23 // pred_check_branch
        %164 = sbr.rel (%p162) target = $region28
      $region27: #{_lambda_.5} parent=23 // pred_region
        %s165 = smul.u32 32, %s17
        %p166 = scmp.lt.s32.totalorder %s16, 0
        %s167 = scalar_select %p166, %s16, 0
        %p168 = scmp.lt.s32.totalorder %s165, 63
        %s169 = scalar_select %p168, %s165, 63
        %s170 = smul.addr %s169, 4
        %s171 = smul.addr %s167, 256
        %s172 = sadd.s32 %s170, %s171
        %s173 = smul.addr %s172, 4
        %s174 = scalar_lea.vmem %s0, %s173
        %s175 = smul.u32 32, %s17
      $region28: #{_lambda_.5} parent=23 // pred_fallthru
        _
    $region24: #{_lambda_.5} parent=5 // pred_fallthru
      _
    %p176 = scmp.le.s32.totalorder 1, %s9
    %p177 = scmp.lt.s32.totalorder %s9, 3
    %p178 = pnand %p176, %p177
    %p179 = pneg %p178
    // Predicated region
    $region29: #{_lambda_.5} parent=5 // pred_check
      _
    $region30: #{_lambda_.5} parent=5 // pred_check_branch
      %181 = sbr.rel (%p178) target = $region32
    $region31: #{_lambda_.5} parent=5 // pred_region
      %s182 = ssub.s32 %s9, 1
      %s183 = smul.u32 32, %s19
      %p184 = scmp.lt.s32.totalorder %s18, 0
      %s185 = scalar_select %p184, %s18, 0
      %p186 = scmp.lt.s32.totalorder %s183, 63
      %s187 = scalar_select %p186, %s183, 63
      %s188 = smul.addr %s187, 4
      %s189 = smul.addr %s185, 256
      %s190 = sadd.s32 %s188, %s189
      %s191 = smul.addr %s190, 4
      %s192 = scalar_lea.vmem %s0, %s191
      %p193 = pneg %p49
      %p194 = pneg %p46
      %p195 = scmp.lt.s32.totalorder %s18, 0
      %s196 = scalar_select %p195, %s18, 0
      %s197 = smul.addr %s196, 56
      %s198 = smul.addr %s197, 4
      %s199 = scalar_lea.vmem %s1, %s198
      %p200 = pneg %p75
      %p201 = pneg %p72
      %p202 = scmp.lt.s32.totalorder %s18, 0
      %s203 = scalar_select %p202, %s18, 0
      %s204 = scalar_lea.vmem %s2, %s203
      %p205 = pneg %p101
      %p206 = pneg %p98
      %p207 = pneg %p129
      %p208 = pneg %p126
      %s209 = smul.u32 32, %s19
      %p210 = scmp.lt.s32.totalorder %s18, 0
      %s211 = scalar_select %p210, %s18, 0
      %p212 = scmp.lt.s32.totalorder %s209, 63
      %s213 = scalar_select %p212, %s209, 63
      %s214 = smul.addr %s211, 64
      %s215 = sadd.s32 %s213, %s214
      %s216 = smul.addr %s215, 4
      %s217 = scalar_lea.vmem %s3, %s216
      %s218 = smul.u32 32, %s19
      %p219 = scmp.lt.s32.totalorder %s18, 0
      %s220 = scalar_select %p219, %s18, 0
      %p221 = scmp.lt.s32.totalorder %s218, 63
      %s222 = scalar_select %p221, %s218, 63
      %s223 = smul.addr %s222, 4
      %s224 = smul.addr %s220, 256
      %s225 = sadd.s32 %s223, %s224
      %s226 = smul.addr %s225, 4
      %s227 = scalar_lea.vmem %s0, %s226
      %s228 = smul.u32 32, %s19
      %p229 = scmp.lt.s32.totalorder %s18, 0
      %s230 = scalar_select %p229, %s18, 0
      %s231 = smul.addr %s230, 56
      %s232 = smul.addr %s231, 4
      %s233 = scalar_lea.vmem %s1, %s232
      %p234 = scmp.lt.s32.totalorder %s18, 0
      %s235 = scalar_select %p234, %s18, 0
      %s236 = scalar_lea.vmem %s2, %s235
      %s237 = smul.u32 32, %s19
      %p238 = scmp.lt.s32.totalorder %s18, 0
      %s239 = scalar_select %p238, %s18, 0
      %p240 = scmp.lt.s32.totalorder %s237, 63
      %s241 = scalar_select %p240, %s237, 63
      %s242 = smul.addr %s239, 64
      %s243 = sadd.s32 %s241, %s242
      %s244 = smul.addr %s243, 4
      %s245 = scalar_lea.vmem %s3, %s244
      %s246 = smul.u32 32, %s19
      %v248 = vld [vmem:[%s227] sm:$0xff]
      %v249 = vld [vmem:[%s227 + $0x8] sm:$0xff]
      %v250 = vld [vmem:[%s227 + $0x10] sm:$0xff]
      %v251 = vld [vmem:[%s227 + $0x18] sm:$0xff]
      %v252 = vld [vmem:[%s227 + $0x20] sm:$0xff]
      %v253 = vld [vmem:[%s227 + $0x28] sm:$0xff]
      %v254 = vld [vmem:[%s227 + $0x30] sm:$0xff]
      %v255 = vld [vmem:[%s227 + $0x38] sm:$0xff]
      %v256 = vld [vmem:[%s227 + $0x40] sm:$0xff]
      %v257 = vld [vmem:[%s227 + $0x48] sm:$0xff]
      %v258 = vld [vmem:[%s227 + $0x50] sm:$0xff]
      %v259 = vld [vmem:[%s227 + $0x58] sm:$0xff]
      %v260 = vld [vmem:[%s227 + $0x60] sm:$0xff]
      %v261 = vld [vmem:[%s227 + $0x68] sm:$0xff]
      %v262 = vld [vmem:[%s227 + $0x70] sm:$0xff]
      %v263 = vld [vmem:[%s227 + $0x78] sm:$0xff]
      %v264 = vld [vmem:[%s227 + $0x80] sm:$0xff]
      %v265 = vld [vmem:[%s227 + $0x88] sm:$0xff]
      %v266 = vld [vmem:[%s227 + $0x90] sm:$0xff]
      %v267 = vld [vmem:[%s227 + $0x98] sm:$0xff]
      %v268 = vld [vmem:[%s227 + $0xa0] sm:$0xff]
      %v269 = vld [vmem:[%s227 + $0xa8] sm:$0xff]
      %v270 = vld [vmem:[%s227 + $0xb0] sm:$0xff]
      %v271 = vld [vmem:[%s227 + $0xb8] sm:$0xff]
      %v272 = vld [vmem:[%s227 + $0xc0] sm:$0xff]
      %v273 = vld [vmem:[%s227 + $0xc8] sm:$0xff]
      %v274 = vld [vmem:[%s227 + $0xd0] sm:$0xff]
      %v275 = vld [vmem:[%s227 + $0xd8] sm:$0xff]
      %v276 = vld [vmem:[%s227 + $0xe0] sm:$0xff]
      %v277 = vld [vmem:[%s227 + $0xe8] sm:$0xff]
      %v278 = vld [vmem:[%s227 + $0xf0] sm:$0xff]
      %v279 = vld [vmem:[%s227 + $0xf8] sm:$0xff]
      %v280 = vld [vmem:[%s227 + $0x100] sm:$0xff]
      %v281 = vld [vmem:[%s227 + $0x108] sm:$0xff]
      %v282 = vld [vmem:[%s227 + $0x110] sm:$0xff]
      %v283 = vld [vmem:[%s227 + $0x118] sm:$0xff]
      %v284 = vld [vmem:[%s227 + $0x120] sm:$0xff]
      %v285 = vld [vmem:[%s227 + $0x128] sm:$0xff]
      %v286 = vld [vmem:[%s227 + $0x130] sm:$0xff]
      %v287 = vld [vmem:[%s227 + $0x138] sm:$0xff]
      %v288 = vld [vmem:[%s227 + $0x140] sm:$0xff]
      %v289 = vld [vmem:[%s227 + $0x148] sm:$0xff]
      %v290 = vld [vmem:[%s227 + $0x150] sm:$0xff]
      %v291 = vld [vmem:[%s227 + $0x158] sm:$0xff]
      %v292 = vld [vmem:[%s227 + $0x160] sm:$0xff]
      %v293 = vld [vmem:[%s227 + $0x168] sm:$0xff]
      %v294 = vld [vmem:[%s227 + $0x170] sm:$0xff]
      %v295 = vld [vmem:[%s227 + $0x178] sm:$0xff]
      %v296 = vld [vmem:[%s227 + $0x180] sm:$0xff]
      %v297 = vld [vmem:[%s227 + $0x188] sm:$0xff]
      %v298 = vld [vmem:[%s227 + $0x190] sm:$0xff]
      %v299 = vld [vmem:[%s227 + $0x198] sm:$0xff]
      %v300 = vld [vmem:[%s227 + $0x1a0] sm:$0xff]
      %v301 = vld [vmem:[%s227 + $0x1a8] sm:$0xff]
      %v302 = vld [vmem:[%s227 + $0x1b0] sm:$0xff]
      %v303 = vld [vmem:[%s227 + $0x1b8] sm:$0xff]
      %v304 = vld [vmem:[%s227 + $0x1c0] sm:$0xff]
      %v305 = vld [vmem:[%s227 + $0x1c8] sm:$0xff]
      %v306 = vld [vmem:[%s227 + $0x1d0] sm:$0xff]
      %v307 = vld [vmem:[%s227 + $0x1d8] sm:$0xff]
      %v308 = vld [vmem:[%s227 + $0x1e0] sm:$0xff]
      %v309 = vld [vmem:[%s227 + $0x1e8] sm:$0xff]
      %v310 = vld [vmem:[%s227 + $0x1f0] sm:$0xff]
      %v311 = vld [vmem:[%s227 + $0x1f8] sm:$0xff]
      %v312 = vld [vmem:[%s233] sm:$0xf]
      %v313 = vld [vmem:[%s233 + $0x4] sm:$0xf]
      %v314 = vld [vmem:[%s233 + $0x8] sm:$0xf]
      %v315 = vld [vmem:[%s233 + $0xc] sm:$0xf]
      %v316 = vld [vmem:[%s233 + $0x10] sm:$0xf]
      %v317 = vld [vmem:[%s233 + $0x14] sm:$0xf]
      %v318 = vld [vmem:[%s233 + $0x18] sm:$0xf]
      %v319 = vld [vmem:[%s233 + $0x1c] sm:$0xf]
      %v320 = vld [vmem:[%s233 + $0x20] sm:$0xf]
      %v321 = vld [vmem:[%s233 + $0x24] sm:$0xf]
      %v322 = vld [vmem:[%s233 + $0x28] sm:$0xf]
      %v323 = vld [vmem:[%s233 + $0x2c] sm:$0xf]
      %v324 = vld [vmem:[%s233 + $0x30] sm:$0xf]
      %v325 = vld [vmem:[%s233 + $0x34] sm:$0xf]
      %v326 = vld [vmem:[%s233 + $0x38] sm:$0xf]
      %v327 = vld [vmem:[%s233 + $0x3c] sm:$0xf]
      %v328 = vld [vmem:[%s233 + $0x40] sm:$0xf]
      %v329 = vld [vmem:[%s233 + $0x44] sm:$0xf]
      %v330 = vld [vmem:[%s233 + $0x48] sm:$0xf]
      %v331 = vld [vmem:[%s233 + $0x4c] sm:$0xf]
      %v332 = vld [vmem:[%s233 + $0x50] sm:$0xf]
      %v333 = vld [vmem:[%s233 + $0x54] sm:$0xf]
      %v334 = vld [vmem:[%s233 + $0x58] sm:$0xf]
      %v335 = vld [vmem:[%s233 + $0x5c] sm:$0xf]
      %v336 = vld [vmem:[%s233 + $0x60] sm:$0xf]
      %v337 = vld [vmem:[%s233 + $0x64] sm:$0xf]
      %v338 = vld [vmem:[%s233 + $0x68] sm:$0xf]
      %v339 = vld [vmem:[%s233 + $0x6c] sm:$0xf]
      %v340 = vld [vmem:[%s233 + $0x70] sm:$0xf]
      %v341 = vld [vmem:[%s233 + $0x74] sm:$0xf]
      %v342 = vld [vmem:[%s233 + $0x78] sm:$0xf]
      %v343 = vld [vmem:[%s233 + $0x7c] sm:$0xf]
      %v344 = vld [vmem:[%s233 + $0x80] sm:$0xf]
      %v345 = vld [vmem:[%s233 + $0x84] sm:$0xf]
      %v346 = vld [vmem:[%s233 + $0x88] sm:$0xf]
      %v347 = vld [vmem:[%s233 + $0x8c] sm:$0xf]
      %v348 = vld [vmem:[%s233 + $0x90] sm:$0xf]
      %v349 = vld [vmem:[%s233 + $0x94] sm:$0xf]
      %v350 = vld [vmem:[%s233 + $0x98] sm:$0xf]
      %v351 = vld [vmem:[%s233 + $0x9c] sm:$0xf]
      %v352 = vld [vmem:[%s233 + $0xa0] sm:$0xf]
      %v353 = vld [vmem:[%s233 + $0xa4] sm:$0xf]
      %v354 = vld [vmem:[%s233 + $0xa8] sm:$0xf]
      %v355 = vld [vmem:[%s233 + $0xac] sm:$0xf]
      %v356 = vld [vmem:[%s233 + $0xb0] sm:$0xf]
      %v357 = vld [vmem:[%s233 + $0xb4] sm:$0xf]
      %v358 = vld [vmem:[%s233 + $0xb8] sm:$0xf]
      %v359 = vld [vmem:[%s233 + $0xbc] sm:$0xf]
      %v360 = vld [vmem:[%s233 + $0xc0] sm:$0xf]
      %v361 = vld [vmem:[%s233 + $0xc4] sm:$0xf]
      %v362 = vld [vmem:[%s233 + $0xc8] sm:$0xf]
      %v363 = vld [vmem:[%s233 + $0xcc] sm:$0xf]
      %v364 = vld [vmem:[%s233 + $0xd0] sm:$0xf]
      %v365 = vld [vmem:[%s233 + $0xd4] sm:$0xf]
      %v366 = vld [vmem:[%s233 + $0xd8] sm:$0xf]
      %v367 = vld [vmem:[%s233 + $0xdc] sm:$0xf]
      %v368 = vld [vmem:[%s236] sm:$0x1]
      %v370 = vperm.slane %v368, 0
      %v436 = vunpack.c.l.b16 %v248
      %v437 = vunpack.c.h.b16 %v248
      %v438 = vunpack.c.l.b16 %v249
      %v439 = vunpack.c.h.b16 %v249
      %v440 = vunpack.c.l.b16 %v250
      %v441 = vunpack.c.h.b16 %v250
      %v442 = vunpack.c.l.b16 %v251
      %v443 = vunpack.c.h.b16 %v251
      %v444 = vunpack.c.l.b16 %v252
      %v445 = vunpack.c.h.b16 %v252
      %v446 = vunpack.c.l.b16 %v253
      %v447 = vunpack.c.h.b16 %v253
      %v448 = vunpack.c.l.b16 %v254
      %v449 = vunpack.c.h.b16 %v254
      %v450 = vunpack.c.l.b16 %v255
      %v451 = vunpack.c.h.b16 %v255
      %v452 = vunpack.c.l.b16 %v256
      %v453 = vunpack.c.h.b16 %v256
      %v454 = vunpack.c.l.b16 %v257
      %v455 = vunpack.c.h.b16 %v257
      %v456 = vunpack.c.l.b16 %v258
      %v457 = vunpack.c.h.b16 %v258
      %v458 = vunpack.c.l.b16 %v259
      %v459 = vunpack.c.h.b16 %v259
      %v460 = vunpack.c.l.b16 %v260
      %v461 = vunpack.c.h.b16 %v260
      %v462 = vunpack.c.l.b16 %v261
      %v463 = vunpack.c.h.b16 %v261
      %v464 = vunpack.c.l.b16 %v262
      %v465 = vunpack.c.h.b16 %v262
      %v466 = vunpack.c.l.b16 %v263
      %v467 = vunpack.c.h.b16 %v263
      %v468 = vunpack.c.l.b16 %v264
      %v469 = vunpack.c.h.b16 %v264
      %v470 = vunpack.c.l.b16 %v265
      %v471 = vunpack.c.h.b16 %v265
      %v472 = vunpack.c.l.b16 %v266
      %v473 = vunpack.c.h.b16 %v266
      %v474 = vunpack.c.l.b16 %v267
      %v475 = vunpack.c.h.b16 %v267
      %v476 = vunpack.c.l.b16 %v268
      %v477 = vunpack.c.h.b16 %v268
      %v478 = vunpack.c.l.b16 %v269
      %v479 = vunpack.c.h.b16 %v269
      %v480 = vunpack.c.l.b16 %v270
      %v481 = vunpack.c.h.b16 %v270
      %v482 = vunpack.c.l.b16 %v271
      %v483 = vunpack.c.h.b16 %v271
      %v484 = vunpack.c.l.b16 %v272
      %v485 = vunpack.c.h.b16 %v272
      %v486 = vunpack.c.l.b16 %v273
      %v487 = vunpack.c.h.b16 %v273
      %v488 = vunpack.c.l.b16 %v274
      %v489 = vunpack.c.h.b16 %v274
      %v490 = vunpack.c.l.b16 %v275
      %v491 = vunpack.c.h.b16 %v275
      %v492 = vunpack.c.l.b16 %v276
      %v493 = vunpack.c.h.b16 %v276
      %v494 = vunpack.c.l.b16 %v277
      %v495 = vunpack.c.h.b16 %v277
      %v496 = vunpack.c.l.b16 %v278
      %v497 = vunpack.c.h.b16 %v278
      %v498 = vunpack.c.l.b16 %v279
      %v499 = vunpack.c.h.b16 %v279
      %v500 = vunpack.c.l.b16 %v280
      %v501 = vunpack.c.h.b16 %v280
      %v502 = vunpack.c.l.b16 %v281
      %v503 = vunpack.c.h.b16 %v281
      %v504 = vunpack.c.l.b16 %v282
      %v505 = vunpack.c.h.b16 %v282
      %v506 = vunpack.c.l.b16 %v283
      %v507 = vunpack.c.h.b16 %v283
      %v508 = vunpack.c.l.b16 %v284
      %v509 = vunpack.c.h.b16 %v284
      %v510 = vunpack.c.l.b16 %v285
      %v511 = vunpack.c.h.b16 %v285
      %v512 = vunpack.c.l.b16 %v286
      %v513 = vunpack.c.h.b16 %v286
      %v514 = vunpack.c.l.b16 %v287
      %v515 = vunpack.c.h.b16 %v287
      %v516 = vunpack.c.l.b16 %v288
      %v517 = vunpack.c.h.b16 %v288
      %v518 = vunpack.c.l.b16 %v289
      %v519 = vunpack.c.h.b16 %v289
      %v520 = vunpack.c.l.b16 %v290
      %v521 = vunpack.c.h.b16 %v290
      %v522 = vunpack.c.l.b16 %v291
      %v523 = vunpack.c.h.b16 %v291
      %v524 = vunpack.c.l.b16 %v292
      %v525 = vunpack.c.h.b16 %v292
      %v526 = vunpack.c.l.b16 %v293
      %v527 = vunpack.c.h.b16 %v293
      %v528 = vunpack.c.l.b16 %v294
      %v529 = vunpack.c.h.b16 %v294
      %v530 = vunpack.c.l.b16 %v295
      %v531 = vunpack.c.h.b16 %v295
      %v532 = vunpack.c.l.b16 %v296
      %v533 = vunpack.c.h.b16 %v296
      %v534 = vunpack.c.l.b16 %v297
      %v535 = vunpack.c.h.b16 %v297
      %v536 = vunpack.c.l.b16 %v298
      %v537 = vunpack.c.h.b16 %v298
      %v538 = vunpack.c.l.b16 %v299
      %v539 = vunpack.c.h.b16 %v299
      %v540 = vunpack.c.l.b16 %v300
      %v541 = vunpack.c.h.b16 %v300
      %v542 = vunpack.c.l.b16 %v301
      %v543 = vunpack.c.h.b16 %v301
      %v544 = vunpack.c.l.b16 %v302
      %v545 = vunpack.c.h.b16 %v302
      %v546 = vunpack.c.l.b16 %v303
      %v547 = vunpack.c.h.b16 %v303
      %v548 = vunpack.c.l.b16 %v304
      %v549 = vunpack.c.h.b16 %v304
      %v550 = vunpack.c.l.b16 %v305
      %v551 = vunpack.c.h.b16 %v305
      %v552 = vunpack.c.l.b16 %v306
      %v553 = vunpack.c.h.b16 %v306
      %v554 = vunpack.c.l.b16 %v307
      %v555 = vunpack.c.h.b16 %v307
      %v556 = vunpack.c.l.b16 %v308
      %v557 = vunpack.c.h.b16 %v308
      %v558 = vunpack.c.l.b16 %v309
      %v559 = vunpack.c.h.b16 %v309
      %v560 = vunpack.c.l.b16 %v310
      %v561 = vunpack.c.h.b16 %v310
      %v562 = vunpack.c.l.b16 %v311
      %v563 = vunpack.c.h.b16 %v311
      %v564 = vpack.c.b16 %v440, %v436
      %v565 = vpack.c.b16 %v441, %v437
      %v566 = vpack.c.b16 %v442, %v438
      %v567 = vpack.c.b16 %v443, %v439
      %v568 = vpack.c.b16 %v448, %v444
      %v569 = vpack.c.b16 %v449, %v445
      %v570 = vpack.c.b16 %v450, %v446
      %v571 = vpack.c.b16 %v451, %v447
      %v572 = vpack.c.b16 %v456, %v452
      %v573 = vpack.c.b16 %v457, %v453
      %v574 = vpack.c.b16 %v458, %v454
      %v575 = vpack.c.b16 %v459, %v455
      %v576 = vpack.c.b16 %v464, %v460
      %v577 = vpack.c.b16 %v465, %v461
      %v578 = vpack.c.b16 %v466, %v462
      %v579 = vpack.c.b16 %v467, %v463
      %v580 = vpack.c.b16 %v472, %v468
      %v581 = vpack.c.b16 %v473, %v469
      %v582 = vpack.c.b16 %v474, %v470
      %v583 = vpack.c.b16 %v475, %v471
      %v584 = vpack.c.b16 %v480, %v476
      %v585 = vpack.c.b16 %v481, %v477
      %v586 = vpack.c.b16 %v482, %v478
      %v587 = vpack.c.b16 %v483, %v479
      %v588 = vpack.c.b16 %v488, %v484
      %v589 = vpack.c.b16 %v489, %v485
      %v590 = vpack.c.b16 %v490, %v486
      %v591 = vpack.c.b16 %v491, %v487
      %v592 = vpack.c.b16 %v496, %v492
      %v593 = vpack.c.b16 %v497, %v493
      %v594 = vpack.c.b16 %v498, %v494
      %v595 = vpack.c.b16 %v499, %v495
      %v596 = vpack.c.b16 %v504, %v500
      %v597 = vpack.c.b16 %v505, %v501
      %v598 = vpack.c.b16 %v506, %v502
      %v599 = vpack.c.b16 %v507, %v503
      %v600 = vpack.c.b16 %v512, %v508
      %v601 = vpack.c.b16 %v513, %v509
      %v602 = vpack.c.b16 %v514, %v510
      %v603 = vpack.c.b16 %v515, %v511
      %v604 = vpack.c.b16 %v520, %v516
      %v605 = vpack.c.b16 %v521, %v517
      %v606 = vpack.c.b16 %v522, %v518
      %v607 = vpack.c.b16 %v523, %v519
      %v608 = vpack.c.b16 %v528, %v524
      %v609 = vpack.c.b16 %v529, %v525
      %v610 = vpack.c.b16 %v530, %v526
      %v611 = vpack.c.b16 %v531, %v527
      %v612 = vpack.c.b16 %v536, %v532
      %v613 = vpack.c.b16 %v537, %v533
      %v614 = vpack.c.b16 %v538, %v534
      %v615 = vpack.c.b16 %v539, %v535
      %v616 = vpack.c.b16 %v544, %v540
      %v617 = vpack.c.b16 %v545, %v541
      %v618 = vpack.c.b16 %v546, %v542
      %v619 = vpack.c.b16 %v547, %v543
      %v620 = vpack.c.b16 %v552, %v548
      %v621 = vpack.c.b16 %v553, %v549
      %v622 = vpack.c.b16 %v554, %v550
      %v623 = vpack.c.b16 %v555, %v551
      %v624 = vpack.c.b16 %v560, %v556
      %v625 = vpack.c.b16 %v561, %v557
      %v626 = vpack.c.b16 %v562, %v558
      %v627 = vpack.c.b16 %v563, %v559
      %v732 = vunpack.c.l.b16 %v312
      %v733 = vunpack.c.l.b16 %v313
      %v734 = vunpack.c.l.b16 %v314
      %v735 = vunpack.c.l.b16 %v315
      %v736 = vunpack.c.l.b16 %v316
      %v737 = vunpack.c.l.b16 %v317
      %v738 = vunpack.c.l.b16 %v318
      %v739 = vunpack.c.l.b16 %v319
      %v740 = vunpack.c.l.b16 %v320
      %v741 = vunpack.c.l.b16 %v321
      %v742 = vunpack.c.l.b16 %v322
      %v743 = vunpack.c.l.b16 %v323
      %v744 = vunpack.c.l.b16 %v324
      %v745 = vunpack.c.l.b16 %v325
      %v746 = vunpack.c.l.b16 %v326
      %v747 = vunpack.c.l.b16 %v327
      %v748 = vunpack.c.l.b16 %v328
      %v749 = vunpack.c.l.b16 %v329
      %v750 = vunpack.c.l.b16 %v330
      %v751 = vunpack.c.l.b16 %v331
      %v752 = vunpack.c.l.b16 %v332
      %v753 = vunpack.c.l.b16 %v333
      %v754 = vunpack.c.l.b16 %v334
      %v755 = vunpack.c.l.b16 %v335
      %v756 = vunpack.c.l.b16 %v336
      %v757 = vunpack.c.l.b16 %v337
      %v758 = vunpack.c.l.b16 %v338
      %v759 = vunpack.c.l.b16 %v339
      %v760 = vunpack.c.l.b16 %v340
      %v761 = vunpack.c.l.b16 %v341
      %v762 = vunpack.c.l.b16 %v342
      %v763 = vunpack.c.l.b16 %v343
      %v764 = vunpack.c.l.b16 %v344
      %v765 = vunpack.c.l.b16 %v345
      %v766 = vunpack.c.l.b16 %v346
      %v767 = vunpack.c.l.b16 %v347
      %v768 = vunpack.c.l.b16 %v348
      %v769 = vunpack.c.l.b16 %v349
      %v770 = vunpack.c.l.b16 %v350
      %v771 = vunpack.c.l.b16 %v351
      %v772 = vunpack.c.l.b16 %v352
      %v773 = vunpack.c.l.b16 %v353
      %v774 = vunpack.c.l.b16 %v354
      %v775 = vunpack.c.l.b16 %v355
      %v776 = vunpack.c.l.b16 %v356
      %v777 = vunpack.c.l.b16 %v357
      %v778 = vunpack.c.l.b16 %v358
      %v779 = vunpack.c.l.b16 %v359
      %v780 = vunpack.c.l.b16 %v360
      %v781 = vunpack.c.l.b16 %v361
      %v782 = vunpack.c.l.b16 %v362
      %v783 = vunpack.c.l.b16 %v363
      %v784 = vunpack.c.l.b16 %v364
      %v785 = vunpack.c.l.b16 %v365
      %v786 = vunpack.c.l.b16 %v366
      %v787 = vunpack.c.l.b16 %v367
      %v788 = vpack.c.b16 %v733, %v732
      %v789 = vpack.c.b16 %v735, %v734
      %v790 = vpack.c.b16 %v737, %v736
      %v791 = vpack.c.b16 %v739, %v738
      %v792 = vpack.c.b16 %v741, %v740
      %v793 = vpack.c.b16 %v743, %v742
      %v794 = vpack.c.b16 %v745, %v744
      %v795 = vpack.c.b16 %v747, %v746
      %v796 = vpack.c.b16 %v749, %v748
      %v797 = vpack.c.b16 %v751, %v750
      %v798 = vpack.c.b16 %v753, %v752
      %v799 = vpack.c.b16 %v755, %v754
      %v800 = vpack.c.b16 %v757, %v756
      %v801 = vpack.c.b16 %v759, %v758
      %v802 = vpack.c.b16 %v761, %v760
      %v803 = vpack.c.b16 %v763, %v762
      %v804 = vpack.c.b16 %v765, %v764
      %v805 = vpack.c.b16 %v767, %v766
      %v806 = vpack.c.b16 %v769, %v768
      %v807 = vpack.c.b16 %v771, %v770
      %v808 = vpack.c.b16 %v773, %v772
      %v809 = vpack.c.b16 %v775, %v774
      %v810 = vpack.c.b16 %v777, %v776
      %v811 = vpack.c.b16 %v779, %v778
      %v812 = vpack.c.b16 %v781, %v780
      %v813 = vpack.c.b16 %v783, %v782
      %v814 = vpack.c.b16 %v785, %v784
      %v815 = vpack.c.b16 %v787, %v786
      %vm844 = vcmask 523264
      %v846 = vsel %vm844, %v567, 0
      %v849 = vsel %vm844, %v571, 0
      %v852 = vsel %vm844, %v575, 0
      %v855 = vsel %vm844, %v579, 0
      %v858 = vsel %vm844, %v583, 0
      %v861 = vsel %vm844, %v587, 0
      %v864 = vsel %vm844, %v591, 0
      %v867 = vsel %vm844, %v595, 0
      %v870 = vsel %vm844, %v599, 0
      %v873 = vsel %vm844, %v603, 0
      %v876 = vsel %vm844, %v607, 0
      %v879 = vsel %vm844, %v611, 0
      %v882 = vsel %vm844, %v615, 0
      %v885 = vsel %vm844, %v619, 0
      %v888 = vsel %vm844, %v623, 0
      %v891 = vsel %vm844, %v627, 0
      %893 = vmatpush.bf16.msra.mxu0 %v795
      %894 = vmatpush.bf16.msra.mxu0 %v794
      %895 = vmatpush.bf16.msra.mxu0 %v793
      %896 = vmatpush.bf16.msra.mxu0 %v792
      %897 = vmatpush.bf16.msra.mxu0 %v791
      %898 = vmatpush.bf16.msra.mxu0 %v790
      %899 = vmatpush.bf16.msra.mxu0 %v789
      %900 = vmatpush.bf16.msra.mxu0 %v788
      %901 = vmatmul.bf16.gmra.mxu0 %v564
      %v902 = vpop.f32.mrf.mxu0
      %v903 = vadd.f32 %v370, %v902
      %v904 = vpop.f32.mrf.mxu0
      %v905 = vadd.f32 %v370, %v904
      %906 = vmatmul.bf16.gmra.mxu0 %v568
      %v907 = vpop.f32.mrf.mxu0
      %v908 = vadd.f32 %v370, %v907
      %v909 = vpop.f32.mrf.mxu0
      %v910 = vadd.f32 %v370, %v909
      %911 = vmatmul.bf16.gmra.mxu0 %v572
      %v912 = vpop.f32.mrf.mxu0
      %v913 = vadd.f32 %v370, %v912
      %v914 = vpop.f32.mrf.mxu0
      %v915 = vadd.f32 %v370, %v914
      %916 = vmatmul.bf16.gmra.mxu0 %v576
      %v917 = vpop.f32.mrf.mxu0
      %v918 = vadd.f32 %v370, %v917
      %v919 = vpop.f32.mrf.mxu0
      %v920 = vadd.f32 %v370, %v919
      %921 = vmatmul.bf16.gmra.mxu0 %v580
      %v922 = vpop.f32.mrf.mxu0
      %v923 = vadd.f32 %v370, %v922
      %v924 = vpop.f32.mrf.mxu0
      %v925 = vadd.f32 %v370, %v924
      %926 = vmatmul.bf16.gmra.mxu0 %v584
      %v927 = vpop.f32.mrf.mxu0
      %v928 = vadd.f32 %v370, %v927
      %v929 = vpop.f32.mrf.mxu0
      %v930 = vadd.f32 %v370, %v929
      %931 = vmatmul.bf16.gmra.mxu0 %v588
      %v932 = vpop.f32.mrf.mxu0
      %v933 = vadd.f32 %v370, %v932
      %v934 = vpop.f32.mrf.mxu0
      %v935 = vadd.f32 %v370, %v934
      %936 = vmatmul.bf16.gmra.mxu0 %v592
      %v937 = vpop.f32.mrf.mxu0
      %v938 = vadd.f32 %v370, %v937
      %v939 = vpop.f32.mrf.mxu0
      %v940 = vadd.f32 %v370, %v939
      %941 = vmatmul.bf16.gmra.mxu0 %v596
      %v942 = vpop.f32.mrf.mxu0
      %v943 = vadd.f32 %v370, %v942
      %v944 = vpop.f32.mrf.mxu0
      %v945 = vadd.f32 %v370, %v944
      %946 = vmatmul.bf16.gmra.mxu0 %v600
      %v947 = vpop.f32.mrf.mxu0
      %v948 = vadd.f32 %v370, %v947
      %v949 = vpop.f32.mrf.mxu0
      %v950 = vadd.f32 %v370, %v949
      %951 = vmatmul.bf16.gmra.mxu0 %v604
      %v952 = vpop.f32.mrf.mxu0
      %v953 = vadd.f32 %v370, %v952
      %v954 = vpop.f32.mrf.mxu0
      %v955 = vadd.f32 %v370, %v954
      %956 = vmatmul.bf16.gmra.mxu0 %v608
      %v957 = vpop.f32.mrf.mxu0
      %v958 = vadd.f32 %v370, %v957
      %v959 = vpop.f32.mrf.mxu0
      %v960 = vadd.f32 %v370, %v959
      %961 = vmatmul.bf16.gmra.mxu0 %v612
      %v962 = vpop.f32.mrf.mxu0
      %v963 = vadd.f32 %v370, %v962
      %v964 = vpop.f32.mrf.mxu0
      %v965 = vadd.f32 %v370, %v964
      %966 = vmatmul.bf16.gmra.mxu0 %v616
      %v967 = vpop.f32.mrf.mxu0
      %v968 = vadd.f32 %v370, %v967
      %v969 = vpop.f32.mrf.mxu0
      %v970 = vadd.f32 %v370, %v969
      %971 = vmatmul.bf16.gmra.mxu0 %v620
      %v972 = vpop.f32.mrf.mxu0
      %v973 = vadd.f32 %v370, %v972
      %v974 = vpop.f32.mrf.mxu0
      %v975 = vadd.f32 %v370, %v974
      %976 = vmatmul.bf16.gmra.mxu0 %v624
      %v977 = vpop.f32.mrf.mxu0
      %v978 = vadd.f32 %v370, %v977
      %v979 = vpop.f32.mrf.mxu0
      %v980 = vadd.f32 %v370, %v979
      %981 = vdwg.mxu0
      %982 = vmatpush.bf16.msra.mxu0 %v803
      %983 = vmatpush.bf16.msra.mxu0 %v802
      %984 = vmatpush.bf16.msra.mxu0 %v801
      %985 = vmatpush.bf16.msra.mxu0 %v800
      %986 = vmatpush.bf16.msra.mxu0 %v799
      %987 = vmatpush.bf16.msra.mxu0 %v798
      %988 = vmatpush.bf16.msra.mxu0 %v797
      %989 = vmatpush.bf16.msra.mxu0 %v796
      %990 = vmatmul.bf16.gmra.mxu0 %v565
      %v991 = vpop.f32.mrf.mxu0
      %v992 = vadd.f32 %v903, %v991
      %v993 = vpop.f32.mrf.mxu0
      %v994 = vadd.f32 %v905, %v993
      %995 = vmatmul.bf16.gmra.mxu0 %v569
      %v996 = vpop.f32.mrf.mxu0
      %v997 = vadd.f32 %v908, %v996
      %v998 = vpop.f32.mrf.mxu0
      %v999 = vadd.f32 %v910, %v998
      %1000 = vmatmul.bf16.gmra.mxu0 %v573
      %v1001 = vpop.f32.mrf.mxu0
      %v1002 = vadd.f32 %v913, %v1001
      %v1003 = vpop.f32.mrf.mxu0
      %v1004 = vadd.f32 %v915, %v1003
      %1005 = vmatmul.bf16.gmra.mxu0 %v577
      %v1006 = vpop.f32.mrf.mxu0
      %v1007 = vadd.f32 %v918, %v1006
      %v1008 = vpop.f32.mrf.mxu0
      %v1009 = vadd.f32 %v920, %v1008
      %1010 = vmatmul.bf16.gmra.mxu0 %v581
      %v1011 = vpop.f32.mrf.mxu0
      %v1012 = vadd.f32 %v923, %v1011
      %v1013 = vpop.f32.mrf.mxu0
      %v1014 = vadd.f32 %v925, %v1013
      %1015 = vmatmul.bf16.gmra.mxu0 %v585
      %v1016 = vpop.f32.mrf.mxu0
      %v1017 = vadd.f32 %v928, %v1016
      %v1018 = vpop.f32.mrf.mxu0
      %v1019 = vadd.f32 %v930, %v1018
      %1020 = vmatmul.bf16.gmra.mxu0 %v589
      %v1021 = vpop.f32.mrf.mxu0
      %v1022 = vadd.f32 %v933, %v1021
      %v1023 = vpop.f32.mrf.mxu0
      %v1024 = vadd.f32 %v935, %v1023
      %1025 = vmatmul.bf16.gmra.mxu0 %v593
      %v1026 = vpop.f32.mrf.mxu0
      %v1027 = vadd.f32 %v938, %v1026
      %v1028 = vpop.f32.mrf.mxu0
      %v1029 = vadd.f32 %v940, %v1028
      %1030 = vmatmul.bf16.gmra.mxu0 %v597
      %v1031 = vpop.f32.mrf.mxu0
      %v1032 = vadd.f32 %v943, %v1031
      %v1033 = vpop.f32.mrf.mxu0
      %v1034 = vadd.f32 %v945, %v1033
      %1035 = vmatmul.bf16.gmra.mxu0 %v601
      %v1036 = vpop.f32.mrf.mxu0
      %v1037 = vadd.f32 %v948, %v1036
      %v1038 = vpop.f32.mrf.mxu0
      %v1039 = vadd.f32 %v950, %v1038
      %1040 = vmatmul.bf16.gmra.mxu0 %v605
      %v1041 = vpop.f32.mrf.mxu0
      %v1042 = vadd.f32 %v953, %v1041
      %v1043 = vpop.f32.mrf.mxu0
      %v1044 = vadd.f32 %v955, %v1043
      %1045 = vmatmul.bf16.gmra.mxu0 %v609
      %v1046 = vpop.f32.mrf.mxu0
      %v1047 = vadd.f32 %v958, %v1046
      %v1048 = vpop.f32.mrf.mxu0
      %v1049 = vadd.f32 %v960, %v1048
      %1050 = vmatmul.bf16.gmra.mxu0 %v613
      %v1051 = vpop.f32.mrf.mxu0
      %v1052 = vadd.f32 %v963, %v1051
      %v1053 = vpop.f32.mrf.mxu0
      %v1054 = vadd.f32 %v965, %v1053
      %1055 = vmatmul.bf16.gmra.mxu0 %v617
      %v1056 = vpop.f32.mrf.mxu0
      %v1057 = vadd.f32 %v968, %v1056
      %v1058 = vpop.f32.mrf.mxu0
      %v1059 = vadd.f32 %v970, %v1058
      %1060 = vmatmul.bf16.gmra.mxu0 %v621
      %v1061 = vpop.f32.mrf.mxu0
      %v1062 = vadd.f32 %v973, %v1061
      %v1063 = vpop.f32.mrf.mxu0
      %v1064 = vadd.f32 %v975, %v1063
      %1065 = vmatmul.bf16.gmra.mxu0 %v625
      %v1066 = vpop.f32.mrf.mxu0
      %v1067 = vadd.f32 %v978, %v1066
      %v1068 = vpop.f32.mrf.mxu0
      %v1069 = vadd.f32 %v980, %v1068
      %1070 = vdwg.mxu0
      %1071 = vmatpush.bf16.msra.mxu0 %v811
      %1072 = vmatpush.bf16.msra.mxu0 %v810
      %1073 = vmatpush.bf16.msra.mxu0 %v809
      %1074 = vmatpush.bf16.msra.mxu0 %v808
      %1075 = vmatpush.bf16.msra.mxu0 %v807
      %1076 = vmatpush.bf16.msra.mxu0 %v806
      %1077 = vmatpush.bf16.msra.mxu0 %v805
      %1078 = vmatpush.bf16.msra.mxu0 %v804
      %1079 = vmatmul.bf16.gmra.mxu0 %v566
      %v1080 = vpop.f32.mrf.mxu0
      %v1081 = vadd.f32 %v992, %v1080
      %v1082 = vpop.f32.mrf.mxu0
      %v1083 = vadd.f32 %v994, %v1082
      %1084 = vmatmul.bf16.gmra.mxu0 %v570
      %v1085 = vpop.f32.mrf.mxu0
      %v1086 = vadd.f32 %v997, %v1085
      %v1087 = vpop.f32.mrf.mxu0
      %v1088 = vadd.f32 %v999, %v1087
      %1089 = vmatmul.bf16.gmra.mxu0 %v574
      %v1090 = vpop.f32.mrf.mxu0
      %v1091 = vadd.f32 %v1002, %v1090
      %v1092 = vpop.f32.mrf.mxu0
      %v1093 = vadd.f32 %v1004, %v1092
      %1094 = vmatmul.bf16.gmra.mxu0 %v578
      %v1095 = vpop.f32.mrf.mxu0
      %v1096 = vadd.f32 %v1007, %v1095
      %v1097 = vpop.f32.mrf.mxu0
      %v1098 = vadd.f32 %v1009, %v1097
      %1099 = vmatmul.bf16.gmra.mxu0 %v582
      %v1100 = vpop.f32.mrf.mxu0
      %v1101 = vadd.f32 %v1012, %v1100
      %v1102 = vpop.f32.mrf.mxu0
      %v1103 = vadd.f32 %v1014, %v1102
      %1104 = vmatmul.bf16.gmra.mxu0 %v586
      %v1105 = vpop.f32.mrf.mxu0
      %v1106 = vadd.f32 %v1017, %v1105
      %v1107 = vpop.f32.mrf.mxu0
      %v1108 = vadd.f32 %v1019, %v1107
      %1109 = vmatmul.bf16.gmra.mxu0 %v590
      %v1110 = vpop.f32.mrf.mxu0
      %v1111 = vadd.f32 %v1022, %v1110
      %v1112 = vpop.f32.mrf.mxu0
      %v1113 = vadd.f32 %v1024, %v1112
      %1114 = vmatmul.bf16.gmra.mxu0 %v594
      %v1115 = vpop.f32.mrf.mxu0
      %v1116 = vadd.f32 %v1027, %v1115
      %v1117 = vpop.f32.mrf.mxu0
      %v1118 = vadd.f32 %v1029, %v1117
      %1119 = vmatmul.bf16.gmra.mxu0 %v598
      %v1120 = vpop.f32.mrf.mxu0
      %v1121 = vadd.f32 %v1032, %v1120
      %v1122 = vpop.f32.mrf.mxu0
      %v1123 = vadd.f32 %v1034, %v1122
      %1124 = vmatmul.bf16.gmra.mxu0 %v602
      %v1125 = vpop.f32.mrf.mxu0
      %v1126 = vadd.f32 %v1037, %v1125
      %v1127 = vpop.f32.mrf.mxu0
      %v1128 = vadd.f32 %v1039, %v1127
      %1129 = vmatmul.bf16.gmra.mxu0 %v606
      %v1130 = vpop.f32.mrf.mxu0
      %v1131 = vadd.f32 %v1042, %v1130
      %v1132 = vpop.f32.mrf.mxu0
      %v1133 = vadd.f32 %v1044, %v1132
      %1134 = vmatmul.bf16.gmra.mxu0 %v610
      %v1135 = vpop.f32.mrf.mxu0
      %v1136 = vadd.f32 %v1047, %v1135
      %v1137 = vpop.f32.mrf.mxu0
      %v1138 = vadd.f32 %v1049, %v1137
      %1139 = vmatmul.bf16.gmra.mxu0 %v614
      %v1140 = vpop.f32.mrf.mxu0
      %v1141 = vadd.f32 %v1052, %v1140
      %v1142 = vpop.f32.mrf.mxu0
      %v1143 = vadd.f32 %v1054, %v1142
      %1144 = vmatmul.bf16.gmra.mxu0 %v618
      %v1145 = vpop.f32.mrf.mxu0
      %v1146 = vadd.f32 %v1057, %v1145
      %v1147 = vpop.f32.mrf.mxu0
      %v1148 = vadd.f32 %v1059, %v1147
      %1149 = vmatmul.bf16.gmra.mxu0 %v622
      %v1150 = vpop.f32.mrf.mxu0
      %v1151 = vadd.f32 %v1062, %v1150
      %v1152 = vpop.f32.mrf.mxu0
      %v1153 = vadd.f32 %v1064, %v1152
      %1154 = vmatmul.bf16.gmra.mxu0 %v626
      %v1155 = vpop.f32.mrf.mxu0
      %v1156 = vadd.f32 %v1067, %v1155
      %v1157 = vpop.f32.mrf.mxu0
      %v1158 = vadd.f32 %v1069, %v1157
      %1159 = vdwg.mxu0
      %1160 = vmatpush.bf16.msra.mxu0 0
      %1161 = vmatpush.bf16.msra.mxu0 0
      %1162 = vmatpush.bf16.msra.mxu0 0
      %1163 = vmatpush.bf16.msra.mxu0 0
      %1164 = vmatpush.bf16.msra.mxu0 %v815
      %1165 = vmatpush.bf16.msra.mxu0 %v814
      %1166 = vmatpush.bf16.msra.mxu0 %v813
      %1167 = vmatpush.bf16.msra.mxu0 %v812
      %1168 = vmatmul.bf16.gmra.mxu0 %v846
      %v1169 = vpop.f32.mrf.mxu0
      %v1170 = vadd.f32 %v1081, %v1169
      %v1171 = vpop.f32.mrf.mxu0
      %v1172 = vadd.f32 %v1083, %v1171
      %1173 = vmatmul.bf16.gmra.mxu0 %v849
      %v1174 = vpop.f32.mrf.mxu0
      %v1175 = vadd.f32 %v1086, %v1174
      %v1176 = vpop.f32.mrf.mxu0
      %v1177 = vadd.f32 %v1088, %v1176
      %1178 = vmatmul.bf16.gmra.mxu0 %v852
      %v1179 = vpop.f32.mrf.mxu0
      %v1180 = vadd.f32 %v1091, %v1179
      %v1181 = vpop.f32.mrf.mxu0
      %v1182 = vadd.f32 %v1093, %v1181
      %1183 = vmatmul.bf16.gmra.mxu0 %v855
      %v1184 = vpop.f32.mrf.mxu0
      %v1185 = vadd.f32 %v1096, %v1184
      %v1186 = vpop.f32.mrf.mxu0
      %v1187 = vadd.f32 %v1098, %v1186
      %1188 = vmatmul.bf16.gmra.mxu0 %v858
      %v1189 = vpop.f32.mrf.mxu0
      %v1190 = vadd.f32 %v1101, %v1189
      %v1191 = vpop.f32.mrf.mxu0
      %v1192 = vadd.f32 %v1103, %v1191
      %1193 = vmatmul.bf16.gmra.mxu0 %v861
      %v1194 = vpop.f32.mrf.mxu0
      %v1195 = vadd.f32 %v1106, %v1194
      %v1196 = vpop.f32.mrf.mxu0
      %v1197 = vadd.f32 %v1108, %v1196
      %1198 = vmatmul.bf16.gmra.mxu0 %v864
      %v1199 = vpop.f32.mrf.mxu0
      %v1200 = vadd.f32 %v1111, %v1199
      %v1201 = vpop.f32.mrf.mxu0
      %v1202 = vadd.f32 %v1113, %v1201
      %1203 = vmatmul.bf16.gmra.mxu0 %v867
      %v1204 = vpop.f32.mrf.mxu0
      %v1205 = vadd.f32 %v1116, %v1204
      %v1206 = vpop.f32.mrf.mxu0
      %v1207 = vadd.f32 %v1118, %v1206
      %1208 = vmatmul.bf16.gmra.mxu0 %v870
      %v1209 = vpop.f32.mrf.mxu0
      %v1210 = vadd.f32 %v1121, %v1209
      %v1211 = vpop.f32.mrf.mxu0
      %v1212 = vadd.f32 %v1123, %v1211
      %1213 = vmatmul.bf16.gmra.mxu0 %v873
      %v1214 = vpop.f32.mrf.mxu0
      %v1215 = vadd.f32 %v1126, %v1214
      %v1216 = vpop.f32.mrf.mxu0
      %v1217 = vadd.f32 %v1128, %v1216
      %1218 = vmatmul.bf16.gmra.mxu0 %v876
      %v1219 = vpop.f32.mrf.mxu0
      %v1220 = vadd.f32 %v1131, %v1219
      %v1221 = vpop.f32.mrf.mxu0
      %v1222 = vadd.f32 %v1133, %v1221
      %1223 = vmatmul.bf16.gmra.mxu0 %v879
      %v1224 = vpop.f32.mrf.mxu0
      %v1225 = vadd.f32 %v1136, %v1224
      %v1226 = vpop.f32.mrf.mxu0
      %v1227 = vadd.f32 %v1138, %v1226
      %1228 = vmatmul.bf16.gmra.mxu0 %v882
      %v1229 = vpop.f32.mrf.mxu0
      %v1230 = vadd.f32 %v1141, %v1229
      %v1231 = vpop.f32.mrf.mxu0
      %v1232 = vadd.f32 %v1143, %v1231
      %1233 = vmatmul.bf16.gmra.mxu0 %v885
      %v1234 = vpop.f32.mrf.mxu0
      %v1235 = vadd.f32 %v1146, %v1234
      %v1236 = vpop.f32.mrf.mxu0
      %v1237 = vadd.f32 %v1148, %v1236
      %1238 = vmatmul.bf16.gmra.mxu0 %v888
      %v1239 = vpop.f32.mrf.mxu0
      %v1240 = vadd.f32 %v1151, %v1239
      %v1241 = vpop.f32.mrf.mxu0
      %v1242 = vadd.f32 %v1153, %v1241
      %1243 = vmatmul.bf16.gmra.mxu0 %v891
      %v1244 = vpop.f32.mrf.mxu0
      %v1245 = vadd.f32 %v1156, %v1244
      %v1246 = vpop.f32.mrf.mxu0
      %v1247 = vadd.f32 %v1158, %v1246
      %1248 = vdwg.mxu0
      %v1249 = vmax.f32 %v1170, 0.0
      %v1250 = vmax.f32 %v1172, 0.0
      %v1251 = vmax.f32 %v1175, 0.0
      %v1252 = vmax.f32 %v1177, 0.0
      %v1253 = vmax.f32 %v1180, 0.0
      %v1254 = vmax.f32 %v1182, 0.0
      %v1255 = vmax.f32 %v1185, 0.0
      %v1256 = vmax.f32 %v1187, 0.0
      %v1257 = vmax.f32 %v1190, 0.0
      %v1258 = vmax.f32 %v1192, 0.0
      %v1259 = vmax.f32 %v1195, 0.0
      %v1260 = vmax.f32 %v1197, 0.0
      %v1261 = vmax.f32 %v1200, 0.0
      %v1262 = vmax.f32 %v1202, 0.0
      %v1263 = vmax.f32 %v1205, 0.0
      %v1264 = vmax.f32 %v1207, 0.0
      %v1265 = vmax.f32 %v1210, 0.0
      %v1266 = vmax.f32 %v1212, 0.0
      %v1267 = vmax.f32 %v1215, 0.0
      %v1268 = vmax.f32 %v1217, 0.0
      %v1269 = vmax.f32 %v1220, 0.0
      %v1270 = vmax.f32 %v1222, 0.0
      %v1271 = vmax.f32 %v1225, 0.0
      %v1272 = vmax.f32 %v1227, 0.0
      %v1273 = vmax.f32 %v1230, 0.0
      %v1274 = vmax.f32 %v1232, 0.0
      %v1275 = vmax.f32 %v1235, 0.0
      %v1276 = vmax.f32 %v1237, 0.0
      %v1277 = vmax.f32 %v1240, 0.0
      %v1278 = vmax.f32 %v1242, 0.0
      %v1279 = vmax.f32 %v1245, 0.0
      %v1280 = vmax.f32 %v1247, 0.0
      %v1281 = vpack.c.bf16 %v1249, %v1249
      %v1282 = vpack.c.bf16 %v1250, %v1250
      %v1283 = vpack.c.bf16 %v1251, %v1251
      %v1284 = vpack.c.bf16 %v1252, %v1252
      %v1285 = vpack.c.bf16 %v1253, %v1253
      %v1286 = vpack.c.bf16 %v1254, %v1254
      %v1287 = vpack.c.bf16 %v1255, %v1255
      %v1288 = vpack.c.bf16 %v1256, %v1256
      %v1289 = vpack.c.bf16 %v1257, %v1257
      %v1290 = vpack.c.bf16 %v1258, %v1258
      %v1291 = vpack.c.bf16 %v1259, %v1259
      %v1292 = vpack.c.bf16 %v1260, %v1260
      %v1293 = vpack.c.bf16 %v1261, %v1261
      %v1294 = vpack.c.bf16 %v1262, %v1262
      %v1295 = vpack.c.bf16 %v1263, %v1263
      %v1296 = vpack.c.bf16 %v1264, %v1264
      %v1297 = vpack.c.bf16 %v1265, %v1265
      %v1298 = vpack.c.bf16 %v1266, %v1266
      %v1299 = vpack.c.bf16 %v1267, %v1267
      %v1300 = vpack.c.bf16 %v1268, %v1268
      %v1301 = vpack.c.bf16 %v1269, %v1269
      %v1302 = vpack.c.bf16 %v1270, %v1270
      %v1303 = vpack.c.bf16 %v1271, %v1271
      %v1304 = vpack.c.bf16 %v1272, %v1272
      %v1305 = vpack.c.bf16 %v1273, %v1273
      %v1306 = vpack.c.bf16 %v1274, %v1274
      %v1307 = vpack.c.bf16 %v1275, %v1275
      %v1308 = vpack.c.bf16 %v1276, %v1276
      %v1309 = vpack.c.bf16 %v1277, %v1277
      %v1310 = vpack.c.bf16 %v1278, %v1278
      %v1311 = vpack.c.bf16 %v1279, %v1279
      %v1312 = vpack.c.bf16 %v1280, %v1280
      %vm1313 = vcmask 519168
      %1314 = vst.msk [vmem:[%s245] sm:$0xf] %vm1313, %v1281
      %1315 = vst.msk [vmem:[%s245 + $0x4] sm:$0xf] %vm1313, %v1282
      %1316 = vst.msk [vmem:[%s245 + $0x8] sm:$0xf] %vm1313, %v1283
      %1317 = vst.msk [vmem:[%s245 + $0xc] sm:$0xf] %vm1313, %v1284
      %1318 = vst.msk [vmem:[%s245 + $0x10] sm:$0xf] %vm1313, %v1285
      %1319 = vst.msk [vmem:[%s245 + $0x14] sm:$0xf] %vm1313, %v1286
      %1320 = vst.msk [vmem:[%s245 + $0x18] sm:$0xf] %vm1313, %v1287
      %1321 = vst.msk [vmem:[%s245 + $0x1c] sm:$0xf] %vm1313, %v1288
      %1322 = vst.msk [vmem:[%s245 + $0x20] sm:$0xf] %vm1313, %v1289
      %1323 = vst.msk [vmem:[%s245 + $0x24] sm:$0xf] %vm1313, %v1290
      %1324 = vst.msk [vmem:[%s245 + $0x28] sm:$0xf] %vm1313, %v1291
      %1325 = vst.msk [vmem:[%s245 + $0x2c] sm:$0xf] %vm1313, %v1292
      %1326 = vst.msk [vmem:[%s245 + $0x30] sm:$0xf] %vm1313, %v1293
      %1327 = vst.msk [vmem:[%s245 + $0x34] sm:$0xf] %vm1313, %v1294
      %1328 = vst.msk [vmem:[%s245 + $0x38] sm:$0xf] %vm1313, %v1295
      %1329 = vst.msk [vmem:[%s245 + $0x3c] sm:$0xf] %vm1313, %v1296
      %1330 = vst.msk [vmem:[%s245 + $0x40] sm:$0xf] %vm1313, %v1297
      %1331 = vst.msk [vmem:[%s245 + $0x44] sm:$0xf] %vm1313, %v1298
      %1332 = vst.msk [vmem:[%s245 + $0x48] sm:$0xf] %vm1313, %v1299
      %1333 = vst.msk [vmem:[%s245 + $0x4c] sm:$0xf] %vm1313, %v1300
      %1334 = vst.msk [vmem:[%s245 + $0x50] sm:$0xf] %vm1313, %v1301
      %1335 = vst.msk [vmem:[%s245 + $0x54] sm:$0xf] %vm1313, %v1302
      %1336 = vst.msk [vmem:[%s245 + $0x58] sm:$0xf] %vm1313, %v1303
      %1337 = vst.msk [vmem:[%s245 + $0x5c] sm:$0xf] %vm1313, %v1304
      %1338 = vst.msk [vmem:[%s245 + $0x60] sm:$0xf] %vm1313, %v1305
      %1339 = vst.msk [vmem:[%s245 + $0x64] sm:$0xf] %vm1313, %v1306
      %1340 = vst.msk [vmem:[%s245 + $0x68] sm:$0xf] %vm1313, %v1307
      %1341 = vst.msk [vmem:[%s245 + $0x6c] sm:$0xf] %vm1313, %v1308
      %1342 = vst.msk [vmem:[%s245 + $0x70] sm:$0xf] %vm1313, %v1309
      %1343 = vst.msk [vmem:[%s245 + $0x74] sm:$0xf] %vm1313, %v1310
      %1344 = vst.msk [vmem:[%s245 + $0x78] sm:$0xf] %vm1313, %v1311
      %1345 = vst.msk [vmem:[%s245 + $0x7c] sm:$0xf] %vm1313, %v1312
      %s1346 = smul.u32 32, %s19
      %p1347 = scmp.lt.s32.totalorder %s18, 0
      %s1348 = scalar_select %p1347, %s18, 0
      %p1349 = scmp.lt.s32.totalorder %s1346, 63
      %s1350 = scalar_select %p1349, %s1346, 63
      %s1351 = smul.addr %s1348, 64
      %s1352 = sadd.s32 %s1350, %s1351
      %s1353 = smul.addr %s1352, 4
      %s1354 = scalar_lea.vmem %s3, %s1353
      // Predicated region
      $region33: #{_lambda_.5} parent=31 // pred_check
        %p1355 = pneg %p126
      $region34: #{_lambda_.5} parent=31 // pred_check_branch
        %1357 = sbr.rel (%p1355) target = $region36
      $region35: #{_lambda_.5} parent=31 // pred_region
        %s1358 = smul.u32 32, %s19
      $region36: #{_lambda_.5} parent=31 // pred_fallthru
        _
    $region32: #{_lambda_.5} parent=5 // pred_fallthru
      _
    %p1359 = scmp.le.s32.totalorder 2, %s9
    // Predicated region
    $region37: #{_lambda_.5} parent=5 // pred_check
      %p1360 = pneg %p1359
    $region38: #{_lambda_.5} parent=5 // pred_check_branch
      %1362 = sbr.rel (%p1360) target = $region40
    $region39: #{_lambda_.5} parent=5 // pred_region
      %s1363 = ssub.s32 %s9, 2
      // Predicated region
      $region41: #{_lambda_.5} parent=39 // pred_check
        %p1364 = pneg %p132
      $region42: #{_lambda_.5} parent=39 // pred_check_branch
        %1366 = sbr.rel (%p1364) target = $region44
      $region43: #{_lambda_.5} parent=39 // pred_region
        %s1367 = smul.u32 32, %s21
        %p1368 = scmp.lt.s32.totalorder %s20, 0
        %s1369 = scalar_select %p1368, %s20, 0
        %p1370 = scmp.lt.s32.totalorder %s1367, 63
        %s1371 = scalar_select %p1370, %s1367, 63
        %s1372 = smul.addr %s1369, 64
        %s1373 = sadd.s32 %s1371, %s1372
        %s1374 = smul.addr %s1373, 4
        %s1375 = scalar_lea.vmem %s3, %s1374
      $region44: #{_lambda_.5} parent=39 // pred_fallthru
        _
    $region40: #{_lambda_.5} parent=5 // pred_fallthru
      _
  $region6: #{_lambda_.5} parent=0 // loop_footer
    %s13 = sadd.s32 1, %s9
  $region7: #{_lambda_.5} parent=0 // loop_footer_branch
    %8 = sbr.rel target = $region3
  $region8: #{_lambda_.5} parent=0 // loop_exit
    _

// kernel: _lambda_.7
$region0: #{_lambda_.7}
  #allocation0 [shape = 'u32[]', space=smem, size = 0x4, offset = 0x4, fixed_abs, tag = 'smem constant byte address 0x4 - core index']
  #allocation1 [shape = 'u32[72,128]{1,0:T(1,128)}', space=vmem, size = 0x9000, scoped, tag = 'internal scratch']
  %s0 = inlined_call_operand.vmem [shape: bf16[2,392,576], index: 0, kind: input, shape index: {}]
  %s1 = inlined_call_operand.vmem [shape: bf16[2,576,96], index: 1, kind: input, shape index: {}]
  %s2 = inlined_call_operand.vmem [shape: f32[2,1,96], index: 2, kind: input, shape index: {}]
  %s3 = inlined_call_operand.vmem [shape: bf16[2,392,96], index: 3, kind: output, shape index: {}]
  %s4 = sld [smem:[#allocation0]]
  $region45: #{_lambda_.7} parent=0
    _
  %s6 = ssub.s32 1, %s4
  %s7 = scalar_select 0, %s6, %s4
  loop: start=0, step=1, limit=4
  $region2: #{_lambda_.7} parent=0 // loop_pre_header
    _
  $region3: #{_lambda_.7} parent=0 // loop_header
    %s9 = sphi 0, %s13
    %p10 = scmp.ge.s32.totalorder %s9, 4
    %s16 = sphi 0, %s28
    %s17 = sphi 0, %s24
    %s18 = sphi 0, %s16
    %s19 = sphi 0, %s17
    %s20 = sphi 0, %s18
    %s21 = sphi 0, %s19
    %s33 = sphi 0, %s35
    %s36 = sphi 0, %s33
    %s37 = sphi 0, %s36
    %s53 = sphi 0, %s37
    %s59 = sphi 0, %s61
    %s62 = sphi 0, %s59
    %s63 = sphi 0, %s62
    %s79 = sphi 0, %s63
    %s85 = sphi 0, %s87
    %s88 = sphi 0, %s85
    %s89 = sphi 0, %s88
    %s105 = sphi 0, %s89
    %s113 = sphi 0, %s115
    %s116 = sphi 0, %s113
    %s117 = sphi 0, %s116
    %s133 = sphi 0, %s117
  $region4: #{_lambda_.7} parent=0 // loop_header_branch
    %12 = sbr.rel (%p10) target = $region8
  $region5: #{_lambda_.7} parent=0 // loop_body
    %s14 = ssub.s32 %s9, 1
    %s15 = ssub.s32 %s9, 2
    %s22 = sadd.s32 1, %s17
    %p23 = scmp.ge.s32.totalorder %s22, 1
    %s24 = scalar_select %p23, 0, %s22
    %s25 = sadd.s32 1, %s16
    %s26 = scalar_select %p23, %s25, %s16
    %p27 = scmp.ge.s32.totalorder %s26, 2
    %s28 = scalar_select %p27, 0, %s26
    %s29 = ssub.s32 %s16, %s28
    %s30 = ssub.s32 %s17, %s24
    %s31 = sor.u32 %s29, %s30
    %p32 = scmp.eq.s32.totalorder %s31, 0
    %s34 = sadd.s32 %s33, 1
    %s35 = scalar_select %p32, %s33, %s34
    %p38 = pneg %p32
    %p39 = scmp.eq.s32.totalorder %s9, 1
    %p40 = por %p38, %p39
    %p41 = scmp.ne.s32.totalorder %s33, %s36
    %p42 = scmp.eq.s32.totalorder %s9, 0
    %p43 = por %p41, %p42
    %p44 = scmp.ne.s32.totalorder %s33, %s36
    %p45 = scmp.eq.s32.totalorder %s14, 1
    %p46 = por %p44, %p45
    %p47 = scmp.ne.s32.totalorder %s36, %s37
    %p48 = scmp.eq.s32.totalorder %s14, 0
    %p49 = por %p47, %p48
    %p50 = scmp.ne.s32.totalorder %s36, %s37
    %p51 = scmp.eq.s32.totalorder %s15, 1
    %p52 = por %p50, %p51
    %p54 = scmp.ne.s32.totalorder %s37, %s53
    %p55 = scmp.eq.s32.totalorder %s15, 0
    %p56 = por %p54, %p55
    %s57 = ssub.s32 %s16, %s28
    %p58 = scmp.eq.s32.totalorder %s57, 0
    %s60 = sadd.s32 %s59, 1
    %s61 = scalar_select %p58, %s59, %s60
    %p64 = pneg %p58
    %p65 = scmp.eq.s32.totalorder %s9, 1
    %p66 = por %p64, %p65
    %p67 = scmp.ne.s32.totalorder %s59, %s62
    %p68 = scmp.eq.s32.totalorder %s9, 0
    %p69 = por %p67, %p68
    %p70 = scmp.ne.s32.totalorder %s59, %s62
    %p71 = scmp.eq.s32.totalorder %s14, 1
    %p72 = por %p70, %p71
    %p73 = scmp.ne.s32.totalorder %s62, %s63
    %p74 = scmp.eq.s32.totalorder %s14, 0
    %p75 = por %p73, %p74
    %p76 = scmp.ne.s32.totalorder %s62, %s63
    %p77 = scmp.eq.s32.totalorder %s15, 1
    %p78 = por %p76, %p77
    %p80 = scmp.ne.s32.totalorder %s63, %s79
    %p81 = scmp.eq.s32.totalorder %s15, 0
    %p82 = por %p80, %p81
    %s83 = ssub.s32 %s16, %s28
    %p84 = scmp.eq.s32.totalorder %s83, 0
    %s86 = sadd.s32 %s85, 1
    %s87 = scalar_select %p84, %s85, %s86
    %p90 = pneg %p84
    %p91 = scmp.eq.s32.totalorder %s9, 1
    %p92 = por %p90, %p91
    %p93 = scmp.ne.s32.totalorder %s85, %s88
    %p94 = scmp.eq.s32.totalorder %s9, 0
    %p95 = por %p93, %p94
    %p96 = scmp.ne.s32.totalorder %s85, %s88
    %p97 = scmp.eq.s32.totalorder %s14, 1
    %p98 = por %p96, %p97
    %p99 = scmp.ne.s32.totalorder %s88, %s89
    %p100 = scmp.eq.s32.totalorder %s14, 0
    %p101 = por %p99, %p100
    %p102 = scmp.ne.s32.totalorder %s88, %s89
    %p103 = scmp.eq.s32.totalorder %s15, 1
    %p104 = por %p102, %p103
    %p106 = scmp.ne.s32.totalorder %s89, %s105
    %p107 = scmp.eq.s32.totalorder %s15, 0
    %p108 = por %p106, %p107
    %s109 = ssub.s32 %s16, %s28
    %s110 = ssub.s32 %s17, %s24
    %s111 = sor.u32 %s109, %s110
    %p112 = scmp.eq.s32.totalorder %s111, 0
    %s114 = sadd.s32 %s113, 1
    %s115 = scalar_select %p112, %s113, %s114
    %p118 = pneg %p112
    %p119 = scmp.eq.s32.totalorder %s9, 1
    %p120 = por %p118, %p119
    %p121 = scmp.ne.s32.totalorder %s113, %s116
    %p122 = scmp.eq.s32.totalorder %s9, 0
    %p123 = por %p121, %p122
    %p124 = scmp.ne.s32.totalorder %s113, %s116
    %p125 = scmp.eq.s32.totalorder %s14, 1
    %p126 = por %p124, %p125
    %p127 = scmp.ne.s32.totalorder %s116, %s117
    %p128 = scmp.eq.s32.totalorder %s14, 0
    %p129 = por %p127, %p128
    %p130 = scmp.ne.s32.totalorder %s116, %s117
    %p131 = scmp.eq.s32.totalorder %s15, 1
    %p132 = por %p130, %p131
    %p134 = scmp.ne.s32.totalorder %s117, %s133
    %p135 = scmp.eq.s32.totalorder %s15, 0
    %p136 = por %p134, %p135
    %p137 = scmp.le.s32.totalorder 1, %s9
    %p138 = scmp.lt.s32.totalorder %s9, 3
    %p139 = pnand %p137, %p138
    %p140 = pneg %p139
    // Predicated region
    $region9: #{_lambda_.7} parent=5 // pred_check
      _
    $region10: #{_lambda_.7} parent=5 // pred_check_branch
      %142 = sbr.rel (%p139) target = $region12
    $region11: #{_lambda_.7} parent=5 // pred_region
      %s143 = ssub.s32 %s9, 1
    $region12: #{_lambda_.7} parent=5 // pred_fallthru
      _
    %p144 = scmp.lt.s32.totalorder %s9, 2
    // Predicated region
    $region13: #{_lambda_.7} parent=5 // pred_check
      %p145 = pneg %p144
    $region14: #{_lambda_.7} parent=5 // pred_check_branch
      %147 = sbr.rel (%p145) target = $region16
    $region15: #{_lambda_.7} parent=5 // pred_region
      // Predicated region
      $region17: #{_lambda_.7} parent=15 // pred_check
        %p148 = pneg %p43
      $region18: #{_lambda_.7} parent=15 // pred_check_branch
        %150 = sbr.rel (%p148) target = $region20
      $region19: #{_lambda_.7} parent=15 // pred_region
        %s151 = smul.u32 49, %s17
        %p152 = scmp.lt.s32.totalorder %s16, 1
        %s153 = scalar_select %p152, %s16, 1
        %p154 = scmp.lt.s32.totalorder %s151, 48
        %s155 = scalar_select %p154, %s151, 48
        %s156 = smul.addr %s155, 5
        %s157 = smul.addr %s153, 245
        %s158 = sadd.s32 %s156, %s157
        %s159 = smul.addr %s158, 4
        %s160 = scalar_lea.vmem %s0, %s159
        %s161 = smul.u32 49, %s17
      $region20: #{_lambda_.7} parent=15 // pred_fallthru
        _
      // Predicated region
      $region21: #{_lambda_.7} parent=15 // pred_check
        %p162 = pneg %p69
      $region22: #{_lambda_.7} parent=15 // pred_check_branch
        %164 = sbr.rel (%p162) target = $region24
      $region23: #{_lambda_.7} parent=15 // pred_region
        %p165 = scmp.lt.s32.totalorder %s16, 1
        %s166 = scalar_select %p165, %s16, 1
        %s167 = smul.addr %s166, 72
        %s168 = smul.addr %s167, 4
        %s169 = scalar_lea.vmem %s1, %s168
      $region24: #{_lambda_.7} parent=15 // pred_fallthru
        _
      // Predicated region
      $region25: #{_lambda_.7} parent=15 // pred_check
        %p170 = pneg %p95
      $region26: #{_lambda_.7} parent=15 // pred_check_branch
        %172 = sbr.rel (%p170) target = $region28
      $region27: #{_lambda_.7} parent=15 // pred_region
        %p173 = scmp.lt.s32.totalorder %s16, 1
        %s174 = scalar_select %p173, %s16, 1
        %s175 = scalar_lea.vmem %s2, %s174
      $region28: #{_lambda_.7} parent=15 // pred_fallthru
        _
    $region16: #{_lambda_.7} parent=5 // pred_fallthru
      _
    %p176 = scmp.le.s32.totalorder 1, %s9
    %p177 = scmp.lt.s32.totalorder %s9, 3
    %p178 = pnand %p176, %p177
    %p179 = pneg %p178
    // Predicated region
    $region29: #{_lambda_.7} parent=5 // pred_check
      _
    $region30: #{_lambda_.7} parent=5 // pred_check_branch
      %181 = sbr.rel (%p178) target = $region32
    $region31: #{_lambda_.7} parent=5 // pred_region
      %s182 = ssub.s32 %s9, 1
      %s183 = smul.u32 49, %s19
      %p184 = scmp.lt.s32.totalorder %s18, 1
      %s185 = scalar_select %p184, %s18, 1
      %p186 = scmp.lt.s32.totalorder %s183, 48
      %s187 = scalar_select %p186, %s183, 48
      %s188 = smul.addr %s187, 5
      %s189 = smul.addr %s185, 245
      %s190 = sadd.s32 %s188, %s189
      %s191 = smul.addr %s190, 4
      %s192 = scalar_lea.vmem %s0, %s191
      %p193 = pneg %p49
      %p194 = pneg %p46
      %p195 = scmp.lt.s32.totalorder %s18, 1
      %s196 = scalar_select %p195, %s18, 1
      %s197 = smul.addr %s196, 72
      %s198 = smul.addr %s197, 4
      %s199 = scalar_lea.vmem %s1, %s198
      %p200 = pneg %p75
      %p201 = pneg %p72
      %p202 = scmp.lt.s32.totalorder %s18, 1
      %s203 = scalar_select %p202, %s18, 1
      %s204 = scalar_lea.vmem %s2, %s203
      %p205 = pneg %p101
      %p206 = pneg %p98
      %p207 = pneg %p129
      %p208 = pneg %p126
      %s209 = smul.u32 49, %s19
      %p210 = scmp.lt.s32.totalorder %s18, 1
      %s211 = scalar_select %p210, %s18, 1
      %p212 = scmp.lt.s32.totalorder %s209, 48
      %s213 = scalar_select %p212, %s209, 48
      %s214 = smul.addr %s211, 49
      %s215 = sadd.s32 %s213, %s214
      %s216 = smul.addr %s215, 4
      %s217 = scalar_lea.vmem %s3, %s216
      %s218 = smul.u32 49, %s19
      %p219 = scmp.lt.s32.totalorder %s18, 1
      %s220 = scalar_select %p219, %s18, 1
      %p221 = scmp.lt.s32.totalorder %s218, 48
      %s222 = scalar_select %p221, %s218, 48
      %s223 = smul.addr %s222, 5
      %s224 = smul.addr %s220, 245
      %s225 = sadd.s32 %s223, %s224
      %s226 = smul.addr %s225, 4
      %s227 = scalar_lea.vmem %s0, %s226
      %s228 = smul.u32 49, %s19
      %p229 = scmp.lt.s32.totalorder %s18, 1
      %s230 = scalar_select %p229, %s18, 1
      %s231 = smul.addr %s230, 72
      %s232 = smul.addr %s231, 4
      %s233 = scalar_lea.vmem %s1, %s232
      %p234 = scmp.lt.s32.totalorder %s18, 1
      %s235 = scalar_select %p234, %s18, 1
      %s236 = scalar_lea.vmem %s2, %s235
      %s237 = smul.u32 49, %s19
      %p238 = scmp.lt.s32.totalorder %s18, 1
      %s239 = scalar_select %p238, %s18, 1
      %p240 = scmp.lt.s32.totalorder %s237, 48
      %s241 = scalar_select %p240, %s237, 48
      %s242 = smul.addr %s239, 49
      %s243 = sadd.s32 %s241, %s242
      %s244 = smul.addr %s243, 4
      %s245 = scalar_lea.vmem %s3, %s244
      %s246 = smul.u32 49, %s19
      %v248 = vld [vmem:[%s227] sm:$0xff]
      %v249 = vld [vmem:[%s227 + $0x8] sm:$0xff]
      %v250 = vld [vmem:[%s227 + $0x10] sm:$0xf]
      %v251 = vld [vmem:[%s227 + $0x14] sm:$0xff]
      %v252 = vld [vmem:[%s227 + $0x1c] sm:$0xff]
      %v253 = vld [vmem:[%s227 + $0x24] sm:$0xf]
      %v254 = vld [vmem:[%s227 + $0x28] sm:$0xff]
      %v255 = vld [vmem:[%s227 + $0x30] sm:$0xff]
      %v256 = vld [vmem:[%s227 + $0x38] sm:$0xf]
      %v257 = vld [vmem:[%s227 + $0x3c] sm:$0xff]
      %v258 = vld [vmem:[%s227 + $0x44] sm:$0xff]
      %v259 = vld [vmem:[%s227 + $0x4c] sm:$0xf]
      %v260 = vld [vmem:[%s227 + $0x50] sm:$0xff]
      %v261 = vld [vmem:[%s227 + $0x58] sm:$0xff]
      %v262 = vld [vmem:[%s227 + $0x60] sm:$0xf]
      %v263 = vld [vmem:[%s227 + $0x64] sm:$0xff]
      %v264 = vld [vmem:[%s227 + $0x6c] sm:$0xff]
      %v265 = vld [vmem:[%s227 + $0x74] sm:$0xf]
      %v266 = vld [vmem:[%s227 + $0x78] sm:$0xff]
      %v267 = vld [vmem:[%s227 + $0x80] sm:$0xff]
      %v268 = vld [vmem:[%s227 + $0x88] sm:$0xf]
      %v269 = vld [vmem:[%s227 + $0x8c] sm:$0xff]
      %v270 = vld [vmem:[%s227 + $0x94] sm:$0xff]
      %v271 = vld [vmem:[%s227 + $0x9c] sm:$0xf]
      %v272 = vld [vmem:[%s227 + $0xa0] sm:$0xff]
      %v273 = vld [vmem:[%s227 + $0xa8] sm:$0xff]
      %v274 = vld [vmem:[%s227 + $0xb0] sm:$0xf]
      %v275 = vld [vmem:[%s227 + $0xb4] sm:$0xff]
      %v276 = vld [vmem:[%s227 + $0xbc] sm:$0xff]
      %v277 = vld [vmem:[%s227 + $0xc4] sm:$0xf]
      %v278 = vld [vmem:[%s227 + $0xc8] sm:$0xff]
      %v279 = vld [vmem:[%s227 + $0xd0] sm:$0xff]
      %v280 = vld [vmem:[%s227 + $0xd8] sm:$0xf]
      %v281 = vld [vmem:[%s227 + $0xdc] sm:$0xff]
      %v282 = vld [vmem:[%s227 + $0xe4] sm:$0xff]
      %v283 = vld [vmem:[%s227 + $0xec] sm:$0xf]
      %v284 = vld [vmem:[%s227 + $0xf0] sm:$0xff]
      %v285 = vld [vmem:[%s227 + $0xf8] sm:$0xff]
      %v286 = vld [vmem:[%s227 + $0x100] sm:$0xf]
      %v287 = vld [vmem:[%s227 + $0x104] sm:$0xff]
      %v288 = vld [vmem:[%s227 + $0x10c] sm:$0xff]
      %v289 = vld [vmem:[%s227 + $0x114] sm:$0xf]
      %v290 = vld [vmem:[%s227 + $0x118] sm:$0xff]
      %v291 = vld [vmem:[%s227 + $0x120] sm:$0xff]
      %v292 = vld [vmem:[%s227 + $0x128] sm:$0xf]
      %v293 = vld [vmem:[%s227 + $0x12c] sm:$0xff]
      %v294 = vld [vmem:[%s227 + $0x134] sm:$0xff]
      %v295 = vld [vmem:[%s227 + $0x13c] sm:$0xf]
      %v296 = vld [vmem:[%s227 + $0x140] sm:$0xff]
      %v297 = vld [vmem:[%s227 + $0x148] sm:$0xff]
      %v298 = vld [vmem:[%s227 + $0x150] sm:$0xf]
      %v299 = vld [vmem:[%s227 + $0x154] sm:$0xff]
      %v300 = vld [vmem:[%s227 + $0x15c] sm:$0xff]
      %v301 = vld [vmem:[%s227 + $0x164] sm:$0xf]
      %v302 = vld [vmem:[%s227 + $0x168] sm:$0xff]
      %v303 = vld [vmem:[%s227 + $0x170] sm:$0xff]
      %v304 = vld [vmem:[%s227 + $0x178] sm:$0xf]
      %v305 = vld [vmem:[%s227 + $0x17c] sm:$0xff]
      %v306 = vld [vmem:[%s227 + $0x184] sm:$0xff]
      %v307 = vld [vmem:[%s227 + $0x18c] sm:$0xf]
      %v308 = vld [vmem:[%s227 + $0x190] sm:$0xff]
      %v309 = vld [vmem:[%s227 + $0x198] sm:$0xff]
      %v310 = vld [vmem:[%s227 + $0x1a0] sm:$0xf]
      %v311 = vld [vmem:[%s227 + $0x1a4] sm:$0xff]
      %v312 = vld [vmem:[%s227 + $0x1ac] sm:$0xff]
      %v313 = vld [vmem:[%s227 + $0x1b4] sm:$0xf]
      %v314 = vld [vmem:[%s227 + $0x1b8] sm:$0xff]
      %v315 = vld [vmem:[%s227 + $0x1c0] sm:$0xff]
      %v316 = vld [vmem:[%s227 + $0x1c8] sm:$0xf]
      %v317 = vld [vmem:[%s227 + $0x1cc] sm:$0xff]
      %v318 = vld [vmem:[%s227 + $0x1d4] sm:$0xff]
      %v319 = vld [vmem:[%s227 + $0x1dc] sm:$0xf]
      %v320 = vld [vmem:[%s227 + $0x1e0] sm:$0xff]
      %v321 = vld [vmem:[%s227 + $0x1e8] sm:$0xff]
      %v322 = vld [vmem:[%s227 + $0x1f0] sm:$0xf]
      %v323 = vld [vmem:[%s227 + $0x1f4] sm:$0xff]
      %v324 = vld [vmem:[%s227 + $0x1fc] sm:$0xff]
      %v325 = vld [vmem:[%s227 + $0x204] sm:$0xf]
      %v326 = vld [vmem:[%s227 + $0x208] sm:$0xff]
      %v327 = vld [vmem:[%s227 + $0x210] sm:$0xff]
      %v328 = vld [vmem:[%s227 + $0x218] sm:$0xf]
      %v329 = vld [vmem:[%s227 + $0x21c] sm:$0xff]
      %v330 = vld [vmem:[%s227 + $0x224] sm:$0xff]
      %v331 = vld [vmem:[%s227 + $0x22c] sm:$0xf]
      %v332 = vld [vmem:[%s227 + $0x230] sm:$0xff]
      %v333 = vld [vmem:[%s227 + $0x238] sm:$0xff]
      %v334 = vld [vmem:[%s227 + $0x240] sm:$0xf]
      %v335 = vld [vmem:[%s227 + $0x244] sm:$0xff]
      %v336 = vld [vmem:[%s227 + $0x24c] sm:$0xff]
      %v337 = vld [vmem:[%s227 + $0x254] sm:$0xf]
      %v338 = vld [vmem:[%s227 + $0x258] sm:$0xff]
      %v339 = vld [vmem:[%s227 + $0x260] sm:$0xff]
      %v340 = vld [vmem:[%s227 + $0x268] sm:$0xf]
      %v341 = vld [vmem:[%s227 + $0x26c] sm:$0xff]
      %v342 = vld [vmem:[%s227 + $0x274] sm:$0xff]
      %v343 = vld [vmem:[%s227 + $0x27c] sm:$0xf]
      %v344 = vld [vmem:[%s227 + $0x280] sm:$0xff]
      %v345 = vld [vmem:[%s227 + $0x288] sm:$0xff]
      %v346 = vld [vmem:[%s227 + $0x290] sm:$0xf]
      %v347 = vld [vmem:[%s227 + $0x294] sm:$0xff]
      %v348 = vld [vmem:[%s227 + $0x29c] sm:$0xff]
      %v349 = vld [vmem:[%s227 + $0x2a4] sm:$0xf]
      %v350 = vld [vmem:[%s227 + $0x2a8] sm:$0xff]
      %v351 = vld [vmem:[%s227 + $0x2b0] sm:$0xff]
      %v352 = vld [vmem:[%s227 + $0x2b8] sm:$0xf]
      %v353 = vld [vmem:[%s227 + $0x2bc] sm:$0xff]
      %v354 = vld [vmem:[%s227 + $0x2c4] sm:$0xff]
      %v355 = vld [vmem:[%s227 + $0x2cc] sm:$0xf]
      %v356 = vld [vmem:[%s227 + $0x2d0] sm:$0xff]
      %v357 = vld [vmem:[%s227 + $0x2d8] sm:$0xff]
      %v358 = vld [vmem:[%s227 + $0x2e0] sm:$0xf]
      %v359 = vld [vmem:[%s227 + $0x2e4] sm:$0xff]
      %v360 = vld [vmem:[%s227 + $0x2ec] sm:$0xff]
      %v361 = vld [vmem:[%s227 + $0x2f4] sm:$0xf]
      %v362 = vld [vmem:[%s227 + $0x2f8] sm:$0xff]
      %v363 = vld [vmem:[%s227 + $0x300] sm:$0xff]
      %v364 = vld [vmem:[%s227 + $0x308] sm:$0xf]
      %v365 = vld [vmem:[%s227 + $0x30c] sm:$0xff]
      %v366 = vld [vmem:[%s227 + $0x314] sm:$0xff]
      %v367 = vld [vmem:[%s227 + $0x31c] sm:$0xf]
      %v368 = vld [vmem:[%s227 + $0x320] sm:$0xff]
      %v369 = vld [vmem:[%s227 + $0x328] sm:$0xff]
      %v370 = vld [vmem:[%s227 + $0x330] sm:$0xf]
      %v371 = vld [vmem:[%s227 + $0x334] sm:$0xff]
      %v372 = vld [vmem:[%s227 + $0x33c] sm:$0xff]
      %v373 = vld [vmem:[%s227 + $0x344] sm:$0xf]
      %v374 = vld [vmem:[%s227 + $0x348] sm:$0xff]
      %v375 = vld [vmem:[%s227 + $0x350] sm:$0xff]
      %v376 = vld [vmem:[%s227 + $0x358] sm:$0xf]
      %v377 = vld [vmem:[%s227 + $0x35c] sm:$0xff]
      %v378 = vld [vmem:[%s227 + $0x364] sm:$0xff]
      %v379 = vld [vmem:[%s227 + $0x36c] sm:$0xf]
      %v380 = vld [vmem:[%s227 + $0x370] sm:$0xff]
      %v381 = vld [vmem:[%s227 + $0x378] sm:$0xff]
      %v382 = vld [vmem:[%s227 + $0x380] sm:$0xf]
      %v383 = vld [vmem:[%s227 + $0x384] sm:$0xff]
      %v384 = vld [vmem:[%s227 + $0x38c] sm:$0xff]
      %v385 = vld [vmem:[%s227 + $0x394] sm:$0xf]
      %v386 = vld [vmem:[%s227 + $0x398] sm:$0xff]
      %v387 = vld [vmem:[%s227 + $0x3a0] sm:$0xff]
      %v388 = vld [vmem:[%s227 + $0x3a8] sm:$0xf]
      %v389 = vld [vmem:[%s227 + $0x3ac] sm:$0xff]
      %v390 = vld [vmem:[%s227 + $0x3b4] sm:$0xff]
      %v391 = vld [vmem:[%s227 + $0x3bc] sm:$0xf]
      %v392 = vld [vmem:[%s227 + $0x3c0] sm:$0xff]
      %v393 = vld [vmem:[%s227 + $0x3c8] sm:$0xff]
      %v394 = vld [vmem:[%s227 + $0x3d0] sm:$0xf]
      %v395 = vld [vmem:[%s233] sm:$0xf]
      %v396 = vld [vmem:[%s233 + $0x4] sm:$0xf]
      %v397 = vld [vmem:[%s233 + $0x8] sm:$0xf]
      %v398 = vld [vmem:[%s233 + $0xc] sm:$0xf]
      %v399 = vld [vmem:[%s233 + $0x10] sm:$0xf]
      %v400 = vld [vmem:[%s233 + $0x14] sm:$0xf]
      %v401 = vld [vmem:[%s233 + $0x18] sm:$0xf]
      %v402 = vld [vmem:[%s233 + $0x1c] sm:$0xf]
      %v403 = vld [vmem:[%s233 + $0x20] sm:$0xf]
      %v404 = vld [vmem:[%s233 + $0x24] sm:$0xf]
      %v405 = vld [vmem:[%s233 + $0x28] sm:$0xf]
      %v406 = vld [vmem:[%s233 + $0x2c] sm:$0xf]
      %v407 = vld [vmem:[%s233 + $0x30] sm:$0xf]
      %v408 = vld [vmem:[%s233 + $0x34] sm:$0xf]
      %v409 = vld [vmem:[%s233 + $0x38] sm:$0xf]
      %v410 = vld [vmem:[%s233 + $0x3c] sm:$0xf]
      %v411 = vld [vmem:[%s233 + $0x40] sm:$0xf]
      %v412 = vld [vmem:[%s233 + $0x44] sm:$0xf]
      %v413 = vld [vmem:[%s233 + $0x48] sm:$0xf]
      %v414 = vld [vmem:[%s233 + $0x4c] sm:$0xf]
      %v415 = vld [vmem:[%s233 + $0x50] sm:$0xf]
      %v416 = vld [vmem:[%s233 + $0x54] sm:$0xf]
      %v417 = vld [vmem:[%s233 + $0x58] sm:$0xf]
      %v418 = vld [vmem:[%s233 + $0x5c] sm:$0xf]
      %v419 = vld [vmem:[%s233 + $0x60] sm:$0xf]
      %v420 = vld [vmem:[%s233 + $0x64] sm:$0xf]
      %v421 = vld [vmem:[%s233 + $0x68] sm:$0xf]
      %v422 = vld [vmem:[%s233 + $0x6c] sm:$0xf]
      %v423 = vld [vmem:[%s233 + $0x70] sm:$0xf]
      %v424 = vld [vmem:[%s233 + $0x74] sm:$0xf]
      %v425 = vld [vmem:[%s233 + $0x78] sm:$0xf]
      %v426 = vld [vmem:[%s233 + $0x7c] sm:$0xf]
      %v427 = vld [vmem:[%s233 + $0x80] sm:$0xf]
      %v428 = vld [vmem:[%s233 + $0x84] sm:$0xf]
      %v429 = vld [vmem:[%s233 + $0x88] sm:$0xf]
      %v430 = vld [vmem:[%s233 + $0x8c] sm:$0xf]
      %v431 = vld [vmem:[%s233 + $0x90] sm:$0xf]
      %v432 = vld [vmem:[%s233 + $0x94] sm:$0xf]
      %v433 = vld [vmem:[%s233 + $0x98] sm:$0xf]
      %v434 = vld [vmem:[%s233 + $0x9c] sm:$0xf]
      %v435 = vld [vmem:[%s233 + $0xa0] sm:$0xf]
      %v436 = vld [vmem:[%s233 + $0xa4] sm:$0xf]
      %v437 = vld [vmem:[%s233 + $0xa8] sm:$0xf]
      %v438 = vld [vmem:[%s233 + $0xac] sm:$0xf]
      %v439 = vld [vmem:[%s233 + $0xb0] sm:$0xf]
      %v440 = vld [vmem:[%s233 + $0xb4] sm:$0xf]
      %v441 = vld [vmem:[%s233 + $0xb8] sm:$0xf]
      %v442 = vld [vmem:[%s233 + $0xbc] sm:$0xf]
      %v443 = vld [vmem:[%s233 + $0xc0] sm:$0xf]
      %v444 = vld [vmem:[%s233 + $0xc4] sm:$0xf]
      %v445 = vld [vmem:[%s233 + $0xc8] sm:$0xf]
      %v446 = vld [vmem:[%s233 + $0xcc] sm:$0xf]
      %v447 = vld [vmem:[%s233 + $0xd0] sm:$0xf]
      %v448 = vld [vmem:[%s233 + $0xd4] sm:$0xf]
      %v449 = vld [vmem:[%s233 + $0xd8] sm:$0xf]
      %v450 = vld [vmem:[%s233 + $0xdc] sm:$0xf]
      %v451 = vld [vmem:[%s233 + $0xe0] sm:$0xf]
      %v452 = vld [vmem:[%s233 + $0xe4] sm:$0xf]
      %v453 = vld [vmem:[%s233 + $0xe8] sm:$0xf]
      %v454 = vld [vmem:[%s233 + $0xec] sm:$0xf]
      %v455 = vld [vmem:[%s233 + $0xf0] sm:$0xf]
      %v456 = vld [vmem:[%s233 + $0xf4] sm:$0xf]
      %v457 = vld [vmem:[%s233 + $0xf8] sm:$0xf]
      %v458 = vld [vmem:[%s233 + $0xfc] sm:$0xf]
      %v459 = vld [vmem:[%s233 + $0x100] sm:$0xf]
      %v460 = vld [vmem:[%s233 + $0x104] sm:$0xf]
      %v461 = vld [vmem:[%s233 + $0x108] sm:$0xf]
      %v462 = vld [vmem:[%s233 + $0x10c] sm:$0xf]
      %v463 = vld [vmem:[%s233 + $0x110] sm:$0xf]
      %v464 = vld [vmem:[%s233 + $0x114] sm:$0xf]
      %v465 = vld [vmem:[%s233 + $0x118] sm:$0xf]
      %v466 = vld [vmem:[%s233 + $0x11c] sm:$0xf]
      %v467 = vld [vmem:[%s236] sm:$0x1]
      %v469 = vperm.slane %v467, 0
      %v618 = vunpack.c.l.b16 %v248
      %v619 = vunpack.c.h.b16 %v248
      %v620 = vunpack.c.l.b16 %v249
      %v621 = vunpack.c.h.b16 %v249
      %v622 = vunpack.c.l.b16 %v250
      %v623 = vunpack.c.l.b16 %v251
      %v624 = vunpack.c.h.b16 %v251
      %v625 = vunpack.c.l.b16 %v252
      %v626 = vunpack.c.h.b16 %v252
      %v627 = vunpack.c.l.b16 %v253
      %v628 = vunpack.c.l.b16 %v254
      %v629 = vunpack.c.h.b16 %v254
      %v630 = vunpack.c.l.b16 %v255
      %v631 = vunpack.c.h.b16 %v255
      %v632 = vunpack.c.l.b16 %v256
      %v633 = vunpack.c.l.b16 %v257
      %v634 = vunpack.c.h.b16 %v257
      %v635 = vunpack.c.l.b16 %v258
      %v636 = vunpack.c.h.b16 %v258
      %v637 = vunpack.c.l.b16 %v259
      %v638 = vunpack.c.l.b16 %v260
      %v639 = vunpack.c.h.b16 %v260
      %v640 = vunpack.c.l.b16 %v261
      %v641 = vunpack.c.h.b16 %v261
      %v642 = vunpack.c.l.b16 %v262
      %v643 = vunpack.c.l.b16 %v263
      %v644 = vunpack.c.h.b16 %v263
      %v645 = vunpack.c.l.b16 %v264
      %v646 = vunpack.c.h.b16 %v264
      %v647 = vunpack.c.l.b16 %v265
      %v648 = vunpack.c.l.b16 %v266
      %v649 = vunpack.c.h.b16 %v266
      %v650 = vunpack.c.l.b16 %v267
      %v651 = vunpack.c.h.b16 %v267
      %v652 = vunpack.c.l.b16 %v268
      %v653 = vunpack.c.l.b16 %v269
      %v654 = vunpack.c.h.b16 %v269
      %v655 = vunpack.c.l.b16 %v270
      %v656 = vunpack.c.h.b16 %v270
      %v657 = vunpack.c.l.b16 %v271
      %v658 = vunpack.c.l.b16 %v272
      %v659 = vunpack.c.h.b16 %v272
      %v660 = vunpack.c.l.b16 %v273
      %v661 = vunpack.c.h.b16 %v273
      %v662 = vunpack.c.l.b16 %v274
      %v663 = vunpack.c.l.b16 %v275
      %v664 = vunpack.c.h.b16 %v275
      %v665 = vunpack.c.l.b16 %v276
      %v666 = vunpack.c.h.b16 %v276
      %v667 = vunpack.c.l.b16 %v277
      %v668 = vunpack.c.l.b16 %v278
      %v669 = vunpack.c.h.b16 %v278
      %v670 = vunpack.c.l.b16 %v279
      %v671 = vunpack.c.h.b16 %v279
      %v672 = vunpack.c.l.b16 %v280
      %v673 = vunpack.c.l.b16 %v281
      %v674 = vunpack.c.h.b16 %v281
      %v675 = vunpack.c.l.b16 %v282
      %v676 = vunpack.c.h.b16 %v282
      %v677 = vunpack.c.l.b16 %v283
      %v678 = vunpack.c.l.b16 %v284
      %v679 = vunpack.c.h.b16 %v284
      %v680 = vunpack.c.l.b16 %v285
      %v681 = vunpack.c.h.b16 %v285
      %v682 = vunpack.c.l.b16 %v286
      %v683 = vunpack.c.l.b16 %v287
      %v684 = vunpack.c.h.b16 %v287
      %v685 = vunpack.c.l.b16 %v288
      %v686 = vunpack.c.h.b16 %v288
      %v687 = vunpack.c.l.b16 %v289
      %v688 = vunpack.c.l.b16 %v290
      %v689 = vunpack.c.h.b16 %v290
      %v690 = vunpack.c.l.b16 %v291
      %v691 = vunpack.c.h.b16 %v291
      %v692 = vunpack.c.l.b16 %v292
      %v693 = vunpack.c.l.b16 %v293
      %v694 = vunpack.c.h.b16 %v293
      %v695 = vunpack.c.l.b16 %v294
      %v696 = vunpack.c.h.b16 %v294
      %v697 = vunpack.c.l.b16 %v295
      %v698 = vunpack.c.l.b16 %v296
      %v699 = vunpack.c.h.b16 %v296
      %v700 = vunpack.c.l.b16 %v297
      %v701 = vunpack.c.h.b16 %v297
      %v702 = vunpack.c.l.b16 %v298
      %v703 = vunpack.c.l.b16 %v299
      %v704 = vunpack.c.h.b16 %v299
      %v705 = vunpack.c.l.b16 %v300
      %v706 = vunpack.c.h.b16 %v300
      %v707 = vunpack.c.l.b16 %v301
      %v708 = vunpack.c.l.b16 %v302
      %v709 = vunpack.c.h.b16 %v302
      %v710 = vunpack.c.l.b16 %v303
      %v711 = vunpack.c.h.b16 %v303
      %v712 = vunpack.c.l.b16 %v304
      %v713 = vunpack.c.l.b16 %v305
      %v714 = vunpack.c.h.b16 %v305
      %v715 = vunpack.c.l.b16 %v306
      %v716 = vunpack.c.h.b16 %v306
      %v717 = vunpack.c.l.b16 %v307
      %v718 = vunpack.c.l.b16 %v308
      %v719 = vunpack.c.h.b16 %v308
      %v720 = vunpack.c.l.b16 %v309
      %v721 = vunpack.c.h.b16 %v309
      %v722 = vunpack.c.l.b16 %v310
      %v723 = vunpack.c.l.b16 %v311
      %v724 = vunpack.c.h.b16 %v311
      %v725 = vunpack.c.l.b16 %v312
      %v726 = vunpack.c.h.b16 %v312
      %v727 = vunpack.c.l.b16 %v313
      %v728 = vunpack.c.l.b16 %v314
      %v729 = vunpack.c.h.b16 %v314
      %v730 = vunpack.c.l.b16 %v315
      %v731 = vunpack.c.h.b16 %v315
      %v732 = vunpack.c.l.b16 %v316
      %v733 = vunpack.c.l.b16 %v317
      %v734 = vunpack.c.h.b16 %v317
      %v735 = vunpack.c.l.b16 %v318
      %v736 = vunpack.c.h.b16 %v318
      %v737 = vunpack.c.l.b16 %v319
      %v738 = vunpack.c.l.b16 %v320
      %v739 = vunpack.c.h.b16 %v320
      %v740 = vunpack.c.l.b16 %v321
      %v741 = vunpack.c.h.b16 %v321
      %v742 = vunpack.c.l.b16 %v322
      %v743 = vunpack.c.l.b16 %v323
      %v744 = vunpack.c.h.b16 %v323
      %v745 = vunpack.c.l.b16 %v324
      %v746 = vunpack.c.h.b16 %v324
      %v747 = vunpack.c.l.b16 %v325
      %v748 = vunpack.c.l.b16 %v326
      %v749 = vunpack.c.h.b16 %v326
      %v750 = vunpack.c.l.b16 %v327
      %v751 = vunpack.c.h.b16 %v327
      %v752 = vunpack.c.l.b16 %v328
      %v753 = vunpack.c.l.b16 %v329
      %v754 = vunpack.c.h.b16 %v329
      %v755 = vunpack.c.l.b16 %v330
      %v756 = vunpack.c.h.b16 %v330
      %v757 = vunpack.c.l.b16 %v331
      %v758 = vunpack.c.l.b16 %v332
      %v759 = vunpack.c.h.b16 %v332
      %v760 = vunpack.c.l.b16 %v333
      %v761 = vunpack.c.h.b16 %v333
      %v762 = vunpack.c.l.b16 %v334
      %v763 = vunpack.c.l.b16 %v335
      %v764 = vunpack.c.h.b16 %v335
      %v765 = vunpack.c.l.b16 %v336
      %v766 = vunpack.c.h.b16 %v336
      %v767 = vunpack.c.l.b16 %v337
      %v768 = vunpack.c.l.b16 %v338
      %v769 = vunpack.c.h.b16 %v338
      %v770 = vunpack.c.l.b16 %v339
      %v771 = vunpack.c.h.b16 %v339
      %v772 = vunpack.c.l.b16 %v340
      %v773 = vunpack.c.l.b16 %v341
      %v774 = vunpack.c.h.b16 %v341
      %v775 = vunpack.c.l.b16 %v342
      %v776 = vunpack.c.h.b16 %v342
      %v777 = vunpack.c.l.b16 %v343
      %v778 = vunpack.c.l.b16 %v344
      %v779 = vunpack.c.h.b16 %v344
      %v780 = vunpack.c.l.b16 %v345
      %v781 = vunpack.c.h.b16 %v345
      %v782 = vunpack.c.l.b16 %v346
      %v783 = vunpack.c.l.b16 %v347
      %v784 = vunpack.c.h.b16 %v347
      %v785 = vunpack.c.l.b16 %v348
      %v786 = vunpack.c.h.b16 %v348
      %v787 = vunpack.c.l.b16 %v349
      %v788 = vunpack.c.l.b16 %v350
      %v789 = vunpack.c.h.b16 %v350
      %v790 = vunpack.c.l.b16 %v351
      %v791 = vunpack.c.h.b16 %v351
      %v792 = vunpack.c.l.b16 %v352
      %v793 = vunpack.c.l.b16 %v353
      %v794 = vunpack.c.h.b16 %v353
      %v795 = vunpack.c.l.b16 %v354
      %v796 = vunpack.c.h.b16 %v354
      %v797 = vunpack.c.l.b16 %v355
      %v798 = vunpack.c.l.b16 %v356
      %v799 = vunpack.c.h.b16 %v356
      %v800 = vunpack.c.l.b16 %v357
      %v801 = vunpack.c.h.b16 %v357
      %v802 = vunpack.c.l.b16 %v358
      %v803 = vunpack.c.l.b16 %v359
      %v804 = vunpack.c.h.b16 %v359
      %v805 = vunpack.c.l.b16 %v360
      %v806 = vunpack.c.h.b16 %v360
      %v807 = vunpack.c.l.b16 %v361
      %v808 = vunpack.c.l.b16 %v362
      %v809 = vunpack.c.h.b16 %v362
      %v810 = vunpack.c.l.b16 %v363
      %v811 = vunpack.c.h.b16 %v363
      %v812 = vunpack.c.l.b16 %v364
      %v813 = vunpack.c.l.b16 %v365
      %v814 = vunpack.c.h.b16 %v365
      %v815 = vunpack.c.l.b16 %v366
      %v816 = vunpack.c.h.b16 %v366
      %v817 = vunpack.c.l.b16 %v367
      %v818 = vunpack.c.l.b16 %v368
      %v819 = vunpack.c.h.b16 %v368
      %v820 = vunpack.c.l.b16 %v369
      %v821 = vunpack.c.h.b16 %v369
      %v822 = vunpack.c.l.b16 %v370
      %v823 = vunpack.c.l.b16 %v371
      %v824 = vunpack.c.h.b16 %v371
      %v825 = vunpack.c.l.b16 %v372
      %v826 = vunpack.c.h.b16 %v372
      %v827 = vunpack.c.l.b16 %v373
      %v828 = vunpack.c.l.b16 %v374
      %v829 = vunpack.c.h.b16 %v374
      %v830 = vunpack.c.l.b16 %v375
      %v831 = vunpack.c.h.b16 %v375
      %v832 = vunpack.c.l.b16 %v376
      %v833 = vunpack.c.l.b16 %v377
      %v834 = vunpack.c.h.b16 %v377
      %v835 = vunpack.c.l.b16 %v378
      %v836 = vunpack.c.h.b16 %v378
      %v837 = vunpack.c.l.b16 %v379
      %v838 = vunpack.c.l.b16 %v380
      %v839 = vunpack.c.h.b16 %v380
      %v840 = vunpack.c.l.b16 %v381
      %v841 = vunpack.c.h.b16 %v381
      %v842 = vunpack.c.l.b16 %v382
      %v843 = vunpack.c.l.b16 %v383
      %v844 = vunpack.c.h.b16 %v383
      %v845 = vunpack.c.l.b16 %v384
      %v846 = vunpack.c.h.b16 %v384
      %v847 = vunpack.c.l.b16 %v385
      %v848 = vunpack.c.l.b16 %v386
      %v849 = vunpack.c.h.b16 %v386
      %v850 = vunpack.c.l.b16 %v387
      %v851 = vunpack.c.h.b16 %v387
      %v852 = vunpack.c.l.b16 %v388
      %v853 = vunpack.c.l.b16 %v389
      %v854 = vunpack.c.h.b16 %v389
      %v855 = vunpack.c.l.b16 %v390
      %v856 = vunpack.c.h.b16 %v390
      %v857 = vunpack.c.l.b16 %v391
      %v858 = vunpack.c.l.b16 %v392
      %v859 = vunpack.c.h.b16 %v392
      %v860 = vunpack.c.l.b16 %v393
      %v861 = vunpack.c.h.b16 %v393
      %v862 = vunpack.c.l.b16 %v394
      %v863 = vpack.c.b16 %v623, %v618
      %v864 = vpack.c.b16 %v624, %v619
      %v865 = vpack.c.b16 %v625, %v620
      %v866 = vpack.c.b16 %v626, %v621
      %v867 = vpack.c.b16 %v627, %v622
      %v868 = vpack.c.b16 %v633, %v628
      %v869 = vpack.c.b16 %v634, %v629
      %v870 = vpack.c.b16 %v635, %v630
      %v871 = vpack.c.b16 %v636, %v631
      %v872 = vpack.c.b16 %v637, %v632
      %v873 = vpack.c.b16 %v643, %v638
      %v874 = vpack.c.b16 %v644, %v639
      %v875 = vpack.c.b16 %v645, %v640
      %v876 = vpack.c.b16 %v646, %v641
      %v877 = vpack.c.b16 %v647, %v642
      %v878 = vpack.c.b16 %v653, %v648
      %v879 = vpack.c.b16 %v654, %v649
      %v880 = vpack.c.b16 %v655, %v650
      %v881 = vpack.c.b16 %v656, %v651
      %v882 = vpack.c.b16 %v657, %v652
      %v883 = vpack.c.b16 %v663, %v658
      %v884 = vpack.c.b16 %v664, %v659
      %v885 = vpack.c.b16 %v665, %v660
      %v886 = vpack.c.b16 %v666, %v661
      %v887 = vpack.c.b16 %v667, %v662
      %v888 = vpack.c.b16 %v673, %v668
      %v889 = vpack.c.b16 %v674, %v669
      %v890 = vpack.c.b16 %v675, %v670
      %v891 = vpack.c.b16 %v676, %v671
      %v892 = vpack.c.b16 %v677, %v672
      %v893 = vpack.c.b16 %v683, %v678
      %v894 = vpack.c.b16 %v684, %v679
      %v895 = vpack.c.b16 %v685, %v680
      %v896 = vpack.c.b16 %v686, %v681
      %v897 = vpack.c.b16 %v687, %v682
      %v898 = vpack.c.b16 %v693, %v688
      %v899 = vpack.c.b16 %v694, %v689
      %v900 = vpack.c.b16 %v695, %v690
      %v901 = vpack.c.b16 %v696, %v691
      %v902 = vpack.c.b16 %v697, %v692
      %v903 = vpack.c.b16 %v703, %v698
      %v904 = vpack.c.b16 %v704, %v699
      %v905 = vpack.c.b16 %v705, %v700
      %v906 = vpack.c.b16 %v706, %v701
      %v907 = vpack.c.b16 %v707, %v702
      %v908 = vpack.c.b16 %v713, %v708
      %v909 = vpack.c.b16 %v714, %v709
      %v910 = vpack.c.b16 %v715, %v710
      %v911 = vpack.c.b16 %v716, %v711
      %v912 = vpack.c.b16 %v717, %v712
      %v913 = vpack.c.b16 %v723, %v718
      %v914 = vpack.c.b16 %v724, %v719
      %v915 = vpack.c.b16 %v725, %v720
      %v916 = vpack.c.b16 %v726, %v721
      %v917 = vpack.c.b16 %v727, %v722
      %v918 = vpack.c.b16 %v733, %v728
      %v919 = vpack.c.b16 %v734, %v729
      %v920 = vpack.c.b16 %v735, %v730
      %v921 = vpack.c.b16 %v736, %v731
      %v922 = vpack.c.b16 %v737, %v732
      %v923 = vpack.c.b16 %v743, %v738
      %v924 = vpack.c.b16 %v744, %v739
      %v925 = vpack.c.b16 %v745, %v740
      %v926 = vpack.c.b16 %v746, %v741
      %v927 = vpack.c.b16 %v747, %v742
      %v928 = vpack.c.b16 %v753, %v748
      %v929 = vpack.c.b16 %v754, %v749
      %v930 = vpack.c.b16 %v755, %v750
      %v931 = vpack.c.b16 %v756, %v751
      %v932 = vpack.c.b16 %v757, %v752
      %v933 = vpack.c.b16 %v763, %v758
      %v934 = vpack.c.b16 %v764, %v759
      %v935 = vpack.c.b16 %v765, %v760
      %v936 = vpack.c.b16 %v766, %v761
      %v937 = vpack.c.b16 %v767, %v762
      %v938 = vpack.c.b16 %v773, %v768
      %v939 = vpack.c.b16 %v774, %v769
      %v940 = vpack.c.b16 %v775, %v770
      %v941 = vpack.c.b16 %v776, %v771
      %v942 = vpack.c.b16 %v777, %v772
      %v943 = vpack.c.b16 %v783, %v778
      %v944 = vpack.c.b16 %v784, %v779
      %v945 = vpack.c.b16 %v785, %v780
      %v946 = vpack.c.b16 %v786, %v781
      %v947 = vpack.c.b16 %v787, %v782
      %v948 = vpack.c.b16 %v793, %v788
      %v949 = vpack.c.b16 %v794, %v789
      %v950 = vpack.c.b16 %v795, %v790
      %v951 = vpack.c.b16 %v796, %v791
      %v952 = vpack.c.b16 %v797, %v792
      %v953 = vpack.c.b16 %v803, %v798
      %v954 = vpack.c.b16 %v804, %v799
      %v955 = vpack.c.b16 %v805, %v800
      %v956 = vpack.c.b16 %v806, %v801
      %v957 = vpack.c.b16 %v807, %v802
      %v958 = vpack.c.b16 %v813, %v808
      %v959 = vpack.c.b16 %v814, %v809
      %v960 = vpack.c.b16 %v815, %v810
      %v961 = vpack.c.b16 %v816, %v811
      %v962 = vpack.c.b16 %v817, %v812
      %v963 = vpack.c.b16 %v823, %v818
      %v964 = vpack.c.b16 %v824, %v819
      %v965 = vpack.c.b16 %v825, %v820
      %v966 = vpack.c.b16 %v826, %v821
      %v967 = vpack.c.b16 %v827, %v822
      %v968 = vpack.c.b16 %v833, %v828
      %v969 = vpack.c.b16 %v834, %v829
      %v970 = vpack.c.b16 %v835, %v830
      %v971 = vpack.c.b16 %v836, %v831
      %v972 = vpack.c.b16 %v837, %v832
      %v973 = vpack.c.b16 %v843, %v838
      %v974 = vpack.c.b16 %v844, %v839
      %v975 = vpack.c.b16 %v845, %v840
      %v976 = vpack.c.b16 %v846, %v841
      %v977 = vpack.c.b16 %v847, %v842
      %v978 = vpack.c.b16 %v853, %v848
      %v979 = vpack.c.b16 %v854, %v849
      %v980 = vpack.c.b16 %v855, %v850
      %v981 = vpack.c.b16 %v856, %v851
      %v982 = vpack.c.b16 %v857, %v852
      %v983 = vpack.c.b16 %v858, %v858
      %v984 = vpack.c.b16 %v859, %v859
      %v985 = vpack.c.b16 %v860, %v860
      %v986 = vpack.c.b16 %v861, %v861
      %v987 = vpack.c.b16 %v862, %v862
      %v1160 = vunpack.c.l.b16 %v395
      %v1161 = vunpack.c.l.b16 %v396
      %v1162 = vunpack.c.l.b16 %v397
      %v1163 = vunpack.c.l.b16 %v398
      %v1164 = vunpack.c.l.b16 %v399
      %v1165 = vunpack.c.l.b16 %v400
      %v1166 = vunpack.c.l.b16 %v401
      %v1167 = vunpack.c.l.b16 %v402
      %v1168 = vunpack.c.l.b16 %v403
      %v1169 = vunpack.c.l.b16 %v404
      %v1170 = vunpack.c.l.b16 %v405
      %v1171 = vunpack.c.l.b16 %v406
      %v1172 = vunpack.c.l.b16 %v407
      %v1173 = vunpack.c.l.b16 %v408
      %v1174 = vunpack.c.l.b16 %v409
      %v1175 = vunpack.c.l.b16 %v410
      %v1176 = vunpack.c.l.b16 %v411
      %v1177 = vunpack.c.l.b16 %v412
      %v1178 = vunpack.c.l.b16 %v413
      %v1179 = vunpack.c.l.b16 %v414
      %v1180 = vunpack.c.l.b16 %v415
      %v1181 = vunpack.c.l.b16 %v416
      %v1182 = vunpack.c.l.b16 %v417
      %v1183 = vunpack.c.l.b16 %v418
      %v1184 = vunpack.c.l.b16 %v419
      %v1185 = vunpack.c.l.b16 %v420
      %v1186 = vunpack.c.l.b16 %v421
      %v1187 = vunpack.c.l.b16 %v422
      %v1188 = vunpack.c.l.b16 %v423
      %v1189 = vunpack.c.l.b16 %v424
      %v1190 = vunpack.c.l.b16 %v425
      %v1191 = vunpack.c.l.b16 %v426
      %v1192 = vunpack.c.l.b16 %v427
      %v1193 = vunpack.c.l.b16 %v428
      %v1194 = vunpack.c.l.b16 %v429
      %v1195 = vunpack.c.l.b16 %v430
      %v1196 = vunpack.c.l.b16 %v431
      %v1197 = vunpack.c.l.b16 %v432
      %v1198 = vunpack.c.l.b16 %v433
      %v1199 = vunpack.c.l.b16 %v434
      %v1200 = vunpack.c.l.b16 %v435
      %v1201 = vunpack.c.l.b16 %v436
      %v1202 = vunpack.c.l.b16 %v437
      %v1203 = vunpack.c.l.b16 %v438
      %v1204 = vunpack.c.l.b16 %v439
      %v1205 = vunpack.c.l.b16 %v440
      %v1206 = vunpack.c.l.b16 %v441
      %v1207 = vunpack.c.l.b16 %v442
      %v1208 = vunpack.c.l.b16 %v443
      %v1209 = vunpack.c.l.b16 %v444
      %v1210 = vunpack.c.l.b16 %v445
      %v1211 = vunpack.c.l.b16 %v446
      %v1212 = vunpack.c.l.b16 %v447
      %v1213 = vunpack.c.l.b16 %v448
      %v1214 = vunpack.c.l.b16 %v449
      %v1215 = vunpack.c.l.b16 %v450
      %v1216 = vunpack.c.l.b16 %v451
      %v1217 = vunpack.c.l.b16 %v452
      %v1218 = vunpack.c.l.b16 %v453
      %v1219 = vunpack.c.l.b16 %v454
      %v1220 = vunpack.c.l.b16 %v455
      %v1221 = vunpack.c.l.b16 %v456
      %v1222 = vunpack.c.l.b16 %v457
      %v1223 = vunpack.c.l.b16 %v458
      %v1224 = vunpack.c.l.b16 %v459
      %v1225 = vunpack.c.l.b16 %v460
      %v1226 = vunpack.c.l.b16 %v461
      %v1227 = vunpack.c.l.b16 %v462
      %v1228 = vunpack.c.l.b16 %v463
      %v1229 = vunpack.c.l.b16 %v464
      %v1230 = vunpack.c.l.b16 %v465
      %v1231 = vunpack.c.l.b16 %v466
      %v1232 = vpack.c.b16 %v1161, %v1160
      %v1233 = vpack.c.b16 %v1163, %v1162
      %v1234 = vpack.c.b16 %v1165, %v1164
      %v1235 = vpack.c.b16 %v1167, %v1166
      %v1236 = vpack.c.b16 %v1169, %v1168
      %v1237 = vpack.c.b16 %v1171, %v1170
      %v1238 = vpack.c.b16 %v1173, %v1172
      %v1239 = vpack.c.b16 %v1175, %v1174
      %v1240 = vpack.c.b16 %v1177, %v1176
      %v1241 = vpack.c.b16 %v1179, %v1178
      %v1242 = vpack.c.b16 %v1181, %v1180
      %v1243 = vpack.c.b16 %v1183, %v1182
      %v1244 = vpack.c.b16 %v1185, %v1184
      %v1245 = vpack.c.b16 %v1187, %v1186
      %v1246 = vpack.c.b16 %v1189, %v1188
      %v1247 = vpack.c.b16 %v1191, %v1190
      %v1248 = vpack.c.b16 %v1193, %v1192
      %v1249 = vpack.c.b16 %v1195, %v1194
      %v1250 = vpack.c.b16 %v1197, %v1196
      %v1251 = vpack.c.b16 %v1199, %v1198
      %v1252 = vpack.c.b16 %v1201, %v1200
      %v1253 = vpack.c.b16 %v1203, %v1202
      %v1254 = vpack.c.b16 %v1205, %v1204
      %v1255 = vpack.c.b16 %v1207, %v1206
      %v1256 = vpack.c.b16 %v1209, %v1208
      %v1257 = vpack.c.b16 %v1211, %v1210
      %v1258 = vpack.c.b16 %v1213, %v1212
      %v1259 = vpack.c.b16 %v1215, %v1214
      %v1260 = vpack.c.b16 %v1217, %v1216
      %v1261 = vpack.c.b16 %v1219, %v1218
      %v1262 = vpack.c.b16 %v1221, %v1220
      %v1263 = vpack.c.b16 %v1223, %v1222
      %v1264 = vpack.c.b16 %v1225, %v1224
      %v1265 = vpack.c.b16 %v1227, %v1226
      %v1266 = vpack.c.b16 %v1229, %v1228
      %v1267 = vpack.c.b16 %v1231, %v1230
      %vm1304 = vcmask 523264
      %v1306 = vsel %vm1304, %v867, 0
      %v1309 = vsel %vm1304, %v872, 0
      %v1312 = vsel %vm1304, %v877, 0
      %v1315 = vsel %vm1304, %v882, 0
      %v1318 = vsel %vm1304, %v887, 0
      %v1321 = vsel %vm1304, %v892, 0
      %v1324 = vsel %vm1304, %v897, 0
      %v1327 = vsel %vm1304, %v902, 0
      %v1330 = vsel %vm1304, %v907, 0
      %v1333 = vsel %vm1304, %v912, 0
      %v1336 = vsel %vm1304, %v917, 0
      %v1339 = vsel %vm1304, %v922, 0
      %v1342 = vsel %vm1304, %v927, 0
      %v1345 = vsel %vm1304, %v932, 0
      %v1348 = vsel %vm1304, %v937, 0
      %v1351 = vsel %vm1304, %v942, 0
      %v1354 = vsel %vm1304, %v947, 0
      %v1357 = vsel %vm1304, %v952, 0
      %v1360 = vsel %vm1304, %v957, 0
      %v1363 = vsel %vm1304, %v962, 0
      %v1366 = vsel %vm1304, %v967, 0
      %v1369 = vsel %vm1304, %v972, 0
      %v1372 = vsel %vm1304, %v977, 0
      %v1375 = vsel %vm1304, %v982, 0
      %v1378 = vsel %vm1304, %v987, 0
      %1380 = vmatpush.bf16.msra.mxu0 %v1239
      %1381 = vmatpush.bf16.msra.mxu0 %v1238
      %1382 = vmatpush.bf16.msra.mxu0 %v1237
      %1383 = vmatpush.bf16.msra.mxu0 %v1236
      %1384 = vmatpush.bf16.msra.mxu0 %v1235
      %1385 = vmatpush.bf16.msra.mxu0 %v1234
      %1386 = vmatpush.bf16.msra.mxu0 %v1233
      %1387 = vmatpush.bf16.msra.mxu0 %v1232
      %1388 = vmatmul.bf16.gmra.mxu0 %v863
      %v1389 = vpop.f32.mrf.mxu0
      %v1390 = vadd.f32 %v469, %v1389
      %v1391 = vpop.f32.mrf.mxu0
      %v1392 = vadd.f32 %v469, %v1391
      %1393 = vmatmul.bf16.gmra.mxu0 %v868
      %v1394 = vpop.f32.mrf.mxu0
      %v1395 = vadd.f32 %v469, %v1394
      %v1396 = vpop.f32.mrf.mxu0
      %v1397 = vadd.f32 %v469, %v1396
      %1398 = vmatmul.bf16.gmra.mxu0 %v873
      %v1399 = vpop.f32.mrf.mxu0
      %v1400 = vadd.f32 %v469, %v1399
      %v1401 = vpop.f32.mrf.mxu0
      %v1402 = vadd.f32 %v469, %v1401
      %1403 = vmatmul.bf16.gmra.mxu0 %v878
      %v1404 = vpop.f32.mrf.mxu0
      %v1405 = vadd.f32 %v469, %v1404
      %v1406 = vpop.f32.mrf.mxu0
      %v1407 = vadd.f32 %v469, %v1406
      %1408 = vmatmul.bf16.gmra.mxu0 %v883
      %v1409 = vpop.f32.mrf.mxu0
      %v1410 = vadd.f32 %v469, %v1409
      %v1411 = vpop.f32.mrf.mxu0
      %v1412 = vadd.f32 %v469, %v1411
      %1413 = vmatmul.bf16.gmra.mxu0 %v888
      %v1414 = vpop.f32.mrf.mxu0
      %v1415 = vadd.f32 %v469, %v1414
      %v1416 = vpop.f32.mrf.mxu0
      %v1417 = vadd.f32 %v469, %v1416
      %1418 = vmatmul.bf16.gmra.mxu0 %v893
      %v1419 = vpop.f32.mrf.mxu0
      %v1420 = vadd.f32 %v469, %v1419
      %v1421 = vpop.f32.mrf.mxu0
      %v1422 = vadd.f32 %v469, %v1421
      %1423 = vmatmul.bf16.gmra.mxu0 %v898
      %v1424 = vpop.f32.mrf.mxu0
      %v1425 = vadd.f32 %v469, %v1424
      %v1426 = vpop.f32.mrf.mxu0
      %v1427 = vadd.f32 %v469, %v1426
      %1428 = vmatmul.bf16.gmra.mxu0 %v903
      %v1429 = vpop.f32.mrf.mxu0
      %v1430 = vadd.f32 %v469, %v1429
      %v1431 = vpop.f32.mrf.mxu0
      %v1432 = vadd.f32 %v469, %v1431
      %1433 = vmatmul.bf16.gmra.mxu0 %v908
      %v1434 = vpop.f32.mrf.mxu0
      %v1435 = vadd.f32 %v469, %v1434
      %v1436 = vpop.f32.mrf.mxu0
      %v1437 = vadd.f32 %v469, %v1436
      %1438 = vmatmul.bf16.gmra.mxu0 %v913
      %v1439 = vpop.f32.mrf.mxu0
      %v1440 = vadd.f32 %v469, %v1439
      %v1441 = vpop.f32.mrf.mxu0
      %v1442 = vadd.f32 %v469, %v1441
      %1443 = vmatmul.bf16.gmra.mxu0 %v918
      %v1444 = vpop.f32.mrf.mxu0
      %v1445 = vadd.f32 %v469, %v1444
      %v1446 = vpop.f32.mrf.mxu0
      %v1447 = vadd.f32 %v469, %v1446
      %1448 = vmatmul.bf16.gmra.mxu0 %v923
      %v1449 = vpop.f32.mrf.mxu0
      %v1450 = vadd.f32 %v469, %v1449
      %v1451 = vpop.f32.mrf.mxu0
      %v1452 = vadd.f32 %v469, %v1451
      %1453 = vmatmul.bf16.gmra.mxu0 %v928
      %v1454 = vpop.f32.mrf.mxu0
      %v1455 = vadd.f32 %v469, %v1454
      %v1456 = vpop.f32.mrf.mxu0
      %v1457 = vadd.f32 %v469, %v1456
      %1458 = vmatmul.bf16.gmra.mxu0 %v933
      %v1459 = vpop.f32.mrf.mxu0
      %v1460 = vadd.f32 %v469, %v1459
      %v1461 = vpop.f32.mrf.mxu0
      %v1462 = vadd.f32 %v469, %v1461
      %1463 = vmatmul.bf16.gmra.mxu0 %v938
      %v1464 = vpop.f32.mrf.mxu0
      %v1465 = vadd.f32 %v469, %v1464
      %v1466 = vpop.f32.mrf.mxu0
      %v1467 = vadd.f32 %v469, %v1466
      %1468 = vmatmul.bf16.gmra.mxu0 %v943
      %v1469 = vpop.f32.mrf.mxu0
      %v1470 = vadd.f32 %v469, %v1469
      %v1471 = vpop.f32.mrf.mxu0
      %v1472 = vadd.f32 %v469, %v1471
      %1473 = vmatmul.bf16.gmra.mxu0 %v948
      %v1474 = vpop.f32.mrf.mxu0
      %v1475 = vadd.f32 %v469, %v1474
      %v1476 = vpop.f32.mrf.mxu0
      %v1477 = vadd.f32 %v469, %v1476
      %1478 = vmatmul.bf16.gmra.mxu0 %v953
      %v1479 = vpop.f32.mrf.mxu0
      %v1480 = vadd.f32 %v469, %v1479
      %v1481 = vpop.f32.mrf.mxu0
      %v1482 = vadd.f32 %v469, %v1481
      %1483 = vmatmul.bf16.gmra.mxu0 %v958
      %v1484 = vpop.f32.mrf.mxu0
      %v1485 = vadd.f32 %v469, %v1484
      %v1486 = vpop.f32.mrf.mxu0
      %v1487 = vadd.f32 %v469, %v1486
      %1488 = vmatmul.bf16.gmra.mxu0 %v963
      %v1489 = vpop.f32.mrf.mxu0
      %v1490 = vadd.f32 %v469, %v1489
      %v1491 = vpop.f32.mrf.mxu0
      %v1492 = vadd.f32 %v469, %v1491
      %1493 = vmatmul.bf16.gmra.mxu0 %v968
      %v1494 = vpop.f32.mrf.mxu0
      %v1495 = vadd.f32 %v469, %v1494
      %v1496 = vpop.f32.mrf.mxu0
      %v1497 = vadd.f32 %v469, %v1496
      %1498 = vmatmul.bf16.gmra.mxu0 %v973
      %v1499 = vpop.f32.mrf.mxu0
      %v1500 = vadd.f32 %v469, %v1499
      %v1501 = vpop.f32.mrf.mxu0
      %v1502 = vadd.f32 %v469, %v1501
      %1503 = vmatmul.bf16.gmra.mxu0 %v978
      %v1504 = vpop.f32.mrf.mxu0
      %v1505 = vadd.f32 %v469, %v1504
      %v1506 = vpop.f32.mrf.mxu0
      %v1507 = vadd.f32 %v469, %v1506
      %1508 = vmatmul.bf16.gmra.mxu0 %v983
      %v1509 = vpop.f32.mrf.mxu0
      %v1510 = vadd.f32 %v469, %v1509
      %v1511 = vpop.f32.mrf.mxu0
      %1512 = vdwg.mxu0
      %1513 = vmatpush.bf16.msra.mxu0 %v1247
      %1514 = vmatpush.bf16.msra.mxu0 %v1246
      %1515 = vmatpush.bf16.msra.mxu0 %v1245
      %1516 = vmatpush.bf16.msra.mxu0 %v1244
      %1517 = vmatpush.bf16.msra.mxu0 %v1243
      %1518 = vmatpush.bf16.msra.mxu0 %v1242
      %1519 = vmatpush.bf16.msra.mxu0 %v1241
      %1520 = vmatpush.bf16.msra.mxu0 %v1240
      %1521 = vmatmul.bf16.gmra.mxu0 %v864
      %v1522 = vpop.f32.mrf.mxu0
      %v1523 = vadd.f32 %v1390, %v1522
      %v1524 = vpop.f32.mrf.mxu0
      %v1525 = vadd.f32 %v1392, %v1524
      %1526 = vmatmul.bf16.gmra.mxu0 %v869
      %v1527 = vpop.f32.mrf.mxu0
      %v1528 = vadd.f32 %v1395, %v1527
      %v1529 = vpop.f32.mrf.mxu0
      %v1530 = vadd.f32 %v1397, %v1529
      %1531 = vmatmul.bf16.gmra.mxu0 %v874
      %v1532 = vpop.f32.mrf.mxu0
      %v1533 = vadd.f32 %v1400, %v1532
      %v1534 = vpop.f32.mrf.mxu0
      %v1535 = vadd.f32 %v1402, %v1534
      %1536 = vmatmul.bf16.gmra.mxu0 %v879
      %v1537 = vpop.f32.mrf.mxu0
      %v1538 = vadd.f32 %v1405, %v1537
      %v1539 = vpop.f32.mrf.mxu0
      %v1540 = vadd.f32 %v1407, %v1539
      %1541 = vmatmul.bf16.gmra.mxu0 %v884
      %v1542 = vpop.f32.mrf.mxu0
      %v1543 = vadd.f32 %v1410, %v1542
      %v1544 = vpop.f32.mrf.mxu0
      %v1545 = vadd.f32 %v1412, %v1544
      %1546 = vmatmul.bf16.gmra.mxu0 %v889
      %v1547 = vpop.f32.mrf.mxu0
      %v1548 = vadd.f32 %v1415, %v1547
      %v1549 = vpop.f32.mrf.mxu0
      %v1550 = vadd.f32 %v1417, %v1549
      %1551 = vmatmul.bf16.gmra.mxu0 %v894
      %v1552 = vpop.f32.mrf.mxu0
      %v1553 = vadd.f32 %v1420, %v1552
      %v1554 = vpop.f32.mrf.mxu0
      %v1555 = vadd.f32 %v1422, %v1554
      %1556 = vmatmul.bf16.gmra.mxu0 %v899
      %v1557 = vpop.f32.mrf.mxu0
      %v1558 = vadd.f32 %v1425, %v1557
      %v1559 = vpop.f32.mrf.mxu0
      %v1560 = vadd.f32 %v1427, %v1559
      %1561 = vmatmul.bf16.gmra.mxu0 %v904
      %v1562 = vpop.f32.mrf.mxu0
      %v1563 = vadd.f32 %v1430, %v1562
      %v1564 = vpop.f32.mrf.mxu0
      %v1565 = vadd.f32 %v1432, %v1564
      %1566 = vmatmul.bf16.gmra.mxu0 %v909
      %v1567 = vpop.f32.mrf.mxu0
      %v1568 = vadd.f32 %v1435, %v1567
      %v1569 = vpop.f32.mrf.mxu0
      %v1570 = vadd.f32 %v1437, %v1569
      %1571 = vmatmul.bf16.gmra.mxu0 %v914
      %v1572 = vpop.f32.mrf.mxu0
      %v1573 = vadd.f32 %v1440, %v1572
      %v1574 = vpop.f32.mrf.mxu0
      %v1575 = vadd.f32 %v1442, %v1574
      %1576 = vmatmul.bf16.gmra.mxu0 %v919
      %v1577 = vpop.f32.mrf.mxu0
      %v1578 = vadd.f32 %v1445, %v1577
      %v1579 = vpop.f32.mrf.mxu0
      %v1580 = vadd.f32 %v1447, %v1579
      %1581 = vmatmul.bf16.gmra.mxu0 %v924
      %v1582 = vpop.f32.mrf.mxu0
      %v1583 = vadd.f32 %v1450, %v1582
      %v1584 = vpop.f32.mrf.mxu0
      %v1585 = vadd.f32 %v1452, %v1584
      %1586 = vmatmul.bf16.gmra.mxu0 %v929
      %v1587 = vpop.f32.mrf.mxu0
      %v1588 = vadd.f32 %v1455, %v1587
      %v1589 = vpop.f32.mrf.mxu0
      %v1590 = vadd.f32 %v1457, %v1589
      %1591 = vmatmul.bf16.gmra.mxu0 %v934
      %v1592 = vpop.f32.mrf.mxu0
      %v1593 = vadd.f32 %v1460, %v1592
      %v1594 = vpop.f32.mrf.mxu0
      %v1595 = vadd.f32 %v1462, %v1594
      %1596 = vmatmul.bf16.gmra.mxu0 %v939
      %v1597 = vpop.f32.mrf.mxu0
      %v1598 = vadd.f32 %v1465, %v1597
      %v1599 = vpop.f32.mrf.mxu0
      %v1600 = vadd.f32 %v1467, %v1599
      %1601 = vmatmul.bf16.gmra.mxu0 %v944
      %v1602 = vpop.f32.mrf.mxu0
      %v1603 = vadd.f32 %v1470, %v1602
      %v1604 = vpop.f32.mrf.mxu0
      %v1605 = vadd.f32 %v1472, %v1604
      %1606 = vmatmul.bf16.gmra.mxu0 %v949
      %v1607 = vpop.f32.mrf.mxu0
      %v1608 = vadd.f32 %v1475, %v1607
      %v1609 = vpop.f32.mrf.mxu0
      %v1610 = vadd.f32 %v1477, %v1609
      %1611 = vmatmul.bf16.gmra.mxu0 %v954
      %v1612 = vpop.f32.mrf.mxu0
      %v1613 = vadd.f32 %v1480, %v1612
      %v1614 = vpop.f32.mrf.mxu0
      %v1615 = vadd.f32 %v1482, %v1614
      %1616 = vmatmul.bf16.gmra.mxu0 %v959
      %v1617 = vpop.f32.mrf.mxu0
      %v1618 = vadd.f32 %v1485, %v1617
      %v1619 = vpop.f32.mrf.mxu0
      %v1620 = vadd.f32 %v1487, %v1619
      %1621 = vmatmul.bf16.gmra.mxu0 %v964
      %v1622 = vpop.f32.mrf.mxu0
      %v1623 = vadd.f32 %v1490, %v1622
      %v1624 = vpop.f32.mrf.mxu0
      %v1625 = vadd.f32 %v1492, %v1624
      %1626 = vmatmul.bf16.gmra.mxu0 %v969
      %v1627 = vpop.f32.mrf.mxu0
      %v1628 = vadd.f32 %v1495, %v1627
      %v1629 = vpop.f32.mrf.mxu0
      %v1630 = vadd.f32 %v1497, %v1629
      %1631 = vmatmul.bf16.gmra.mxu0 %v974
      %v1632 = vpop.f32.mrf.mxu0
      %v1633 = vadd.f32 %v1500, %v1632
      %v1634 = vpop.f32.mrf.mxu0
      %v1635 = vadd.f32 %v1502, %v1634
      %1636 = vmatmul.bf16.gmra.mxu0 %v979
      %v1637 = vpop.f32.mrf.mxu0
      %v1638 = vadd.f32 %v1505, %v1637
      %v1639 = vpop.f32.mrf.mxu0
      %v1640 = vadd.f32 %v1507, %v1639
      %1641 = vmatmul.bf16.gmra.mxu0 %v984
      %v1642 = vpop.f32.mrf.mxu0
      %v1643 = vadd.f32 %v1510, %v1642
      %v1644 = vpop.f32.mrf.mxu0
      %1645 = vdwg.mxu0
      %1646 = vmatpush.bf16.msra.mxu0 %v1255
      %1647 = vmatpush.bf16.msra.mxu0 %v1254
      %1648 = vmatpush.bf16.msra.mxu0 %v1253
      %1649 = vmatpush.bf16.msra.mxu0 %v1252
      %1650 = vmatpush.bf16.msra.mxu0 %v1251
      %1651 = vmatpush.bf16.msra.mxu0 %v1250
      %1652 = vmatpush.bf16.msra.mxu0 %v1249
      %1653 = vmatpush.bf16.msra.mxu0 %v1248
      %1654 = vmatmul.bf16.gmra.mxu0 %v865
      %v1655 = vpop.f32.mrf.mxu0
      %v1656 = vadd.f32 %v1523, %v1655
      %v1657 = vpop.f32.mrf.mxu0
      %v1658 = vadd.f32 %v1525, %v1657
      %1659 = vmatmul.bf16.gmra.mxu0 %v870
      %v1660 = vpop.f32.mrf.mxu0
      %v1661 = vadd.f32 %v1528, %v1660
      %v1662 = vpop.f32.mrf.mxu0
      %v1663 = vadd.f32 %v1530, %v1662
      %1664 = vmatmul.bf16.gmra.mxu0 %v875
      %v1665 = vpop.f32.mrf.mxu0
      %v1666 = vadd.f32 %v1533, %v1665
      %v1667 = vpop.f32.mrf.mxu0
      %v1668 = vadd.f32 %v1535, %v1667
      %1669 = vmatmul.bf16.gmra.mxu0 %v880
      %v1670 = vpop.f32.mrf.mxu0
      %v1671 = vadd.f32 %v1538, %v1670
      %v1672 = vpop.f32.mrf.mxu0
      %v1673 = vadd.f32 %v1540, %v1672
      %1674 = vmatmul.bf16.gmra.mxu0 %v885
      %v1675 = vpop.f32.mrf.mxu0
      %v1676 = vadd.f32 %v1543, %v1675
      %v1677 = vpop.f32.mrf.mxu0
      %v1678 = vadd.f32 %v1545, %v1677
      %1679 = vmatmul.bf16.gmra.mxu0 %v890
      %v1680 = vpop.f32.mrf.mxu0
      %v1681 = vadd.f32 %v1548, %v1680
      %v1682 = vpop.f32.mrf.mxu0
      %v1683 = vadd.f32 %v1550, %v1682
      %1684 = vmatmul.bf16.gmra.mxu0 %v895
      %v1685 = vpop.f32.mrf.mxu0
      %v1686 = vadd.f32 %v1553, %v1685
      %v1687 = vpop.f32.mrf.mxu0
      %v1688 = vadd.f32 %v1555, %v1687
      %1689 = vmatmul.bf16.gmra.mxu0 %v900
      %v1690 = vpop.f32.mrf.mxu0
      %v1691 = vadd.f32 %v1558, %v1690
      %v1692 = vpop.f32.mrf.mxu0
      %v1693 = vadd.f32 %v1560, %v1692
      %1694 = vmatmul.bf16.gmra.mxu0 %v905
      %v1695 = vpop.f32.mrf.mxu0
      %v1696 = vadd.f32 %v1563, %v1695
      %v1697 = vpop.f32.mrf.mxu0
      %v1698 = vadd.f32 %v1565, %v1697
      %1699 = vmatmul.bf16.gmra.mxu0 %v910
      %v1700 = vpop.f32.mrf.mxu0
      %v1701 = vadd.f32 %v1568, %v1700
      %v1702 = vpop.f32.mrf.mxu0
      %v1703 = vadd.f32 %v1570, %v1702
      %1704 = vmatmul.bf16.gmra.mxu0 %v915
      %v1705 = vpop.f32.mrf.mxu0
      %v1706 = vadd.f32 %v1573, %v1705
      %v1707 = vpop.f32.mrf.mxu0
      %v1708 = vadd.f32 %v1575, %v1707
      %1709 = vmatmul.bf16.gmra.mxu0 %v920
      %v1710 = vpop.f32.mrf.mxu0
      %v1711 = vadd.f32 %v1578, %v1710
      %v1712 = vpop.f32.mrf.mxu0
      %v1713 = vadd.f32 %v1580, %v1712
      %1714 = vmatmul.bf16.gmra.mxu0 %v925
      %v1715 = vpop.f32.mrf.mxu0
      %v1716 = vadd.f32 %v1583, %v1715
      %v1717 = vpop.f32.mrf.mxu0
      %v1718 = vadd.f32 %v1585, %v1717
      %1719 = vmatmul.bf16.gmra.mxu0 %v930
      %v1720 = vpop.f32.mrf.mxu0
      %v1721 = vadd.f32 %v1588, %v1720
      %v1722 = vpop.f32.mrf.mxu0
      %v1723 = vadd.f32 %v1590, %v1722
      %1724 = vmatmul.bf16.gmra.mxu0 %v935
      %v1725 = vpop.f32.mrf.mxu0
      %v1726 = vadd.f32 %v1593, %v1725
      %v1727 = vpop.f32.mrf.mxu0
      %v1728 = vadd.f32 %v1595, %v1727
      %1729 = vmatmul.bf16.gmra.mxu0 %v940
      %v1730 = vpop.f32.mrf.mxu0
      %v1731 = vadd.f32 %v1598, %v1730
      %v1732 = vpop.f32.mrf.mxu0
      %v1733 = vadd.f32 %v1600, %v1732
      %1734 = vmatmul.bf16.gmra.mxu0 %v945
      %v1735 = vpop.f32.mrf.mxu0
      %v1736 = vadd.f32 %v1603, %v1735
      %v1737 = vpop.f32.mrf.mxu0
      %v1738 = vadd.f32 %v1605, %v1737
      %1739 = vmatmul.bf16.gmra.mxu0 %v950
      %v1740 = vpop.f32.mrf.mxu0
      %v1741 = vadd.f32 %v1608, %v1740
      %v1742 = vpop.f32.mrf.mxu0
      %v1743 = vadd.f32 %v1610, %v1742
      %1744 = vmatmul.bf16.gmra.mxu0 %v955
      %v1745 = vpop.f32.mrf.mxu0
      %v1746 = vadd.f32 %v1613, %v1745
      %v1747 = vpop.f32.mrf.mxu0
      %v1748 = vadd.f32 %v1615, %v1747
      %1749 = vmatmul.bf16.gmra.mxu0 %v960
      %v1750 = vpop.f32.mrf.mxu0
      %v1751 = vadd.f32 %v1618, %v1750
      %v1752 = vpop.f32.mrf.mxu0
      %v1753 = vadd.f32 %v1620, %v1752
      %1754 = vmatmul.bf16.gmra.mxu0 %v965
      %v1755 = vpop.f32.mrf.mxu0
      %v1756 = vadd.f32 %v1623, %v1755
      %v1757 = vpop.f32.mrf.mxu0
      %v1758 = vadd.f32 %v1625, %v1757
      %1759 = vmatmul.bf16.gmra.mxu0 %v970
      %v1760 = vpop.f32.mrf.mxu0
      %v1761 = vadd.f32 %v1628, %v1760
      %v1762 = vpop.f32.mrf.mxu0
      %v1763 = vadd.f32 %v1630, %v1762
      %1764 = vmatmul.bf16.gmra.mxu0 %v975
      %v1765 = vpop.f32.mrf.mxu0
      %v1766 = vadd.f32 %v1633, %v1765
      %v1767 = vpop.f32.mrf.mxu0
      %v1768 = vadd.f32 %v1635, %v1767
      %1769 = vmatmul.bf16.gmra.mxu0 %v980
      %v1770 = vpop.f32.mrf.mxu0
      %v1771 = vadd.f32 %v1638, %v1770
      %v1772 = vpop.f32.mrf.mxu0
      %v1773 = vadd.f32 %v1640, %v1772
      %1774 = vmatmul.bf16.gmra.mxu0 %v985
      %v1775 = vpop.f32.mrf.mxu0
      %v1776 = vadd.f32 %v1643, %v1775
      %v1777 = vpop.f32.mrf.mxu0
      %1778 = vdwg.mxu0
      %1779 = vmatpush.bf16.msra.mxu0 %v1263
      %1780 = vmatpush.bf16.msra.mxu0 %v1262
      %1781 = vmatpush.bf16.msra.mxu0 %v1261
      %1782 = vmatpush.bf16.msra.mxu0 %v1260
      %1783 = vmatpush.bf16.msra.mxu0 %v1259
      %1784 = vmatpush.bf16.msra.mxu0 %v1258
      %1785 = vmatpush.bf16.msra.mxu0 %v1257
      %1786 = vmatpush.bf16.msra.mxu0 %v1256
      %1787 = vmatmul.bf16.gmra.mxu0 %v866
      %v1788 = vpop.f32.mrf.mxu0
      %v1789 = vadd.f32 %v1656, %v1788
      %v1790 = vpop.f32.mrf.mxu0
      %v1791 = vadd.f32 %v1658, %v1790
      %1792 = vmatmul.bf16.gmra.mxu0 %v871
      %v1793 = vpop.f32.mrf.mxu0
      %v1794 = vadd.f32 %v1661, %v1793
      %v1795 = vpop.f32.mrf.mxu0
      %v1796 = vadd.f32 %v1663, %v1795
      %1797 = vmatmul.bf16.gmra.mxu0 %v876
      %v1798 = vpop.f32.mrf.mxu0
      %v1799 = vadd.f32 %v1666, %v1798
      %v1800 = vpop.f32.mrf.mxu0
      %v1801 = vadd.f32 %v1668, %v1800
      %1802 = vmatmul.bf16.gmra.mxu0 %v881
      %v1803 = vpop.f32.mrf.mxu0
      %v1804 = vadd.f32 %v1671, %v1803
      %v1805 = vpop.f32.mrf.mxu0
      %v1806 = vadd.f32 %v1673, %v1805
      %1807 = vmatmul.bf16.gmra.mxu0 %v886
      %v1808 = vpop.f32.mrf.mxu0
      %v1809 = vadd.f32 %v1676, %v1808
      %v1810 = vpop.f32.mrf.mxu0
      %v1811 = vadd.f32 %v1678, %v1810
      %1812 = vmatmul.bf16.gmra.mxu0 %v891
      %v1813 = vpop.f32.mrf.mxu0
      %v1814 = vadd.f32 %v1681, %v1813
      %v1815 = vpop.f32.mrf.mxu0
      %v1816 = vadd.f32 %v1683, %v1815
      %1817 = vmatmul.bf16.gmra.mxu0 %v896
      %v1818 = vpop.f32.mrf.mxu0
      %v1819 = vadd.f32 %v1686, %v1818
      %v1820 = vpop.f32.mrf.mxu0
      %v1821 = vadd.f32 %v1688, %v1820
      %1822 = vmatmul.bf16.gmra.mxu0 %v901
      %v1823 = vpop.f32.mrf.mxu0
      %v1824 = vadd.f32 %v1691, %v1823
      %v1825 = vpop.f32.mrf.mxu0
      %v1826 = vadd.f32 %v1693, %v1825
      %1827 = vmatmul.bf16.gmra.mxu0 %v906
      %v1828 = vpop.f32.mrf.mxu0
      %v1829 = vadd.f32 %v1696, %v1828
      %v1830 = vpop.f32.mrf.mxu0
      %v1831 = vadd.f32 %v1698, %v1830
      %1832 = vmatmul.bf16.gmra.mxu0 %v911
      %v1833 = vpop.f32.mrf.mxu0
      %v1834 = vadd.f32 %v1701, %v1833
      %v1835 = vpop.f32.mrf.mxu0
      %v1836 = vadd.f32 %v1703, %v1835
      %1837 = vmatmul.bf16.gmra.mxu0 %v916
      %v1838 = vpop.f32.mrf.mxu0
      %v1839 = vadd.f32 %v1706, %v1838
      %v1840 = vpop.f32.mrf.mxu0
      %v1841 = vadd.f32 %v1708, %v1840
      %1842 = vmatmul.bf16.gmra.mxu0 %v921
      %v1843 = vpop.f32.mrf.mxu0
      %v1844 = vadd.f32 %v1711, %v1843
      %v1845 = vpop.f32.mrf.mxu0
      %v1846 = vadd.f32 %v1713, %v1845
      %1847 = vmatmul.bf16.gmra.mxu0 %v926
      %v1848 = vpop.f32.mrf.mxu0
      %v1849 = vadd.f32 %v1716, %v1848
      %v1850 = vpop.f32.mrf.mxu0
      %v1851 = vadd.f32 %v1718, %v1850
      %1852 = vmatmul.bf16.gmra.mxu0 %v931
      %v1853 = vpop.f32.mrf.mxu0
      %v1854 = vadd.f32 %v1721, %v1853
      %v1855 = vpop.f32.mrf.mxu0
      %v1856 = vadd.f32 %v1723, %v1855
      %1857 = vmatmul.bf16.gmra.mxu0 %v936
      %v1858 = vpop.f32.mrf.mxu0
      %v1859 = vadd.f32 %v1726, %v1858
      %v1860 = vpop.f32.mrf.mxu0
      %v1861 = vadd.f32 %v1728, %v1860
      %1862 = vmatmul.bf16.gmra.mxu0 %v941
      %v1863 = vpop.f32.mrf.mxu0
      %v1864 = vadd.f32 %v1731, %v1863
      %v1865 = vpop.f32.mrf.mxu0
      %v1866 = vadd.f32 %v1733, %v1865
      %1867 = vmatmul.bf16.gmra.mxu0 %v946
      %v1868 = vpop.f32.mrf.mxu0
      %v1869 = vadd.f32 %v1736, %v1868
      %v1870 = vpop.f32.mrf.mxu0
      %v1871 = vadd.f32 %v1738, %v1870
      %1872 = vmatmul.bf16.gmra.mxu0 %v951
      %v1873 = vpop.f32.mrf.mxu0
      %v1874 = vadd.f32 %v1741, %v1873
      %v1875 = vpop.f32.mrf.mxu0
      %v1876 = vadd.f32 %v1743, %v1875
      %1877 = vmatmul.bf16.gmra.mxu0 %v956
      %v1878 = vpop.f32.mrf.mxu0
      %v1879 = vadd.f32 %v1746, %v1878
      %v1880 = vpop.f32.mrf.mxu0
      %v1881 = vadd.f32 %v1748, %v1880
      %1882 = vmatmul.bf16.gmra.mxu0 %v961
      %v1883 = vpop.f32.mrf.mxu0
      %v1884 = vadd.f32 %v1751, %v1883
      %v1885 = vpop.f32.mrf.mxu0
      %v1886 = vadd.f32 %v1753, %v1885
      %1887 = vmatmul.bf16.gmra.mxu0 %v966
      %v1888 = vpop.f32.mrf.mxu0
      %v1889 = vadd.f32 %v1756, %v1888
      %v1890 = vpop.f32.mrf.mxu0
      %v1891 = vadd.f32 %v1758, %v1890
      %1892 = vmatmul.bf16.gmra.mxu0 %v971
      %v1893 = vpop.f32.mrf.mxu0
      %v1894 = vadd.f32 %v1761, %v1893
      %v1895 = vpop.f32.mrf.mxu0
      %v1896 = vadd.f32 %v1763, %v1895
      %1897 = vmatmul.bf16.gmra.mxu0 %v976
      %v1898 = vpop.f32.mrf.mxu0
      %v1899 = vadd.f32 %v1766, %v1898
      %v1900 = vpop.f32.mrf.mxu0
      %v1901 = vadd.f32 %v1768, %v1900
      %1902 = vmatmul.bf16.gmra.mxu0 %v981
      %v1903 = vpop.f32.mrf.mxu0
      %v1904 = vadd.f32 %v1771, %v1903
      %v1905 = vpop.f32.mrf.mxu0
      %v1906 = vadd.f32 %v1773, %v1905
      %1907 = vmatmul.bf16.gmra.mxu0 %v986
      %v1908 = vpop.f32.mrf.mxu0
      %v1909 = vadd.f32 %v1776, %v1908
      %v1910 = vpop.f32.mrf.mxu0
      %1911 = vdwg.mxu0
      %1912 = vmatpush.bf16.msra.mxu0 0
      %1913 = vmatpush.bf16.msra.mxu0 0
      %1914 = vmatpush.bf16.msra.mxu0 0
      %1915 = vmatpush.bf16.msra.mxu0 0
      %1916 = vmatpush.bf16.msra.mxu0 %v1267
      %1917 = vmatpush.bf16.msra.mxu0 %v1266
      %1918 = vmatpush.bf16.msra.mxu0 %v1265
      %1919 = vmatpush.bf16.msra.mxu0 %v1264
      %1920 = vmatmul.bf16.gmra.mxu0 %v1306
      %v1921 = vpop.f32.mrf.mxu0
      %v1922 = vadd.f32 %v1789, %v1921
      %v1923 = vpop.f32.mrf.mxu0
      %v1924 = vadd.f32 %v1791, %v1923
      %1925 = vmatmul.bf16.gmra.mxu0 %v1309
      %v1926 = vpop.f32.mrf.mxu0
      %v1927 = vadd.f32 %v1794, %v1926
      %v1928 = vpop.f32.mrf.mxu0
      %v1929 = vadd.f32 %v1796, %v1928
      %1930 = vmatmul.bf16.gmra.mxu0 %v1312
      %v1931 = vpop.f32.mrf.mxu0
      %v1932 = vadd.f32 %v1799, %v1931
      %v1933 = vpop.f32.mrf.mxu0
      %v1934 = vadd.f32 %v1801, %v1933
      %1935 = vmatmul.bf16.gmra.mxu0 %v1315
      %v1936 = vpop.f32.mrf.mxu0
      %v1937 = vadd.f32 %v1804, %v1936
      %v1938 = vpop.f32.mrf.mxu0
      %v1939 = vadd.f32 %v1806, %v1938
      %1940 = vmatmul.bf16.gmra.mxu0 %v1318
      %v1941 = vpop.f32.mrf.mxu0
      %v1942 = vadd.f32 %v1809, %v1941
      %v1943 = vpop.f32.mrf.mxu0
      %v1944 = vadd.f32 %v1811, %v1943
      %1945 = vmatmul.bf16.gmra.mxu0 %v1321
      %v1946 = vpop.f32.mrf.mxu0
      %v1947 = vadd.f32 %v1814, %v1946
      %v1948 = vpop.f32.mrf.mxu0
      %v1949 = vadd.f32 %v1816, %v1948
      %1950 = vmatmul.bf16.gmra.mxu0 %v1324
      %v1951 = vpop.f32.mrf.mxu0
      %v1952 = vadd.f32 %v1819, %v1951
      %v1953 = vpop.f32.mrf.mxu0
      %v1954 = vadd.f32 %v1821, %v1953
      %1955 = vmatmul.bf16.gmra.mxu0 %v1327
      %v1956 = vpop.f32.mrf.mxu0
      %v1957 = vadd.f32 %v1824, %v1956
      %v1958 = vpop.f32.mrf.mxu0
      %v1959 = vadd.f32 %v1826, %v1958
      %1960 = vmatmul.bf16.gmra.mxu0 %v1330
      %v1961 = vpop.f32.mrf.mxu0
      %v1962 = vadd.f32 %v1829, %v1961
      %v1963 = vpop.f32.mrf.mxu0
      %v1964 = vadd.f32 %v1831, %v1963
      %1965 = vmatmul.bf16.gmra.mxu0 %v1333
      %v1966 = vpop.f32.mrf.mxu0
      %v1967 = vadd.f32 %v1834, %v1966
      %v1968 = vpop.f32.mrf.mxu0
      %v1969 = vadd.f32 %v1836, %v1968
      %1970 = vmatmul.bf16.gmra.mxu0 %v1336
      %v1971 = vpop.f32.mrf.mxu0
      %v1972 = vadd.f32 %v1839, %v1971
      %v1973 = vpop.f32.mrf.mxu0
      %v1974 = vadd.f32 %v1841, %v1973
      %1975 = vmatmul.bf16.gmra.mxu0 %v1339
      %v1976 = vpop.f32.mrf.mxu0
      %v1977 = vadd.f32 %v1844, %v1976
      %v1978 = vpop.f32.mrf.mxu0
      %v1979 = vadd.f32 %v1846, %v1978
      %1980 = vmatmul.bf16.gmra.mxu0 %v1342
      %v1981 = vpop.f32.mrf.mxu0
      %v1982 = vadd.f32 %v1849, %v1981
      %v1983 = vpop.f32.mrf.mxu0
      %v1984 = vadd.f32 %v1851, %v1983
      %1985 = vmatmul.bf16.gmra.mxu0 %v1345
      %v1986 = vpop.f32.mrf.mxu0
      %v1987 = vadd.f32 %v1854, %v1986
      %v1988 = vpop.f32.mrf.mxu0
      %v1989 = vadd.f32 %v1856, %v1988
      %1990 = vmatmul.bf16.gmra.mxu0 %v1348
      %v1991 = vpop.f32.mrf.mxu0
      %v1992 = vadd.f32 %v1859, %v1991
      %v1993 = vpop.f32.mrf.mxu0
      %v1994 = vadd.f32 %v1861, %v1993
      %1995 = vmatmul.bf16.gmra.mxu0 %v1351
      %v1996 = vpop.f32.mrf.mxu0
      %v1997 = vadd.f32 %v1864, %v1996
      %v1998 = vpop.f32.mrf.mxu0
      %v1999 = vadd.f32 %v1866, %v1998
      %2000 = vmatmul.bf16.gmra.mxu0 %v1354
      %v2001 = vpop.f32.mrf.mxu0
      %v2002 = vadd.f32 %v1869, %v2001
      %v2003 = vpop.f32.mrf.mxu0
      %v2004 = vadd.f32 %v1871, %v2003
      %2005 = vmatmul.bf16.gmra.mxu0 %v1357
      %v2006 = vpop.f32.mrf.mxu0
      %v2007 = vadd.f32 %v1874, %v2006
      %v2008 = vpop.f32.mrf.mxu0
      %v2009 = vadd.f32 %v1876, %v2008
      %2010 = vmatmul.bf16.gmra.mxu0 %v1360
      %v2011 = vpop.f32.mrf.mxu0
      %v2012 = vadd.f32 %v1879, %v2011
      %v2013 = vpop.f32.mrf.mxu0
      %v2014 = vadd.f32 %v1881, %v2013
      %2015 = vmatmul.bf16.gmra.mxu0 %v1363
      %v2016 = vpop.f32.mrf.mxu0
      %v2017 = vadd.f32 %v1884, %v2016
      %v2018 = vpop.f32.mrf.mxu0
      %v2019 = vadd.f32 %v1886, %v2018
      %2020 = vmatmul.bf16.gmra.mxu0 %v1366
      %v2021 = vpop.f32.mrf.mxu0
      %v2022 = vadd.f32 %v1889, %v2021
      %v2023 = vpop.f32.mrf.mxu0
      %v2024 = vadd.f32 %v1891, %v2023
      %2025 = vmatmul.bf16.gmra.mxu0 %v1369
      %v2026 = vpop.f32.mrf.mxu0
      %v2027 = vadd.f32 %v1894, %v2026
      %v2028 = vpop.f32.mrf.mxu0
      %v2029 = vadd.f32 %v1896, %v2028
      %2030 = vmatmul.bf16.gmra.mxu0 %v1372
      %v2031 = vpop.f32.mrf.mxu0
      %v2032 = vadd.f32 %v1899, %v2031
      %v2033 = vpop.f32.mrf.mxu0
      %v2034 = vadd.f32 %v1901, %v2033
      %2035 = vmatmul.bf16.gmra.mxu0 %v1375
      %v2036 = vpop.f32.mrf.mxu0
      %v2037 = vadd.f32 %v1904, %v2036
      %v2038 = vpop.f32.mrf.mxu0
      %v2039 = vadd.f32 %v1906, %v2038
      %2040 = vmatmul.bf16.gmra.mxu0 %v1378
      %v2041 = vpop.f32.mrf.mxu0
      %v2042 = vadd.f32 %v1909, %v2041
      %v2043 = vpop.f32.mrf.mxu0
      %2044 = vdwg.mxu0
      %v2045 = vmax.f32 %v1922, 0.0
      %v2046 = vmax.f32 %v1924, 0.0
      %v2047 = vmax.f32 %v1927, 0.0
      %v2048 = vmax.f32 %v1929, 0.0
      %v2049 = vmax.f32 %v1932, 0.0
      %v2050 = vmax.f32 %v1934, 0.0
      %v2051 = vmax.f32 %v1937, 0.0
      %v2052 = vmax.f32 %v1939, 0.0
      %v2053 = vmax.f32 %v1942, 0.0
      %v2054 = vmax.f32 %v1944, 0.0
      %v2055 = vmax.f32 %v1947, 0.0
      %v2056 = vmax.f32 %v1949, 0.0
      %v2057 = vmax.f32 %v1952, 0.0
      %v2058 = vmax.f32 %v1954, 0.0
      %v2059 = vmax.f32 %v1957, 0.0
      %v2060 = vmax.f32 %v1959, 0.0
      %v2061 = vmax.f32 %v1962, 0.0
      %v2062 = vmax.f32 %v1964, 0.0
      %v2063 = vmax.f32 %v1967, 0.0
      %v2064 = vmax.f32 %v1969, 0.0
      %v2065 = vmax.f32 %v1972, 0.0
      %v2066 = vmax.f32 %v1974, 0.0
      %v2067 = vmax.f32 %v1977, 0.0
      %v2068 = vmax.f32 %v1979, 0.0
      %v2069 = vmax.f32 %v1982, 0.0
      %v2070 = vmax.f32 %v1984, 0.0
      %v2071 = vmax.f32 %v1987, 0.0
      %v2072 = vmax.f32 %v1989, 0.0
      %v2073 = vmax.f32 %v1992, 0.0
      %v2074 = vmax.f32 %v1994, 0.0
      %v2075 = vmax.f32 %v1997, 0.0
      %v2076 = vmax.f32 %v1999, 0.0
      %v2077 = vmax.f32 %v2002, 0.0
      %v2078 = vmax.f32 %v2004, 0.0
      %v2079 = vmax.f32 %v2007, 0.0
      %v2080 = vmax.f32 %v2009, 0.0
      %v2081 = vmax.f32 %v2012, 0.0
      %v2082 = vmax.f32 %v2014, 0.0
      %v2083 = vmax.f32 %v2017, 0.0
      %v2084 = vmax.f32 %v2019, 0.0
      %v2085 = vmax.f32 %v2022, 0.0
      %v2086 = vmax.f32 %v2024, 0.0
      %v2087 = vmax.f32 %v2027, 0.0
      %v2088 = vmax.f32 %v2029, 0.0
      %v2089 = vmax.f32 %v2032, 0.0
      %v2090 = vmax.f32 %v2034, 0.0
      %v2091 = vmax.f32 %v2037, 0.0
      %v2092 = vmax.f32 %v2039, 0.0
      %v2093 = vmax.f32 %v2042, 0.0
      %v2094 = vpack.c.bf16 %v2045, %v2045
      %v2095 = vpack.c.bf16 %v2046, %v2046
      %v2096 = vpack.c.bf16 %v2047, %v2047
      %v2097 = vpack.c.bf16 %v2048, %v2048
      %v2098 = vpack.c.bf16 %v2049, %v2049
      %v2099 = vpack.c.bf16 %v2050, %v2050
      %v2100 = vpack.c.bf16 %v2051, %v2051
      %v2101 = vpack.c.bf16 %v2052, %v2052
      %v2102 = vpack.c.bf16 %v2053, %v2053
      %v2103 = vpack.c.bf16 %v2054, %v2054
      %v2104 = vpack.c.bf16 %v2055, %v2055
      %v2105 = vpack.c.bf16 %v2056, %v2056
      %v2106 = vpack.c.bf16 %v2057, %v2057
      %v2107 = vpack.c.bf16 %v2058, %v2058
      %v2108 = vpack.c.bf16 %v2059, %v2059
      %v2109 = vpack.c.bf16 %v2060, %v2060
      %v2110 = vpack.c.bf16 %v2061, %v2061
      %v2111 = vpack.c.bf16 %v2062, %v2062
      %v2112 = vpack.c.bf16 %v2063, %v2063
      %v2113 = vpack.c.bf16 %v2064, %v2064
      %v2114 = vpack.c.bf16 %v2065, %v2065
      %v2115 = vpack.c.bf16 %v2066, %v2066
      %v2116 = vpack.c.bf16 %v2067, %v2067
      %v2117 = vpack.c.bf16 %v2068, %v2068
      %v2118 = vpack.c.bf16 %v2069, %v2069
      %v2119 = vpack.c.bf16 %v2070, %v2070
      %v2120 = vpack.c.bf16 %v2071, %v2071
      %v2121 = vpack.c.bf16 %v2072, %v2072
      %v2122 = vpack.c.bf16 %v2073, %v2073
      %v2123 = vpack.c.bf16 %v2074, %v2074
      %v2124 = vpack.c.bf16 %v2075, %v2075
      %v2125 = vpack.c.bf16 %v2076, %v2076
      %v2126 = vpack.c.bf16 %v2077, %v2077
      %v2127 = vpack.c.bf16 %v2078, %v2078
      %v2128 = vpack.c.bf16 %v2079, %v2079
      %v2129 = vpack.c.bf16 %v2080, %v2080
      %v2130 = vpack.c.bf16 %v2081, %v2081
      %v2131 = vpack.c.bf16 %v2082, %v2082
      %v2132 = vpack.c.bf16 %v2083, %v2083
      %v2133 = vpack.c.bf16 %v2084, %v2084
      %v2134 = vpack.c.bf16 %v2085, %v2085
      %v2135 = vpack.c.bf16 %v2086, %v2086
      %v2136 = vpack.c.bf16 %v2087, %v2087
      %v2137 = vpack.c.bf16 %v2088, %v2088
      %v2138 = vpack.c.bf16 %v2089, %v2089
      %v2139 = vpack.c.bf16 %v2090, %v2090
      %v2140 = vpack.c.bf16 %v2091, %v2091
      %v2141 = vpack.c.bf16 %v2092, %v2092
      %v2142 = vpack.c.bf16 %v2093, %v2093
      %vm2143 = vcmask 781312
      %2144 = vst.msk [vmem:[%s245] sm:$0xf] %vm2143, %v2094
      %2145 = vst.msk [vmem:[%s245 + $0x4] sm:$0xf] %vm2143, %v2095
      %2146 = vst.msk [vmem:[%s245 + $0x8] sm:$0xf] %vm2143, %v2096
      %2147 = vst.msk [vmem:[%s245 + $0xc] sm:$0xf] %vm2143, %v2097
      %2148 = vst.msk [vmem:[%s245 + $0x10] sm:$0xf] %vm2143, %v2098
      %2149 = vst.msk [vmem:[%s245 + $0x14] sm:$0xf] %vm2143, %v2099
      %2150 = vst.msk [vmem:[%s245 + $0x18] sm:$0xf] %vm2143, %v2100
      %2151 = vst.msk [vmem:[%s245 + $0x1c] sm:$0xf] %vm2143, %v2101
      %2152 = vst.msk [vmem:[%s245 + $0x20] sm:$0xf] %vm2143, %v2102
      %2153 = vst.msk [vmem:[%s245 + $0x24] sm:$0xf] %vm2143, %v2103
      %2154 = vst.msk [vmem:[%s245 + $0x28] sm:$0xf] %vm2143, %v2104
      %2155 = vst.msk [vmem:[%s245 + $0x2c] sm:$0xf] %vm2143, %v2105
      %2156 = vst.msk [vmem:[%s245 + $0x30] sm:$0xf] %vm2143, %v2106
      %2157 = vst.msk [vmem:[%s245 + $0x34] sm:$0xf] %vm2143, %v2107
      %2158 = vst.msk [vmem:[%s245 + $0x38] sm:$0xf] %vm2143, %v2108
      %2159 = vst.msk [vmem:[%s245 + $0x3c] sm:$0xf] %vm2143, %v2109
      %2160 = vst.msk [vmem:[%s245 + $0x40] sm:$0xf] %vm2143, %v2110
      %2161 = vst.msk [vmem:[%s245 + $0x44] sm:$0xf] %vm2143, %v2111
      %2162 = vst.msk [vmem:[%s245 + $0x48] sm:$0xf] %vm2143, %v2112
      %2163 = vst.msk [vmem:[%s245 + $0x4c] sm:$0xf] %vm2143, %v2113
      %2164 = vst.msk [vmem:[%s245 + $0x50] sm:$0xf] %vm2143, %v2114
      %2165 = vst.msk [vmem:[%s245 + $0x54] sm:$0xf] %vm2143, %v2115
      %2166 = vst.msk [vmem:[%s245 + $0x58] sm:$0xf] %vm2143, %v2116
      %2167 = vst.msk [vmem:[%s245 + $0x5c] sm:$0xf] %vm2143, %v2117
      %2168 = vst.msk [vmem:[%s245 + $0x60] sm:$0xf] %vm2143, %v2118
      %2169 = vst.msk [vmem:[%s245 + $0x64] sm:$0xf] %vm2143, %v2119
      %2170 = vst.msk [vmem:[%s245 + $0x68] sm:$0xf] %vm2143, %v2120
      %2171 = vst.msk [vmem:[%s245 + $0x6c] sm:$0xf] %vm2143, %v2121
      %2172 = vst.msk [vmem:[%s245 + $0x70] sm:$0xf] %vm2143, %v2122
      %2173 = vst.msk [vmem:[%s245 + $0x74] sm:$0xf] %vm2143, %v2123
      %2174 = vst.msk [vmem:[%s245 + $0x78] sm:$0xf] %vm2143, %v2124
      %2175 = vst.msk [vmem:[%s245 + $0x7c] sm:$0xf] %vm2143, %v2125
      %2176 = vst.msk [vmem:[%s245 + $0x80] sm:$0xf] %vm2143, %v2126
      %2177 = vst.msk [vmem:[%s245 + $0x84] sm:$0xf] %vm2143, %v2127
      %2178 = vst.msk [vmem:[%s245 + $0x88] sm:$0xf] %vm2143, %v2128
      %2179 = vst.msk [vmem:[%s245 + $0x8c] sm:$0xf] %vm2143, %v2129
      %2180 = vst.msk [vmem:[%s245 + $0x90] sm:$0xf] %vm2143, %v2130
      %2181 = vst.msk [vmem:[%s245 + $0x94] sm:$0xf] %vm2143, %v2131
      %2182 = vst.msk [vmem:[%s245 + $0x98] sm:$0xf] %vm2143, %v2132
      %2183 = vst.msk [vmem:[%s245 + $0x9c] sm:$0xf] %vm2143, %v2133
      %2184 = vst.msk [vmem:[%s245 + $0xa0] sm:$0xf] %vm2143, %v2134
      %2185 = vst.msk [vmem:[%s245 + $0xa4] sm:$0xf] %vm2143, %v2135
      %2186 = vst.msk [vmem:[%s245 + $0xa8] sm:$0xf] %vm2143, %v2136
      %2187 = vst.msk [vmem:[%s245 + $0xac] sm:$0xf] %vm2143, %v2137
      %2188 = vst.msk [vmem:[%s245 + $0xb0] sm:$0xf] %vm2143, %v2138
      %2189 = vst.msk [vmem:[%s245 + $0xb4] sm:$0xf] %vm2143, %v2139
      %2190 = vst.msk [vmem:[%s245 + $0xb8] sm:$0xf] %vm2143, %v2140
      %2191 = vst.msk [vmem:[%s245 + $0xbc] sm:$0xf] %vm2143, %v2141
      %2192 = vst.msk [vmem:[%s245 + $0xc0] sm:$0xf] %vm2143, %v2142
      %s2193 = smul.u32 49, %s19
      %p2194 = scmp.lt.s32.totalorder %s18, 1
      %s2195 = scalar_select %p2194, %s18, 1
      %p2196 = scmp.lt.s32.totalorder %s2193, 48
      %s2197 = scalar_select %p2196, %s2193, 48
      %s2198 = smul.addr %s2195, 49
      %s2199 = sadd.s32 %s2197, %s2198
      %s2200 = smul.addr %s2199, 4
      %s2201 = scalar_lea.vmem %s3, %s2200
      // Predicated region
      $region33: #{_lambda_.7} parent=31 // pred_check
        %p2202 = pneg %p126
      $region34: #{_lambda_.7} parent=31 // pred_check_branch
        %2204 = sbr.rel (%p2202) target = $region36
      $region35: #{_lambda_.7} parent=31 // pred_region
        %s2205 = smul.u32 49, %s19
      $region36: #{_lambda_.7} parent=31 // pred_fallthru
        _
    $region32: #{_lambda_.7} parent=5 // pred_fallthru
      _
    %p2206 = scmp.le.s32.totalorder 2, %s9
    // Predicated region
    $region37: #{_lambda_.7} parent=5 // pred_check
      %p2207 = pneg %p2206
    $region38: #{_lambda_.7} parent=5 // pred_check_branch
      %2209 = sbr.rel (%p2207) target = $region40
    $region39: #{_lambda_.7} parent=5 // pred_region
      %s2210 = ssub.s32 %s9, 2
      // Predicated region
      $region41: #{_lambda_.7} parent=39 // pred_check
        %p2211 = pneg %p132
      $region42: #{_lambda_.7} parent=39 // pred_check_branch
        %2213 = sbr.rel (%p2211) target = $region44
      $region43: #{_lambda_.7} parent=39 // pred_region
        %s2214 = smul.u32 49, %s21
        %p2215 = scmp.lt.s32.totalorder %s20, 1
        %s2216 = scalar_select %p2215, %s20, 1
        %p2217 = scmp.lt.s32.totalorder %s2214, 48
        %s2218 = scalar_select %p2217, %s2214, 48
        %s2219 = smul.addr %s2216, 49
        %s2220 = sadd.s32 %s2218, %s2219
        %s2221 = smul.addr %s2220, 4
        %s2222 = scalar_lea.vmem %s3, %s2221
      $region44: #{_lambda_.7} parent=39 // pred_fallthru
        _
    $region40: #{_lambda_.7} parent=5 // pred_fallthru
      _
  $region6: #{_lambda_.7} parent=0 // loop_footer
    %s13 = sadd.s32 1, %s9
  $region7: #{_lambda_.7} parent=0 // loop_footer_branch
    %8 = sbr.rel target = $region3
  $region8: #{_lambda_.7} parent=0 // loop_exit
    _

</llo_original>
